<compile_context>
chip_gen: v7x
topology: tpu7x:2x2x1
jax: 0.10.0
libtpu: 0.0.40
codegen_flags: <defaults>
</compile_context>

<pallas_src>
import functools

import jax
import jax.numpy as jnp
from jax.experimental import pallas as pl
from jax.experimental.pallas import tpu as pltpu

NEG = -1e30


def _leaky_relu(x, slope=0.2):
    # slope < 1  =>  leaky_relu(x) == max(x, slope*x); no select needed.
    return jnp.maximum(x, slope * x)


def _elu(x):
    # Clamp the exp argument so the unselected branch cannot overflow to inf.
    return jnp.where(x > 0, x, jnp.exp(jnp.minimum(x, 0.0)) - 1.0)


# ------------------- projection kernel (h, a_src, a_dst) --------------------
def _project_kernel(x_ref, w_ref, asel_ref, dsel_ref, h_ref, asrc_ref, adst_ref):
    # h = x @ W in f32; attention logits are computed from the f32 h (exact),
    # then h is stored bf16 (storage/DMA compression only).
    h = jnp.dot(x_ref[...], w_ref[...], preferred_element_type=jnp.float32)
    asrc_ref[...] = jnp.dot(h, asel_ref[...], preferred_element_type=jnp.float32)
    adst_ref[...] = jnp.dot(h, dsel_ref[...], preferred_element_type=jnp.float32)
    h_ref[...] = h.astype(h_ref.dtype)


def gat_project(x, w, a_src_sel, a_dst_sel, *, tile_rows):
    n, f = x.shape
    hc = w.shape[1]
    heads = a_src_sel.shape[1]
    return pl.pallas_call(
        _project_kernel,
        out_shape=(jax.ShapeDtypeStruct((n, hc), jnp.bfloat16),     # h (compressed)
                   jax.ShapeDtypeStruct((n, heads), jnp.float32),   # a_src
                   jax.ShapeDtypeStruct((n, heads), jnp.float32)),  # a_dst
        grid=(n // tile_rows,),
        in_specs=[pl.BlockSpec((tile_rows, f), lambda i: (i, 0)),
                  pl.BlockSpec((f, hc), lambda i: (0, 0)),
                  pl.BlockSpec((hc, heads), lambda i: (0, 0)),
                  pl.BlockSpec((hc, heads), lambda i: (0, 0))],
        out_specs=(pl.BlockSpec((tile_rows, hc), lambda i: (i, 0)),
                   pl.BlockSpec((tile_rows, heads), lambda i: (i, 0)),
                   pl.BlockSpec((tile_rows, heads), lambda i: (i, 0))),
        compiler_params=pltpu.CompilerParams(
            dimension_semantics=("parallel",)),
    )(x, w, a_src_sel, a_dst_sel)


# ---------------------------- attention kernel ------------------------------
def _attend_kernel(h_ref, mask_ref, asrcT_ref, adst_ref, bias_ref, out_ref,
                   *, heads, out_ch, apply_elu):
    # Additive mask from the compressed int8 adjacency (0/1): 0 where connected,
    # -1e30 where not.  After subtracting the row max, exp() of masked entries
    # underflows to exactly 0.  Invariant: every destination row has at least one
    # unmasked entry (self-loops are added for ALL nodes, including padding).
    mask_bias = (1.0 - mask_ref[...].astype(jnp.float32)) * NEG      # [T, N]

    h_src = h_ref[...].astype(jnp.float32)                           # [N, H*C]
    adst = adst_ref[...]                                             # [T, H]
    asrcT = asrcT_ref[...]                                           # [H, N]

    outs = []
    for hd in range(heads):
        # e[i, j] = leaky_relu(a_dst[i] + a_src[j]) for edge j -> i, masked.
        e = _leaky_relu(adst[:, hd:hd + 1] + asrcT[hd:hd + 1, :]) + mask_bias
        e = e - jnp.max(e, axis=-1, keepdims=True)
        p = jnp.exp(e)                                               # masked -> exactly 0
        s = jnp.sum(p, axis=-1, keepdims=True)                       # [T, 1]
        o = jnp.dot(p, h_src[:, hd * out_ch:(hd + 1) * out_ch],
                    preferred_element_type=jnp.float32)              # [T, C]
        outs.append(o * (1.0 / s))                                   # normalize post-matmul
    out = jnp.concatenate(outs, axis=-1) if heads > 1 else outs[0]
    out = out + bias_ref[...]
    if apply_elu:
        out = _elu(out)
    out_ref[...] = out


def gat_attend(h, adj_mask, a_srcT, a_dst, bias, *,
               heads, out_ch, tile_i, apply_elu):
    n, hc = h.shape
    out_dim = heads * out_ch
    kernel = functools.partial(_attend_kernel, heads=heads, out_ch=out_ch,
                               apply_elu=apply_elu)
    return pl.pallas_call(
        kernel,
        out_shape=jax.ShapeDtypeStruct((n, out_dim), jnp.float32),
        grid=(n // tile_i,),
        in_specs=[pl.BlockSpec((n, hc), lambda i: (0, 0)),           # h (bf16, all sources)
                  pl.BlockSpec((tile_i, n), lambda i: (i, 0)),       # int8 adjacency tile
                  pl.BlockSpec((heads, n), lambda i: (0, 0)),        # a_src^T  [H, N]
                  pl.BlockSpec((tile_i, heads), lambda i: (i, 0)),   # a_dst tile
                  pl.BlockSpec((1, out_dim), lambda i: (0, 0))],     # layer bias
        out_specs=pl.BlockSpec((tile_i, out_dim), lambda i: (i, 0)),
        compiler_params=pltpu.CompilerParams(
            dimension_semantics=("parallel",)),
    )(h, adj_mask, a_srcT, a_dst, bias)


# --------------------------- pool + fc + log_softmax ------------------------
def _pool_fc_kernel(pool_ref, h_ref, wfc_ref, bfc_ref, out_ref):
    g = jnp.dot(pool_ref[...], h_ref[...],
                preferred_element_type=jnp.float32)                  # [B, hidden]
    logits = jnp.dot(g, wfc_ref[...],
                     preferred_element_type=jnp.float32) + bfc_ref[...]
    z = logits - jnp.max(logits, axis=1, keepdims=True)
    lse = jnp.log(jnp.sum(jnp.exp(z), axis=1, keepdims=True))
    out_ref[...] = z - lse


def pool_fc(pool, h2, wfc, bfc):
    b = pool.shape[0]
    out_dim = wfc.shape[1]
    return pl.pallas_call(
        _pool_fc_kernel,
        out_shape=jax.ShapeDtypeStruct((b, out_dim), jnp.float32),
        grid=(1,),
        in_specs=[pl.BlockSpec(pool.shape, lambda i: (0, 0)),
                  pl.BlockSpec(h2.shape, lambda i: (0, 0)),
                  pl.BlockSpec(wfc.shape, lambda i: (0, 0)),
                  pl.BlockSpec(bfc.shape, lambda i: (0, 0))],
        out_specs=pl.BlockSpec((b, out_dim), lambda i: (0, 0)),
    )(pool, h2, wfc, bfc)


# ------------------------------- full forward -------------------------------
def _make_head_selector(att):
    """att: [H, C] -> block-diagonal selector [H*C, H] so that h @ sel == per-head dot."""
    h, c = att.shape
    rows = jnp.arange(h * c)
    return jnp.zeros((h * c, h), att.dtype).at[rows, rows // c].set(att.reshape(-1))


def gat_forward(x, adj_mask, pool, params, *, heads, hidden, tile_i):
    as1 = _make_head_selector(params["as1"])
    ad1 = _make_head_selector(params["ad1"])
    as2 = _make_head_selector(params["as2"])
    ad2 = _make_head_selector(params["ad2"])

    # conv1 (heads=8, concat) + ELU
    h1p, asrc1, adst1 = gat_project(x, params["w1"], as1, ad1, tile_rows=tile_i)
    h1 = gat_attend(h1p, adj_mask, asrc1.T, adst1, params["b1"],
                    heads=heads, out_ch=hidden, tile_i=tile_i, apply_elu=True)
    # conv2 (heads=1, concat)
    h2p, asrc2, adst2 = gat_project(h1, params["w2"], as2, ad2, tile_rows=tile_i)
    h2 = gat_attend(h2p, adj_mask, asrc2.T, adst2, params["b2"],
                    heads=1, out_ch=hidden, tile_i=tile_i, apply_elu=False)
    # global mean pool + fc + log_softmax
    return pool_fc(pool, h2, params["wfc"], params["bfc"])


# ------------------------------ pure-JAX reference ---------------------------
def gat_reference(x, adj, pool, params, *, heads, hidden):
    def layer(xi, w, att_src, att_dst, b, nh, c):
        n = xi.shape[0]
        hh = (xi @ w).reshape(n, nh, c)
        a_src = jnp.einsum("nhc,hc->nh", hh, att_src)
        a_dst = jnp.einsum("nhc,hc->nh", hh, att_dst)
        e = a_dst.T[:, :, None] + a_src.T[:, None, :]                # [H, Ndst, Nsrc]
        e = jnp.where(e > 0, e, 0.2 * e)
        e = jnp.where((adj > 0)[None], e, -jnp.inf)
        alpha = jax.nn.softmax(e, axis=-1)
        out = jnp.einsum("hij,jhc->ihc", alpha, hh).reshape(n, nh * c)
        return out + b

    h1 = jax.nn.elu(layer(x, params["w1"], params["as1"], params["ad1"],
                          params["b1"], heads, hidden))
    h2 = layer(h1, params["w2"], params["as2"], params["ad2"],
               params["b2"], 1, hidden)
    logits = (pool @ h2) @ params["wfc"] + params["bfc"]
    return jax.nn.log_softmax(logits, axis=1)


if __name__ == "__main__":
    # Small synthetic batch: 2 graphs x 8 nodes (bidirectional rings), padded to 128.
    N_REAL, B = 16, 2
    N_PAD = 128                     # lane-dense node axis
    TILE_I = 64                     # destination-row tile (grid of 2: both v7x TCs busy)
    input_dim, hidden_dim, output_dim, heads = 4, 8, 3, 8

    key = jax.random.PRNGKey(0)
    ks = jax.random.split(key, 12)

    # Node features (padded nodes are zero).
    x_real = jax.random.normal(ks[0], (N_REAL, input_dim), dtype=jnp.float32)
    x = jnp.zeros((N_PAD, input_dim), jnp.float32).at[:N_REAL].set(x_real)

    # edge_index-equivalent: bidirectional ring inside each graph.
    src, dst = [], []
    for g in range(B):
        base = g * 8
        for i in range(8):
            a, b = base + i, base + (i + 1) % 8
            src += [a, b]
            dst += [b, a]
    src = jnp.array(src, dtype=jnp.int32)
    dst = jnp.array(dst, dtype=jnp.int32)

    adj = jnp.zeros((N_PAD, N_PAD), jnp.float32).at[dst, src].set(1.0)
    adj = jnp.maximum(adj, jnp.eye(N_PAD, dtype=jnp.float32))   # self-loops (ALL nodes)
    adj_mask = (adj > 0.0).astype(jnp.int8)                     # compressed 0/1 mask

    # batch vector -> mean-pool matrix (padded nodes get zero weight).
    batch = jnp.concatenate([jnp.zeros(8, jnp.int32), jnp.ones(8, jnp.int32)])
    pool = jnp.zeros((B, N_PAD), jnp.float32).at[batch, jnp.arange(N_REAL)].set(1.0 / 8.0)

    # Deterministic parameters (shapes follow GATConv / Linear in the module).
    s = 0.3
    params = {
        # conv1: GATConv(input_dim, hidden_dim, heads=8)
        "w1":  s * jax.random.normal(ks[1], (input_dim, heads * hidden_dim), jnp.float32),
        "as1": s * jax.random.normal(ks[2], (heads, hidden_dim), jnp.float32),
        "ad1": s * jax.random.normal(ks[3], (heads, hidden_dim), jnp.float32),
        "b1":  s * jax.random.normal(ks[4], (1, heads * hidden_dim), jnp.float32),
        # conv2: GATConv(hidden_dim*8, hidden_dim, heads=1, concat=True)
        "w2":  s * jax.random.normal(ks[5], (heads * hidden_dim, hidden_dim), jnp.float32),
        "as2": s * jax.random.normal(ks[6], (1, hidden_dim), jnp.float32),
        "ad2": s * jax.random.normal(ks[7], (1, hidden_dim), jnp.float32),
        "b2":  s * jax.random.normal(ks[8], (1, hidden_dim), jnp.float32),
        # fc: Linear(hidden_dim, output_dim)
        "wfc": s * jax.random.normal(ks[9], (hidden_dim, output_dim), jnp.float32),
        "bfc": s * jax.random.normal(ks[10], (1, output_dim), jnp.float32),
    }

    fwd = jax.jit(functools.partial(gat_forward, heads=heads, hidden=hidden_dim,
                                    tile_i=TILE_I))
    out = jax.block_until_ready(fwd(x, adj_mask, pool, params))

    assert out.shape == (B, output_dim)
    # log_softmax rows should normalize to 1 in prob space.
    assert jnp.allclose(jnp.sum(jnp.exp(out), axis=1), 1.0, atol=1e-4)
    # Cross-check against a pure-JAX f32 reference (bf16 h storage tolerance).
    ref = gat_reference(x, adj, pool, params, heads=heads, hidden=hidden_dim)
    assert jnp.max(jnp.abs(out - ref)) < 0.1, jnp.max(jnp.abs(out - ref))
    print("KERNEL_OK")
</pallas_src>

<mosaic_0001>
module attributes {stable_mosaic.version = 11 : i64} {
  func.func @_project_kernel(%arg0: i32, %arg1: memref<64x4xf32, #tpu.memory_space<vmem>>, %arg2: memref<4x64xf32, #tpu.memory_space<vmem>>, %arg3: memref<64x8xf32, #tpu.memory_space<vmem>>, %arg4: memref<64x8xf32, #tpu.memory_space<vmem>>, %arg5: memref<64x64xbf16, #tpu.memory_space<vmem>>, %arg6: memref<64x8xf32, #tpu.memory_space<vmem>>, %arg7: memref<64x8xf32, #tpu.memory_space<vmem>>) attributes {dimension_semantics = [#tpu.dimension_semantics<parallel>], iteration_bounds = array<i64: 2>, scalar_prefetch = 0 : i64, scratch_operands = 0 : i64, tpu.core_type = #tpu.core_type<tc>, window_params = [{transform_indices = @transform_0, window_bounds = array<i64: 64, 4>}, {pipeline_mode = #tpu.pipeline_mode<synchronous>, transform_indices = @transform_1, window_bounds = array<i64: 4, 64>}, {pipeline_mode = #tpu.pipeline_mode<synchronous>, transform_indices = @transform_2, window_bounds = array<i64: 64, 8>}, {pipeline_mode = #tpu.pipeline_mode<synchronous>, transform_indices = @transform_3, window_bounds = array<i64: 64, 8>}, {transform_indices = @transform_4, window_bounds = array<i64: 64, 64>}, {transform_indices = @transform_5, window_bounds = array<i64: 64, 8>}, {transform_indices = @transform_6, window_bounds = array<i64: 64, 8>}]} {
    %c0 = arith.constant 0 : index
    %c0_0 = arith.constant 0 : index
    %0 = vector.load %arg1[%c0, %c0_0] : memref<64x4xf32, #tpu.memory_space<vmem>>, vector<64x4xf32>
    %c0_1 = arith.constant 0 : index
    %c0_2 = arith.constant 0 : index
    %1 = vector.load %arg2[%c0_1, %c0_2] : memref<4x64xf32, #tpu.memory_space<vmem>>, vector<4x64xf32>
    %cst = arith.constant dense<0.000000e+00> : vector<64x64xf32>
    %2 = tpu.matmul %0, %1, %cst {dimension_numbers = #tpu.dot_dimension_numbers<[1], [0], [0], [1], [0, 0, 1, 1], [], []>} : vector<64x4xf32>, vector<4x64xf32>, vector<64x64xf32> -> vector<64x64xf32>
    %c0_3 = arith.constant 0 : index
    %c0_4 = arith.constant 0 : index
    %3 = vector.load %arg3[%c0_3, %c0_4] : memref<64x8xf32, #tpu.memory_space<vmem>>, vector<64x8xf32>
    %cst_5 = arith.constant dense<0.000000e+00> : vector<64x8xf32>
    %4 = tpu.matmul %2, %3, %cst_5 {dimension_numbers = #tpu.dot_dimension_numbers<[1], [0], [0], [1], [0, 0, 1, 1], [], []>} : vector<64x64xf32>, vector<64x8xf32>, vector<64x8xf32> -> vector<64x8xf32>
    %c0_6 = arith.constant 0 : index
    %c0_7 = arith.constant 0 : index
    %5 = vector.load %arg6[%c0_6, %c0_7] : memref<64x8xf32, #tpu.memory_space<vmem>>, vector<64x8xf32>
    tpu.vector_store %arg6[%c0_6, %c0_7], %4 {strides = array<i32>} : memref<64x8xf32, #tpu.memory_space<vmem>>, vector<64x8xf32>,
    %c0_8 = arith.constant 0 : index
    %c0_9 = arith.constant 0 : index
    %6 = vector.load %arg4[%c0_8, %c0_9] : memref<64x8xf32, #tpu.memory_space<vmem>>, vector<64x8xf32>
    %cst_10 = arith.constant dense<0.000000e+00> : vector<64x8xf32>
    %7 = tpu.matmul %2, %6, %cst_10 {dimension_numbers = #tpu.dot_dimension_numbers<[1], [0], [0], [1], [0, 0, 1, 1], [], []>} : vector<64x64xf32>, vector<64x8xf32>, vector<64x8xf32> -> vector<64x8xf32>
    %c0_11 = arith.constant 0 : index
    %c0_12 = arith.constant 0 : index
    %8 = vector.load %arg7[%c0_11, %c0_12] : memref<64x8xf32, #tpu.memory_space<vmem>>, vector<64x8xf32>
    tpu.vector_store %arg7[%c0_11, %c0_12], %7 {strides = array<i32>} : memref<64x8xf32, #tpu.memory_space<vmem>>, vector<64x8xf32>,
    %9 = arith.truncf %2 : vector<64x64xf32> to vector<64x64xbf16>
    %c0_13 = arith.constant 0 : index
    %c0_14 = arith.constant 0 : index
    %10 = vector.load %arg5[%c0_13, %c0_14] : memref<64x64xbf16, #tpu.memory_space<vmem>>, vector<64x64xbf16>
    tpu.vector_store %arg5[%c0_13, %c0_14], %9 {strides = array<i32>} : memref<64x64xbf16, #tpu.memory_space<vmem>>, vector<64x64xbf16>,
    return
  }
  func.func @transform_0(%arg0: i32) -> (i32, i32) {
    %c0_i32 = arith.constant 0 : i32
    %c0_i32_0 = arith.constant 0 : i32
    return %arg0, %c0_i32 : i32, i32
  }
  func.func @transform_1(%arg0: i32) -> (i32, i32) {
    %c0_i32 = arith.constant 0 : i32
    %c0_i32_0 = arith.constant 0 : i32
    %c0_i32_1 = arith.constant 0 : i32
    return %c0_i32, %c0_i32_0 : i32, i32
  }
  func.func @transform_2(%arg0: i32) -> (i32, i32) {
    %c0_i32 = arith.constant 0 : i32
    %c0_i32_0 = arith.constant 0 : i32
    %c0_i32_1 = arith.constant 0 : i32
    return %c0_i32, %c0_i32_0 : i32, i32
  }
  func.func @transform_3(%arg0: i32) -> (i32, i32) {
    %c0_i32 = arith.constant 0 : i32
    %c0_i32_0 = arith.constant 0 : i32
    %c0_i32_1 = arith.constant 0 : i32
    return %c0_i32, %c0_i32_0 : i32, i32
  }
  func.func @transform_4(%arg0: i32) -> (i32, i32) {
    %c0_i32 = arith.constant 0 : i32
    %c0_i32_0 = arith.constant 0 : i32
    return %arg0, %c0_i32 : i32, i32
  }
  func.func @transform_5(%arg0: i32) -> (i32, i32) {
    %c0_i32 = arith.constant 0 : i32
    %c0_i32_0 = arith.constant 0 : i32
    return %arg0, %c0_i32 : i32, i32
  }
  func.func @transform_6(%arg0: i32) -> (i32, i32) {
    %c0_i32 = arith.constant 0 : i32
    %c0_i32_0 = arith.constant 0 : i32
    return %arg0, %c0_i32 : i32, i32
  }
}

module attributes {stable_mosaic.version = 11 : i64} {
  func.func @_attend_kernel(%arg0: i32, %arg1: memref<128x64xbf16, #tpu.memory_space<vmem>>, %arg2: memref<64x128xi8, #tpu.memory_space<vmem>>, %arg3: memref<8x128xf32, #tpu.memory_space<vmem>>, %arg4: memref<64x8xf32, #tpu.memory_space<vmem>>, %arg5: memref<1x64xf32, #tpu.memory_space<vmem>>, %arg6: memref<64x64xf32, #tpu.memory_space<vmem>>) attributes {dimension_semantics = [#tpu.dimension_semantics<parallel>], iteration_bounds = array<i64: 2>, scalar_prefetch = 0 : i64, scratch_operands = 0 : i64, tpu.core_type = #tpu.core_type<tc>, window_params = [{pipeline_mode = #tpu.pipeline_mode<synchronous>, transform_indices = @transform_0, window_bounds = array<i64: 128, 64>}, {transform_indices = @transform_1, window_bounds = array<i64: 64, 128>}, {pipeline_mode = #tpu.pipeline_mode<synchronous>, transform_indices = @transform_2, window_bounds = array<i64: 8, 128>}, {transform_indices = @transform_3, window_bounds = array<i64: 64, 8>}, {pipeline_mode = #tpu.pipeline_mode<synchronous>, transform_indices = @transform_4, window_bounds = array<i64: 1, 64>}, {transform_indices = @transform_5, window_bounds = array<i64: 64, 64>}]} {
    %c0 = arith.constant 0 : index
    %c0_0 = arith.constant 0 : index
    %0 = vector.load %arg2[%c0, %c0_0] : memref<64x128xi8, #tpu.memory_space<vmem>>, vector<64x128xi8>
    %1 = arith.sitofp %0 : vector<64x128xi8> to vector<64x128xf32>
    %cst = arith.constant 1.000000e+00 : f32
    %2 = vector.broadcast %cst : f32 to vector<64x128xf32>
    %3 = arith.subf %2, %1 : vector<64x128xf32>
    %cst_1 = arith.constant -1.000000e+30 : f32
    %4 = vector.broadcast %cst_1 : f32 to vector<64x128xf32>
    %5 = arith.mulf %3, %4 : vector<64x128xf32>
    %c0_2 = arith.constant 0 : index
    %c0_3 = arith.constant 0 : index
    %6 = vector.load %arg1[%c0_2, %c0_3] : memref<128x64xbf16, #tpu.memory_space<vmem>>, vector<128x64xbf16>
    %7 = arith.extf %6 : vector<128x64xbf16> to vector<128x64xf32>
    %c0_4 = arith.constant 0 : index
    %c0_5 = arith.constant 0 : index
    %8 = vector.load %arg4[%c0_4, %c0_5] : memref<64x8xf32, #tpu.memory_space<vmem>>, vector<64x8xf32>
    %c0_6 = arith.constant 0 : index
    %c0_7 = arith.constant 0 : index
    %9 = vector.load %arg3[%c0_6, %c0_7] : memref<8x128xf32, #tpu.memory_space<vmem>>, vector<8x128xf32>
    %10 = vector.extract_strided_slice %8 {offsets = [0, 0], sizes = [64, 1], strides = [1, 1]} : vector<64x8xf32> to vector<64x1xf32>
    %11 = vector.extract_strided_slice %9 {offsets = [0, 0], sizes = [1, 128], strides = [1, 1]} : vector<8x128xf32> to vector<1x128xf32>
    %12 = vector.broadcast %10 : vector<64x1xf32> to vector<64x128xf32>
    %13 = vector.broadcast %11 : vector<1x128xf32> to vector<64x128xf32>
    %14 = arith.addf %12, %13 : vector<64x128xf32>
    %cst_8 = arith.constant 2.000000e-01 : f32
    %15 = vector.broadcast %cst_8 : f32 to vector<64x128xf32>
    %16 = arith.mulf %15, %14 : vector<64x128xf32>
    %17 = arith.maximumf %14, %16 : vector<64x128xf32>
    %18 = arith.addf %17, %5 : vector<64x128xf32>
    %cst_9 = arith.constant dense<0xFF800000> : vector<64xf32>
    %19 = vector.multi_reduction <maximumf>, %18, %cst_9 [1] : vector<64x128xf32> to vector<64xf32>
    %20 = vector.shape_cast %19 : vector<64xf32> to vector<64x1xf32>
    %21 = vector.broadcast %20 : vector<64x1xf32> to vector<64x128xf32>
    %22 = arith.subf %18, %21 : vector<64x128xf32>
    %23 = math.exp %22 : vector<64x128xf32>
    %cst_10 = arith.constant dense<0.000000e+00> : vector<64xf32>
    %24 = vector.multi_reduction <add>, %23, %cst_10 [1] : vector<64x128xf32> to vector<64xf32>
    %25 = vector.shape_cast %24 : vector<64xf32> to vector<64x1xf32>
    %26 = vector.extract_strided_slice %7 {offsets = [0, 0], sizes = [128, 8], strides = [1, 1]} : vector<128x64xf32> to vector<128x8xf32>
    %cst_11 = arith.constant dense<0.000000e+00> : vector<64x8xf32>
    %27 = tpu.matmul %23, %26, %cst_11 {dimension_numbers = #tpu.dot_dimension_numbers<[1], [0], [0], [1], [0, 0, 1, 1], [], []>} : vector<64x128xf32>, vector<128x8xf32>, vector<64x8xf32> -> vector<64x8xf32>
    %cst_12 = arith.constant 1.000000e+00 : f32
    %28 = vector.broadcast %cst_12 : f32 to vector<64x1xf32>
    %29 = arith.divf %28, %25 : vector<64x1xf32>
    %30 = vector.broadcast %29 : vector<64x1xf32> to vector<64x8xf32>
    %31 = arith.mulf %27, %30 : vector<64x8xf32>
    %32 = vector.extract_strided_slice %8 {offsets = [0, 1], sizes = [64, 1], strides = [1, 1]} : vector<64x8xf32> to vector<64x1xf32>
    %33 = vector.extract_strided_slice %9 {offsets = [1, 0], sizes = [1, 128], strides = [1, 1]} : vector<8x128xf32> to vector<1x128xf32>
    %34 = vector.broadcast %32 : vector<64x1xf32> to vector<64x128xf32>
    %35 = vector.broadcast %33 : vector<1x128xf32> to vector<64x128xf32>
    %36 = arith.addf %34, %35 : vector<64x128xf32>
    %cst_13 = arith.constant 2.000000e-01 : f32
    %37 = vector.broadcast %cst_13 : f32 to vector<64x128xf32>
    %38 = arith.mulf %37, %36 : vector<64x128xf32>
    %39 = arith.maximumf %36, %38 : vector<64x128xf32>
    %40 = arith.addf %39, %5 : vector<64x128xf32>
    %cst_14 = arith.constant dense<0xFF800000> : vector<64xf32>
    %41 = vector.multi_reduction <maximumf>, %40, %cst_14 [1] : vector<64x128xf32> to vector<64xf32>
    %42 = vector.shape_cast %41 : vector<64xf32> to vector<64x1xf32>
    %43 = vector.broadcast %42 : vector<64x1xf32> to vector<64x128xf32>
    %44 = arith.subf %40, %43 : vector<64x128xf32>
    %45 = math.exp %44 : vector<64x128xf32>
    %cst_15 = arith.constant dense<0.000000e+00> : vector<64xf32>
    %46 = vector.multi_reduction <add>, %45, %cst_15 [1] : vector<64x128xf32> to vector<64xf32>
    %47 = vector.shape_cast %46 : vector<64xf32> to vector<64x1xf32>
    %48 = vector.extract_strided_slice %7 {offsets = [0, 8], sizes = [128, 8], strides = [1, 1]} : vector<128x64xf32> to vector<128x8xf32>
    %cst_16 = arith.constant dense<0.000000e+00> : vector<64x8xf32>
    %49 = tpu.matmul %45, %48, %cst_16 {dimension_numbers = #tpu.dot_dimension_numbers<[1], [0], [0], [1], [0, 0, 1, 1], [], []>} : vector<64x128xf32>, vector<128x8xf32>, vector<64x8xf32> -> vector<64x8xf32>
    %cst_17 = arith.constant 1.000000e+00 : f32
    %50 = vector.broadcast %cst_17 : f32 to vector<64x1xf32>
    %51 = arith.divf %50, %47 : vector<64x1xf32>
    %52 = vector.broadcast %51 : vector<64x1xf32> to vector<64x8xf32>
    %53 = arith.mulf %49, %52 : vector<64x8xf32>
    %54 = vector.extract_strided_slice %8 {offsets = [0, 2], sizes = [64, 1], strides = [1, 1]} : vector<64x8xf32> to vector<64x1xf32>
    %55 = vector.extract_strided_slice %9 {offsets = [2, 0], sizes = [1, 128], strides = [1, 1]} : vector<8x128xf32> to vector<1x128xf32>
    %56 = vector.broadcast %54 : vector<64x1xf32> to vector<64x128xf32>
    %57 = vector.broadcast %55 : vector<1x128xf32> to vector<64x128xf32>
    %58 = arith.addf %56, %57 : vector<64x128xf32>
    %cst_18 = arith.constant 2.000000e-01 : f32
    %59 = vector.broadcast %cst_18 : f32 to vector<64x128xf32>
    %60 = arith.mulf %59, %58 : vector<64x128xf32>
    %61 = arith.maximumf %58, %60 : vector<64x128xf32>
    %62 = arith.addf %61, %5 : vector<64x128xf32>
    %cst_19 = arith.constant dense<0xFF800000> : vector<64xf32>
    %63 = vector.multi_reduction <maximumf>, %62, %cst_19 [1] : vector<64x128xf32> to vector<64xf32>
    %64 = vector.shape_cast %63 : vector<64xf32> to vector<64x1xf32>
    %65 = vector.broadcast %64 : vector<64x1xf32> to vector<64x128xf32>
    %66 = arith.subf %62, %65 : vector<64x128xf32>
    %67 = math.exp %66 : vector<64x128xf32>
    %cst_20 = arith.constant dense<0.000000e+00> : vector<64xf32>
    %68 = vector.multi_reduction <add>, %67, %cst_20 [1] : vector<64x128xf32> to vector<64xf32>
    %69 = vector.shape_cast %68 : vector<64xf32> to vector<64x1xf32>
    %70 = vector.extract_strided_slice %7 {offsets = [0, 16], sizes = [128, 8], strides = [1, 1]} : vector<128x64xf32> to vector<128x8xf32>
    %cst_21 = arith.constant dense<0.000000e+00> : vector<64x8xf32>
    %71 = tpu.matmul %67, %70, %cst_21 {dimension_numbers = #tpu.dot_dimension_numbers<[1], [0], [0], [1], [0, 0, 1, 1], [], []>} : vector<64x128xf32>, vector<128x8xf32>, vector<64x8xf32> -> vector<64x8xf32>
    %cst_22 = arith.constant 1.000000e+00 : f32
    %72 = vector.broadcast %cst_22 : f32 to vector<64x1xf32>
    %73 = arith.divf %72, %69 : vector<64x1xf32>
    %74 = vector.broadcast %73 : vector<64x1xf32> to vector<64x8xf32>
    %75 = arith.mulf %71, %74 : vector<64x8xf32>
    %76 = vector.extract_strided_slice %8 {offsets = [0, 3], sizes = [64, 1], strides = [1, 1]} : vector<64x8xf32> to vector<64x1xf32>
    %77 = vector.extract_strided_slice %9 {offsets = [3, 0], sizes = [1, 128], strides = [1, 1]} : vector<8x128xf32> to vector<1x128xf32>
    %78 = vector.broadcast %76 : vector<64x1xf32> to vector<64x128xf32>
    %79 = vector.broadcast %77 : vector<1x128xf32> to vector<64x128xf32>
    %80 = arith.addf %78, %79 : vector<64x128xf32>
    %cst_23 = arith.constant 2.000000e-01 : f32
    %81 = vector.broadcast %cst_23 : f32 to vector<64x128xf32>
    %82 = arith.mulf %81, %80 : vector<64x128xf32>
    %83 = arith.maximumf %80, %82 : vector<64x128xf32>
    %84 = arith.addf %83, %5 : vector<64x128xf32>
    %cst_24 = arith.constant dense<0xFF800000> : vector<64xf32>
    %85 = vector.multi_reduction <maximumf>, %84, %cst_24 [1] : vector<64x128xf32> to vector<64xf32>
    %86 = vector.shape_cast %85 : vector<64xf32> to vector<64x1xf32>
    %87 = vector.broadcast %86 : vector<64x1xf32> to vector<64x128xf32>
    %88 = arith.subf %84, %87 : vector<64x128xf32>
    %89 = math.exp %88 : vector<64x128xf32>
    %cst_25 = arith.constant dense<0.000000e+00> : vector<64xf32>
    %90 = vector.multi_reduction <add>, %89, %cst_25 [1] : vector<64x128xf32> to vector<64xf32>
    %91 = vector.shape_cast %90 : vector<64xf32> to vector<64x1xf32>
    %92 = vector.extract_strided_slice %7 {offsets = [0, 24], sizes = [128, 8], strides = [1, 1]} : vector<128x64xf32> to vector<128x8xf32>
    %cst_26 = arith.constant dense<0.000000e+00> : vector<64x8xf32>
    %93 = tpu.matmul %89, %92, %cst_26 {dimension_numbers = #tpu.dot_dimension_numbers<[1], [0], [0], [1], [0, 0, 1, 1], [], []>} : vector<64x128xf32>, vector<128x8xf32>, vector<64x8xf32> -> vector<64x8xf32>
    %cst_27 = arith.constant 1.000000e+00 : f32
    %94 = vector.broadcast %cst_27 : f32 to vector<64x1xf32>
    %95 = arith.divf %94, %91 : vector<64x1xf32>
    %96 = vector.broadcast %95 : vector<64x1xf32> to vector<64x8xf32>
    %97 = arith.mulf %93, %96 : vector<64x8xf32>
    %98 = vector.extract_strided_slice %8 {offsets = [0, 4], sizes = [64, 1], strides = [1, 1]} : vector<64x8xf32> to vector<64x1xf32>
    %99 = vector.extract_strided_slice %9 {offsets = [4, 0], sizes = [1, 128], strides = [1, 1]} : vector<8x128xf32> to vector<1x128xf32>
    %100 = vector.broadcast %98 : vector<64x1xf32> to vector<64x128xf32>
    %101 = vector.broadcast %99 : vector<1x128xf32> to vector<64x128xf32>
    %102 = arith.addf %100, %101 : vector<64x128xf32>
    %cst_28 = arith.constant 2.000000e-01 : f32
    %103 = vector.broadcast %cst_28 : f32 to vector<64x128xf32>
    %104 = arith.mulf %103, %102 : vector<64x128xf32>
    %105 = arith.maximumf %102, %104 : vector<64x128xf32>
    %106 = arith.addf %105, %5 : vector<64x128xf32>
    %cst_29 = arith.constant dense<0xFF800000> : vector<64xf32>
    %107 = vector.multi_reduction <maximumf>, %106, %cst_29 [1] : vector<64x128xf32> to vector<64xf32>
    %108 = vector.shape_cast %107 : vector<64xf32> to vector<64x1xf32>
    %109 = vector.broadcast %108 : vector<64x1xf32> to vector<64x128xf32>
    %110 = arith.subf %106, %109 : vector<64x128xf32>
    %111 = math.exp %110 : vector<64x128xf32>
    %cst_30 = arith.constant dense<0.000000e+00> : vector<64xf32>
    %112 = vector.multi_reduction <add>, %111, %cst_30 [1] : vector<64x128xf32> to vector<64xf32>
    %113 = vector.shape_cast %112 : vector<64xf32> to vector<64x1xf32>
    %114 = vector.extract_strided_slice %7 {offsets = [0, 32], sizes = [128, 8], strides = [1, 1]} : vector<128x64xf32> to vector<128x8xf32>
    %cst_31 = arith.constant dense<0.000000e+00> : vector<64x8xf32>
    %115 = tpu.matmul %111, %114, %cst_31 {dimension_numbers = #tpu.dot_dimension_numbers<[1], [0], [0], [1], [0, 0, 1, 1], [], []>} : vector<64x128xf32>, vector<128x8xf32>, vector<64x8xf32> -> vector<64x8xf32>
    %cst_32 = arith.constant 1.000000e+00 : f32
    %116 = vector.broadcast %cst_32 : f32 to vector<64x1xf32>
    %117 = arith.divf %116, %113 : vector<64x1xf32>
    %118 = vector.broadcast %117 : vector<64x1xf32> to vector<64x8xf32>
    %119 = arith.mulf %115, %118 : vector<64x8xf32>
    %120 = vector.extract_strided_slice %8 {offsets = [0, 5], sizes = [64, 1], strides = [1, 1]} : vector<64x8xf32> to vector<64x1xf32>
    %121 = vector.extract_strided_slice %9 {offsets = [5, 0], sizes = [1, 128], strides = [1, 1]} : vector<8x128xf32> to vector<1x128xf32>
    %122 = vector.broadcast %120 : vector<64x1xf32> to vector<64x128xf32>
    %123 = vector.broadcast %121 : vector<1x128xf32> to vector<64x128xf32>
    %124 = arith.addf %122, %123 : vector<64x128xf32>
    %cst_33 = arith.constant 2.000000e-01 : f32
    %125 = vector.broadcast %cst_33 : f32 to vector<64x128xf32>
    %126 = arith.mulf %125, %124 : vector<64x128xf32>
    %127 = arith.maximumf %124, %126 : vector<64x128xf32>
    %128 = arith.addf %127, %5 : vector<64x128xf32>
    %cst_34 = arith.constant dense<0xFF800000> : vector<64xf32>
    %129 = vector.multi_reduction <maximumf>, %128, %cst_34 [1] : vector<64x128xf32> to vector<64xf32>
    %130 = vector.shape_cast %129 : vector<64xf32> to vector<64x1xf32>
    %131 = vector.broadcast %130 : vector<64x1xf32> to vector<64x128xf32>
    %132 = arith.subf %128, %131 : vector<64x128xf32>
    %133 = math.exp %132 : vector<64x128xf32>
    %cst_35 = arith.constant dense<0.000000e+00> : vector<64xf32>
    %134 = vector.multi_reduction <add>, %133, %cst_35 [1] : vector<64x128xf32> to vector<64xf32>
    %135 = vector.shape_cast %134 : vector<64xf32> to vector<64x1xf32>
    %136 = vector.extract_strided_slice %7 {offsets = [0, 40], sizes = [128, 8], strides = [1, 1]} : vector<128x64xf32> to vector<128x8xf32>
    %cst_36 = arith.constant dense<0.000000e+00> : vector<64x8xf32>
    %137 = tpu.matmul %133, %136, %cst_36 {dimension_numbers = #tpu.dot_dimension_numbers<[1], [0], [0], [1], [0, 0, 1, 1], [], []>} : vector<64x128xf32>, vector<128x8xf32>, vector<64x8xf32> -> vector<64x8xf32>
    %cst_37 = arith.constant 1.000000e+00 : f32
    %138 = vector.broadcast %cst_37 : f32 to vector<64x1xf32>
    %139 = arith.divf %138, %135 : vector<64x1xf32>
    %140 = vector.broadcast %139 : vector<64x1xf32> to vector<64x8xf32>
    %141 = arith.mulf %137, %140 : vector<64x8xf32>
    %142 = vector.extract_strided_slice %8 {offsets = [0, 6], sizes = [64, 1], strides = [1, 1]} : vector<64x8xf32> to vector<64x1xf32>
    %143 = vector.extract_strided_slice %9 {offsets = [6, 0], sizes = [1, 128], strides = [1, 1]} : vector<8x128xf32> to vector<1x128xf32>
    %144 = vector.broadcast %142 : vector<64x1xf32> to vector<64x128xf32>
    %145 = vector.broadcast %143 : vector<1x128xf32> to vector<64x128xf32>
    %146 = arith.addf %144, %145 : vector<64x128xf32>
    %cst_38 = arith.constant 2.000000e-01 : f32
    %147 = vector.broadcast %cst_38 : f32 to vector<64x128xf32>
    %148 = arith.mulf %147, %146 : vector<64x128xf32>
    %149 = arith.maximumf %146, %148 : vector<64x128xf32>
    %150 = arith.addf %149, %5 : vector<64x128xf32>
    %cst_39 = arith.constant dense<0xFF800000> : vector<64xf32>
    %151 = vector.multi_reduction <maximumf>, %150, %cst_39 [1] : vector<64x128xf32> to vector<64xf32>
    %152 = vector.shape_cast %151 : vector<64xf32> to vector<64x1xf32>
    %153 = vector.broadcast %152 : vector<64x1xf32> to vector<64x128xf32>
    %154 = arith.subf %150, %153 : vector<64x128xf32>
    %155 = math.exp %154 : vector<64x128xf32>
    %cst_40 = arith.constant dense<0.000000e+00> : vector<64xf32>
    %156 = vector.multi_reduction <add>, %155, %cst_40 [1] : vector<64x128xf32> to vector<64xf32>
    %157 = vector.shape_cast %156 : vector<64xf32> to vector<64x1xf32>
    %158 = vector.extract_strided_slice %7 {offsets = [0, 48], sizes = [128, 8], strides = [1, 1]} : vector<128x64xf32> to vector<128x8xf32>
    %cst_41 = arith.constant dense<0.000000e+00> : vector<64x8xf32>
    %159 = tpu.matmul %155, %158, %cst_41 {dimension_numbers = #tpu.dot_dimension_numbers<[1], [0], [0], [1], [0, 0, 1, 1], [], []>} : vector<64x128xf32>, vector<128x8xf32>, vector<64x8xf32> -> vector<64x8xf32>
    %cst_42 = arith.constant 1.000000e+00 : f32
    %160 = vector.broadcast %cst_42 : f32 to vector<64x1xf32>
    %161 = arith.divf %160, %157 : vector<64x1xf32>
    %162 = vector.broadcast %161 : vector<64x1xf32> to vector<64x8xf32>
    %163 = arith.mulf %159, %162 : vector<64x8xf32>
    %164 = vector.extract_strided_slice %8 {offsets = [0, 7], sizes = [64, 1], strides = [1, 1]} : vector<64x8xf32> to vector<64x1xf32>
    %165 = vector.extract_strided_slice %9 {offsets = [7, 0], sizes = [1, 128], strides = [1, 1]} : vector<8x128xf32> to vector<1x128xf32>
    %166 = vector.broadcast %164 : vector<64x1xf32> to vector<64x128xf32>
    %167 = vector.broadcast %165 : vector<1x128xf32> to vector<64x128xf32>
    %168 = arith.addf %166, %167 : vector<64x128xf32>
    %cst_43 = arith.constant 2.000000e-01 : f32
    %169 = vector.broadcast %cst_43 : f32 to vector<64x128xf32>
    %170 = arith.mulf %169, %168 : vector<64x128xf32>
    %171 = arith.maximumf %168, %170 : vector<64x128xf32>
    %172 = arith.addf %171, %5 : vector<64x128xf32>
    %cst_44 = arith.constant dense<0xFF800000> : vector<64xf32>
    %173 = vector.multi_reduction <maximumf>, %172, %cst_44 [1] : vector<64x128xf32> to vector<64xf32>
    %174 = vector.shape_cast %173 : vector<64xf32> to vector<64x1xf32>
    %175 = vector.broadcast %174 : vector<64x1xf32> to vector<64x128xf32>
    %176 = arith.subf %172, %175 : vector<64x128xf32>
    %177 = math.exp %176 : vector<64x128xf32>
    %cst_45 = arith.constant dense<0.000000e+00> : vector<64xf32>
    %178 = vector.multi_reduction <add>, %177, %cst_45 [1] : vector<64x128xf32> to vector<64xf32>
    %179 = vector.shape_cast %178 : vector<64xf32> to vector<64x1xf32>
    %180 = vector.extract_strided_slice %7 {offsets = [0, 56], sizes = [128, 8], strides = [1, 1]} : vector<128x64xf32> to vector<128x8xf32>
    %cst_46 = arith.constant dense<0.000000e+00> : vector<64x8xf32>
    %181 = tpu.matmul %177, %180, %cst_46 {dimension_numbers = #tpu.dot_dimension_numbers<[1], [0], [0], [1], [0, 0, 1, 1], [], []>} : vector<64x128xf32>, vector<128x8xf32>, vector<64x8xf32> -> vector<64x8xf32>
    %cst_47 = arith.constant 1.000000e+00 : f32
    %182 = vector.broadcast %cst_47 : f32 to vector<64x1xf32>
    %183 = arith.divf %182, %179 : vector<64x1xf32>
    %184 = vector.broadcast %183 : vector<64x1xf32> to vector<64x8xf32>
    %185 = arith.mulf %181, %184 : vector<64x8xf32>
    %186 = tpu.concatenate %31, %53, %75, %97, %119, %141, %163, %185 in 1 : vector<64x8xf32>, vector<64x8xf32>, vector<64x8xf32>, vector<64x8xf32>, vector<64x8xf32>, vector<64x8xf32>, vector<64x8xf32>, vector<64x8xf32> -> vector<64x64xf32>
    %c0_48 = arith.constant 0 : index
    %c0_49 = arith.constant 0 : index
    %187 = vector.load %arg5[%c0_48, %c0_49] : memref<1x64xf32, #tpu.memory_space<vmem>>, vector<1x64xf32>
    %188 = vector.broadcast %187 : vector<1x64xf32> to vector<64x64xf32>
    %189 = arith.addf %186, %188 : vector<64x64xf32>
    %cst_50 = arith.constant 0.000000e+00 : f32
    %190 = vector.broadcast %cst_50 : f32 to vector<64x64xf32>
    %191 = arith.cmpf ogt, %189, %190 : vector<64x64xf32>
    %cst_51 = arith.constant 0.000000e+00 : f32
    %192 = vector.broadcast %cst_51 : f32 to vector<64x64xf32>
    %193 = arith.minimumf %189, %192 : vector<64x64xf32>
    %194 = math.exp %193 : vector<64x64xf32>
    %cst_52 = arith.constant 1.000000e+00 : f32
    %195 = vector.broadcast %cst_52 : f32 to vector<64x64xf32>
    %196 = arith.subf %194, %195 : vector<64x64xf32>
    %197 = arith.select %191, %189, %196 : vector<64x64xi1>, vector<64x64xf32>
    %c0_53 = arith.constant 0 : index
    %c0_54 = arith.constant 0 : index
    %198 = vector.load %arg6[%c0_53, %c0_54] : memref<64x64xf32, #tpu.memory_space<vmem>>, vector<64x64xf32>
    tpu.vector_store %arg6[%c0_53, %c0_54], %197 {strides = array<i32>} : memref<64x64xf32, #tpu.memory_space<vmem>>, vector<64x64xf32>,
    return
  }
  func.func @transform_0(%arg0: i32) -> (i32, i32) {
    %c0_i32 = arith.constant 0 : i32
    %c0_i32_0 = arith.constant 0 : i32
    %c0_i32_1 = arith.constant 0 : i32
    return %c0_i32, %c0_i32_0 : i32, i32
  }
  func.func @transform_1(%arg0: i32) -> (i32, i32) {
    %c0_i32 = arith.constant 0 : i32
    %c0_i32_0 = arith.constant 0 : i32
    return %arg0, %c0_i32 : i32, i32
  }
  func.func @transform_2(%arg0: i32) -> (i32, i32) {
    %c0_i32 = arith.constant 0 : i32
    %c0_i32_0 = arith.constant 0 : i32
    %c0_i32_1 = arith.constant 0 : i32
    return %c0_i32, %c0_i32_0 : i32, i32
  }
  func.func @transform_3(%arg0: i32) -> (i32, i32) {
    %c0_i32 = arith.constant 0 : i32
    %c0_i32_0 = arith.constant 0 : i32
    return %arg0, %c0_i32 : i32, i32
  }
  func.func @transform_4(%arg0: i32) -> (i32, i32) {
    %c0_i32 = arith.constant 0 : i32
    %c0_i32_0 = arith.constant 0 : i32
    %c0_i32_1 = arith.constant 0 : i32
    return %c0_i32, %c0_i32_0 : i32, i32
  }
  func.func @transform_5(%arg0: i32) -> (i32, i32) {
    %c0_i32 = arith.constant 0 : i32
    %c0_i32_0 = arith.constant 0 : i32
    return %arg0, %c0_i32 : i32, i32
  }
}

module attributes {stable_mosaic.version = 11 : i64} {
  func.func @_project_kernel(%arg0: i32, %arg1: memref<64x64xf32, #tpu.memory_space<vmem>>, %arg2: memref<64x8xf32, #tpu.memory_space<vmem>>, %arg3: memref<8x1xf32, #tpu.memory_space<vmem>>, %arg4: memref<8x1xf32, #tpu.memory_space<vmem>>, %arg5: memref<64x8xbf16, #tpu.memory_space<vmem>>, %arg6: memref<64x1xf32, #tpu.memory_space<vmem>>, %arg7: memref<64x1xf32, #tpu.memory_space<vmem>>) attributes {dimension_semantics = [#tpu.dimension_semantics<parallel>], iteration_bounds = array<i64: 2>, scalar_prefetch = 0 : i64, scratch_operands = 0 : i64, tpu.core_type = #tpu.core_type<tc>, window_params = [{transform_indices = @transform_0, window_bounds = array<i64: 64, 64>}, {pipeline_mode = #tpu.pipeline_mode<synchronous>, transform_indices = @transform_1, window_bounds = array<i64: 64, 8>}, {pipeline_mode = #tpu.pipeline_mode<synchronous>, transform_indices = @transform_2, window_bounds = array<i64: 8, 1>}, {pipeline_mode = #tpu.pipeline_mode<synchronous>, transform_indices = @transform_3, window_bounds = array<i64: 8, 1>}, {transform_indices = @transform_4, window_bounds = array<i64: 64, 8>}, {transform_indices = @transform_5, window_bounds = array<i64: 64, 1>}, {transform_indices = @transform_6, window_bounds = array<i64: 64, 1>}]} {
    %c0 = arith.constant 0 : index
    %c0_0 = arith.constant 0 : index
    %0 = vector.load %arg1[%c0, %c0_0] : memref<64x64xf32, #tpu.memory_space<vmem>>, vector<64x64xf32>
    %c0_1 = arith.constant 0 : index
    %c0_2 = arith.constant 0 : index
    %1 = vector.load %arg2[%c0_1, %c0_2] : memref<64x8xf32, #tpu.memory_space<vmem>>, vector<64x8xf32>
    %cst = arith.constant dense<0.000000e+00> : vector<64x8xf32>
    %2 = tpu.matmul %0, %1, %cst {dimension_numbers = #tpu.dot_dimension_numbers<[1], [0], [0], [1], [0, 0, 1, 1], [], []>} : vector<64x64xf32>, vector<64x8xf32>, vector<64x8xf32> -> vector<64x8xf32>
    %c0_3 = arith.constant 0 : index
    %c0_4 = arith.constant 0 : index
    %3 = vector.load %arg3[%c0_3, %c0_4] : memref<8x1xf32, #tpu.memory_space<vmem>>, vector<8x1xf32>
    %cst_5 = arith.constant dense<0.000000e+00> : vector<64x1xf32>
    %4 = tpu.matmul %2, %3, %cst_5 {dimension_numbers = #tpu.dot_dimension_numbers<[1], [0], [0], [1], [0, 0, 1, 1], [], []>} : vector<64x8xf32>, vector<8x1xf32>, vector<64x1xf32> -> vector<64x1xf32>
    %c0_6 = arith.constant 0 : index
    %c0_7 = arith.constant 0 : index
    %5 = vector.load %arg6[%c0_6, %c0_7] : memref<64x1xf32, #tpu.memory_space<vmem>>, vector<64x1xf32>
    tpu.vector_store %arg6[%c0_6, %c0_7], %4 {strides = array<i32>} : memref<64x1xf32, #tpu.memory_space<vmem>>, vector<64x1xf32>,
    %c0_8 = arith.constant 0 : index
    %c0_9 = arith.constant 0 : index
    %6 = vector.load %arg4[%c0_8, %c0_9] : memref<8x1xf32, #tpu.memory_space<vmem>>, vector<8x1xf32>
    %cst_10 = arith.constant dense<0.000000e+00> : vector<64x1xf32>
    %7 = tpu.matmul %2, %6, %cst_10 {dimension_numbers = #tpu.dot_dimension_numbers<[1], [0], [0], [1], [0, 0, 1, 1], [], []>} : vector<64x8xf32>, vector<8x1xf32>, vector<64x1xf32> -> vector<64x1xf32>
    %c0_11 = arith.constant 0 : index
    %c0_12 = arith.constant 0 : index
    %8 = vector.load %arg7[%c0_11, %c0_12] : memref<64x1xf32, #tpu.memory_space<vmem>>, vector<64x1xf32>
    tpu.vector_store %arg7[%c0_11, %c0_12], %7 {strides = array<i32>} : memref<64x1xf32, #tpu.memory_space<vmem>>, vector<64x1xf32>,
    %9 = arith.truncf %2 : vector<64x8xf32> to vector<64x8xbf16>
    %c0_13 = arith.constant 0 : index
    %c0_14 = arith.constant 0 : index
    %10 = vector.load %arg5[%c0_13, %c0_14] : memref<64x8xbf16, #tpu.memory_space<vmem>>, vector<64x8xbf16>
    tpu.vector_store %arg5[%c0_13, %c0_14], %9 {strides = array<i32>} : memref<64x8xbf16, #tpu.memory_space<vmem>>, vector<64x8xbf16>,
    return
  }
  func.func @transform_0(%arg0: i32) -> (i32, i32) {
    %c0_i32 = arith.constant 0 : i32
    %c0_i32_0 = arith.constant 0 : i32
    return %arg0, %c0_i32 : i32, i32
  }
  func.func @transform_1(%arg0: i32) -> (i32, i32) {
    %c0_i32 = arith.constant 0 : i32
    %c0_i32_0 = arith.constant 0 : i32
    %c0_i32_1 = arith.constant 0 : i32
    return %c0_i32, %c0_i32_0 : i32, i32
  }
  func.func @transform_2(%arg0: i32) -> (i32, i32) {
    %c0_i32 = arith.constant 0 : i32
    %c0_i32_0 = arith.constant 0 : i32
    %c0_i32_1 = arith.constant 0 : i32
    return %c0_i32, %c0_i32_0 : i32, i32
  }
  func.func @transform_3(%arg0: i32) -> (i32, i32) {
    %c0_i32 = arith.constant 0 : i32
    %c0_i32_0 = arith.constant 0 : i32
    %c0_i32_1 = arith.constant 0 : i32
    return %c0_i32, %c0_i32_0 : i32, i32
  }
  func.func @transform_4(%arg0: i32) -> (i32, i32) {
    %c0_i32 = arith.constant 0 : i32
    %c0_i32_0 = arith.constant 0 : i32
    return %arg0, %c0_i32 : i32, i32
  }
  func.func @transform_5(%arg0: i32) -> (i32, i32) {
    %c0_i32 = arith.constant 0 : i32
    %c0_i32_0 = arith.constant 0 : i32
    return %arg0, %c0_i32 : i32, i32
  }
  func.func @transform_6(%arg0: i32) -> (i32, i32) {
    %c0_i32 = arith.constant 0 : i32
    %c0_i32_0 = arith.constant 0 : i32
    return %arg0, %c0_i32 : i32, i32
  }
}

module attributes {stable_mosaic.version = 11 : i64} {
  func.func @_attend_kernel(%arg0: i32, %arg1: memref<128x8xbf16, #tpu.memory_space<vmem>>, %arg2: memref<64x128xi8, #tpu.memory_space<vmem>>, %arg3: memref<1x128xf32, #tpu.memory_space<vmem>>, %arg4: memref<64x1xf32, #tpu.memory_space<vmem>>, %arg5: memref<1x8xf32, #tpu.memory_space<vmem>>, %arg6: memref<64x8xf32, #tpu.memory_space<vmem>>) attributes {dimension_semantics = [#tpu.dimension_semantics<parallel>], iteration_bounds = array<i64: 2>, scalar_prefetch = 0 : i64, scratch_operands = 0 : i64, tpu.core_type = #tpu.core_type<tc>, window_params = [{pipeline_mode = #tpu.pipeline_mode<synchronous>, transform_indices = @transform_0, window_bounds = array<i64: 128, 8>}, {transform_indices = @transform_1, window_bounds = array<i64: 64, 128>}, {pipeline_mode = #tpu.pipeline_mode<synchronous>, transform_indices = @transform_2, window_bounds = array<i64: 1, 128>}, {transform_indices = @transform_3, window_bounds = array<i64: 64, 1>}, {pipeline_mode = #tpu.pipeline_mode<synchronous>, transform_indices = @transform_4, window_bounds = array<i64: 1, 8>}, {transform_indices = @transform_5, window_bounds = array<i64: 64, 8>}]} {
    %c0 = arith.constant 0 : index
    %c0_0 = arith.constant 0 : index
    %0 = vector.load %arg2[%c0, %c0_0] : memref<64x128xi8, #tpu.memory_space<vmem>>, vector<64x128xi8>
    %1 = arith.sitofp %0 : vector<64x128xi8> to vector<64x128xf32>
    %cst = arith.constant 1.000000e+00 : f32
    %2 = vector.broadcast %cst : f32 to vector<64x128xf32>
    %3 = arith.subf %2, %1 : vector<64x128xf32>
    %cst_1 = arith.constant -1.000000e+30 : f32
    %4 = vector.broadcast %cst_1 : f32 to vector<64x128xf32>
    %5 = arith.mulf %3, %4 : vector<64x128xf32>
    %c0_2 = arith.constant 0 : index
    %c0_3 = arith.constant 0 : index
    %6 = vector.load %arg1[%c0_2, %c0_3] : memref<128x8xbf16, #tpu.memory_space<vmem>>, vector<128x8xbf16>
    %7 = arith.extf %6 : vector<128x8xbf16> to vector<128x8xf32>
    %c0_4 = arith.constant 0 : index
    %c0_5 = arith.constant 0 : index
    %8 = vector.load %arg4[%c0_4, %c0_5] : memref<64x1xf32, #tpu.memory_space<vmem>>, vector<64x1xf32>
    %c0_6 = arith.constant 0 : index
    %c0_7 = arith.constant 0 : index
    %9 = vector.load %arg3[%c0_6, %c0_7] : memref<1x128xf32, #tpu.memory_space<vmem>>, vector<1x128xf32>
    %10 = vector.broadcast %8 : vector<64x1xf32> to vector<64x128xf32>
    %11 = vector.broadcast %9 : vector<1x128xf32> to vector<64x128xf32>
    %12 = arith.addf %10, %11 : vector<64x128xf32>
    %cst_8 = arith.constant 2.000000e-01 : f32
    %13 = vector.broadcast %cst_8 : f32 to vector<64x128xf32>
    %14 = arith.mulf %13, %12 : vector<64x128xf32>
    %15 = arith.maximumf %12, %14 : vector<64x128xf32>
    %16 = arith.addf %15, %5 : vector<64x128xf32>
    %cst_9 = arith.constant dense<0xFF800000> : vector<64xf32>
    %17 = vector.multi_reduction <maximumf>, %16, %cst_9 [1] : vector<64x128xf32> to vector<64xf32>
    %18 = vector.shape_cast %17 : vector<64xf32> to vector<64x1xf32>
    %19 = vector.broadcast %18 : vector<64x1xf32> to vector<64x128xf32>
    %20 = arith.subf %16, %19 : vector<64x128xf32>
    %21 = math.exp %20 : vector<64x128xf32>
    %cst_10 = arith.constant dense<0.000000e+00> : vector<64xf32>
    %22 = vector.multi_reduction <add>, %21, %cst_10 [1] : vector<64x128xf32> to vector<64xf32>
    %23 = vector.shape_cast %22 : vector<64xf32> to vector<64x1xf32>
    %cst_11 = arith.constant dense<0.000000e+00> : vector<64x8xf32>
    %24 = tpu.matmul %21, %7, %cst_11 {dimension_numbers = #tpu.dot_dimension_numbers<[1], [0], [0], [1], [0, 0, 1, 1], [], []>} : vector<64x128xf32>, vector<128x8xf32>, vector<64x8xf32> -> vector<64x8xf32>
    %cst_12 = arith.constant 1.000000e+00 : f32
    %25 = vector.broadcast %cst_12 : f32 to vector<64x1xf32>
    %26 = arith.divf %25, %23 : vector<64x1xf32>
    %27 = vector.broadcast %26 : vector<64x1xf32> to vector<64x8xf32>
    %28 = arith.mulf %24, %27 : vector<64x8xf32>
    %c0_13 = arith.constant 0 : index
    %c0_14 = arith.constant 0 : index
    %29 = vector.load %arg5[%c0_13, %c0_14] : memref<1x8xf32, #tpu.memory_space<vmem>>, vector<1x8xf32>
    %30 = vector.broadcast %29 : vector<1x8xf32> to vector<64x8xf32>
    %31 = arith.addf %28, %30 : vector<64x8xf32>
    %c0_15 = arith.constant 0 : index
    %c0_16 = arith.constant 0 : index
    %32 = vector.load %arg6[%c0_15, %c0_16] : memref<64x8xf32, #tpu.memory_space<vmem>>, vector<64x8xf32>
    tpu.vector_store %arg6[%c0_15, %c0_16], %31 {strides = array<i32>} : memref<64x8xf32, #tpu.memory_space<vmem>>, vector<64x8xf32>,
    return
  }
  func.func @transform_0(%arg0: i32) -> (i32, i32) {
    %c0_i32 = arith.constant 0 : i32
    %c0_i32_0 = arith.constant 0 : i32
    %c0_i32_1 = arith.constant 0 : i32
    return %c0_i32, %c0_i32_0 : i32, i32
  }
  func.func @transform_1(%arg0: i32) -> (i32, i32) {
    %c0_i32 = arith.constant 0 : i32
    %c0_i32_0 = arith.constant 0 : i32
    return %arg0, %c0_i32 : i32, i32
  }
  func.func @transform_2(%arg0: i32) -> (i32, i32) {
    %c0_i32 = arith.constant 0 : i32
    %c0_i32_0 = arith.constant 0 : i32
    %c0_i32_1 = arith.constant 0 : i32
    return %c0_i32, %c0_i32_0 : i32, i32
  }
  func.func @transform_3(%arg0: i32) -> (i32, i32) {
    %c0_i32 = arith.constant 0 : i32
    %c0_i32_0 = arith.constant 0 : i32
    return %arg0, %c0_i32 : i32, i32
  }
  func.func @transform_4(%arg0: i32) -> (i32, i32) {
    %c0_i32 = arith.constant 0 : i32
    %c0_i32_0 = arith.constant 0 : i32
    %c0_i32_1 = arith.constant 0 : i32
    return %c0_i32, %c0_i32_0 : i32, i32
  }
  func.func @transform_5(%arg0: i32) -> (i32, i32) {
    %c0_i32 = arith.constant 0 : i32
    %c0_i32_0 = arith.constant 0 : i32
    return %arg0, %c0_i32 : i32, i32
  }
}

module attributes {stable_mosaic.version = 11 : i64} {
  func.func @_pool_fc_kernel(%arg0: i32, %arg1: memref<2x128xf32, #tpu.memory_space<vmem>>, %arg2: memref<128x8xf32, #tpu.memory_space<vmem>>, %arg3: memref<8x3xf32, #tpu.memory_space<vmem>>, %arg4: memref<1x3xf32, #tpu.memory_space<vmem>>, %arg5: memref<2x3xf32, #tpu.memory_space<vmem>>) attributes {dimension_semantics = [#tpu.dimension_semantics<arbitrary>], iteration_bounds = array<i64: 1>, scalar_prefetch = 0 : i64, scratch_operands = 0 : i64, tpu.core_type = #tpu.core_type<tc>, window_params = [{pipeline_mode = #tpu.pipeline_mode<synchronous>, transform_indices = @transform_0, window_bounds = array<i64: 2, 128>}, {pipeline_mode = #tpu.pipeline_mode<synchronous>, transform_indices = @transform_1, window_bounds = array<i64: 128, 8>}, {pipeline_mode = #tpu.pipeline_mode<synchronous>, transform_indices = @transform_2, window_bounds = array<i64: 8, 3>}, {pipeline_mode = #tpu.pipeline_mode<synchronous>, transform_indices = @transform_3, window_bounds = array<i64: 1, 3>}, {pipeline_mode = #tpu.pipeline_mode<synchronous>, transform_indices = @transform_4, window_bounds = array<i64: 2, 3>}]} {
    %c0 = arith.constant 0 : index
    %c0_0 = arith.constant 0 : index
    %0 = vector.load %arg1[%c0, %c0_0] : memref<2x128xf32, #tpu.memory_space<vmem>>, vector<2x128xf32>
    %c0_1 = arith.constant 0 : index
    %c0_2 = arith.constant 0 : index
    %1 = vector.load %arg2[%c0_1, %c0_2] : memref<128x8xf32, #tpu.memory_space<vmem>>, vector<128x8xf32>
    %cst = arith.constant dense<0.000000e+00> : vector<2x8xf32>
    %2 = tpu.matmul %0, %1, %cst {dimension_numbers = #tpu.dot_dimension_numbers<[1], [0], [0], [1], [0, 0, 1, 1], [], []>} : vector<2x128xf32>, vector<128x8xf32>, vector<2x8xf32> -> vector<2x8xf32>
    %c0_3 = arith.constant 0 : index
    %c0_4 = arith.constant 0 : index
    %3 = vector.load %arg3[%c0_3, %c0_4] : memref<8x3xf32, #tpu.memory_space<vmem>>, vector<8x3xf32>
    %cst_5 = arith.constant dense<0.000000e+00> : vector<2x3xf32>
    %4 = tpu.matmul %2, %3, %cst_5 {dimension_numbers = #tpu.dot_dimension_numbers<[1], [0], [0], [1], [0, 0, 1, 1], [], []>} : vector<2x8xf32>, vector<8x3xf32>, vector<2x3xf32> -> vector<2x3xf32>
    %c0_6 = arith.constant 0 : index
    %c0_7 = arith.constant 0 : index
    %5 = vector.load %arg4[%c0_6, %c0_7] : memref<1x3xf32, #tpu.memory_space<vmem>>, vector<1x3xf32>
    %6 = vector.broadcast %5 : vector<1x3xf32> to vector<2x3xf32>
    %7 = arith.addf %4, %6 : vector<2x3xf32>
    %cst_8 = arith.constant dense<0xFF800000> : vector<2xf32>
    %8 = vector.multi_reduction <maximumf>, %7, %cst_8 [1] : vector<2x3xf32> to vector<2xf32>
    %9 = vector.shape_cast %8 : vector<2xf32> to vector<2x1xf32>
    %10 = vector.broadcast %9 : vector<2x1xf32> to vector<2x3xf32>
    %11 = arith.subf %7, %10 : vector<2x3xf32>
    %12 = math.exp %11 : vector<2x3xf32>
    %cst_9 = arith.constant dense<0.000000e+00> : vector<2xf32>
    %13 = vector.multi_reduction <add>, %12, %cst_9 [1] : vector<2x3xf32> to vector<2xf32>
    %14 = vector.shape_cast %13 : vector<2xf32> to vector<2x1xf32>
    %15 = math.log %14 : vector<2x1xf32>
    %16 = vector.broadcast %15 : vector<2x1xf32> to vector<2x3xf32>
    %17 = arith.subf %11, %16 : vector<2x3xf32>
    %c0_10 = arith.constant 0 : index
    %c0_11 = arith.constant 0 : index
    %18 = vector.load %arg5[%c0_10, %c0_11] : memref<2x3xf32, #tpu.memory_space<vmem>>, vector<2x3xf32>
    tpu.vector_store %arg5[%c0_10, %c0_11], %17 {strides = array<i32>} : memref<2x3xf32, #tpu.memory_space<vmem>>, vector<2x3xf32>,
    return
  }
  func.func @transform_0(%arg0: i32) -> (i32, i32) {
    %c0_i32 = arith.constant 0 : i32
    %c0_i32_0 = arith.constant 0 : i32
    %c0_i32_1 = arith.constant 0 : i32
    return %c0_i32, %c0_i32_0 : i32, i32
  }
  func.func @transform_1(%arg0: i32) -> (i32, i32) {
    %c0_i32 = arith.constant 0 : i32
    %c0_i32_0 = arith.constant 0 : i32
    %c0_i32_1 = arith.constant 0 : i32
    return %c0_i32, %c0_i32_0 : i32, i32
  }
  func.func @transform_2(%arg0: i32) -> (i32, i32) {
    %c0_i32 = arith.constant 0 : i32
    %c0_i32_0 = arith.constant 0 : i32
    %c0_i32_1 = arith.constant 0 : i32
    return %c0_i32, %c0_i32_0 : i32, i32
  }
  func.func @transform_3(%arg0: i32) -> (i32, i32) {
    %c0_i32 = arith.constant 0 : i32
    %c0_i32_0 = arith.constant 0 : i32
    %c0_i32_1 = arith.constant 0 : i32
    return %c0_i32, %c0_i32_0 : i32, i32
  }
  func.func @transform_4(%arg0: i32) -> (i32, i32) {
    %c0_i32 = arith.constant 0 : i32
    %c0_i32_0 = arith.constant 0 : i32
    %c0_i32_1 = arith.constant 0 : i32
    return %c0_i32, %c0_i32_0 : i32, i32
  }
}

</mosaic_0001>

<llo_original>
// kernel: gat_forward.5
$region0: #{gat_forward.5}
  #allocation0 [shape = 'u32[]', space=smem, size = 0x4, offset = 0x4, fixed_abs, tag = 'smem constant byte address 0x4 - core index']
  #allocation1 [shape = 'u32[144,128]{1,0:T(1,128)}', space=vmem, size = 0x12000, scoped, tag = 'internal scratch']
  %s0 = inlined_call_operand.vmem [shape: f32[128,4], index: 0, kind: input, shape index: {}]
  %s1 = inlined_call_operand.vmem [shape: f32[4,64], index: 1, kind: input, shape index: {}]
  %s2 = inlined_call_operand.vmem [shape: f32[64,8], index: 2, kind: input, shape index: {}]
  %s3 = inlined_call_operand.vmem [shape: f32[64,8], index: 3, kind: input, shape index: {}]
  %s4 = inlined_call_operand.vmem [shape: bf16[128,64], index: 4, kind: output, shape index: {0}]
  %s5 = inlined_call_operand.vmem [shape: f32[128,8], index: 5, kind: output, shape index: {1}]
  %s6 = inlined_call_operand.vmem [shape: f32[128,8], index: 6, kind: output, shape index: {2}]
  %7 = xla_tuple %s4, %s5, %s6
  %s8 = sld [smem:[#allocation0]]
  $region65: #{gat_forward.5} parent=0
    _
  %s10 = ssub.s32 1, %s8
  %s11 = scalar_select 0, %s10, %s8
  loop: start=0, step=1, limit=4
  $region2: #{gat_forward.5} parent=0 // loop_pre_header
    _
  $region3: #{gat_forward.5} parent=0 // loop_header
    %s13 = sphi 0, %s17
    %p14 = scmp.ge.s32.totalorder %s13, 4
    %s23 = sphi 0, %s25
    %s26 = sphi 0, %s23
    %s27 = sphi 0, %s26
    %s43 = sphi 0, %s27
    %s47 = sphi 0, %s47
    %s49 = sphi 0, %s47
    %s50 = sphi 0, %s49
    %s64 = sphi 0, %s50
    %s68 = sphi 0, %s68
    %s70 = sphi 0, %s68
    %s71 = sphi 0, %s70
    %s85 = sphi 0, %s71
    %s89 = sphi 0, %s89
    %s91 = sphi 0, %s89
    %s92 = sphi 0, %s91
    %s106 = sphi 0, %s92
    %s112 = sphi 0, %s114
    %s115 = sphi 0, %s112
    %s116 = sphi 0, %s115
    %s132 = sphi 0, %s116
    %s138 = sphi 0, %s140
    %s141 = sphi 0, %s138
    %s142 = sphi 0, %s141
    %s158 = sphi 0, %s142
    %s164 = sphi 0, %s166
    %s167 = sphi 0, %s164
    %s168 = sphi 0, %s167
    %s184 = sphi 0, %s168
  $region4: #{gat_forward.5} parent=0 // loop_header_branch
    %16 = sbr.rel (%p14) target = $region8
  $region5: #{gat_forward.5} parent=0 // loop_body
    %s18 = ssub.s32 %s13, 1
    %s19 = ssub.s32 %s13, 2
    %s20 = sadd.s32 %s13, 1
    %s21 = ssub.s32 %s13, %s20
    %p22 = scmp.eq.s32.totalorder %s21, 0
    %s24 = sadd.s32 %s23, 1
    %s25 = scalar_select %p22, %s23, %s24
    %p28 = pneg %p22
    %p29 = scmp.eq.s32.totalorder %s13, 1
    %p30 = por %p28, %p29
    %p31 = scmp.ne.s32.totalorder %s23, %s26
    %p32 = scmp.eq.s32.totalorder %s13, 0
    %p33 = por %p31, %p32
    %p34 = scmp.ne.s32.totalorder %s23, %s26
    %p35 = scmp.eq.s32.totalorder %s18, 1
    %p36 = por %p34, %p35
    %p37 = scmp.ne.s32.totalorder %s26, %s27
    %p38 = scmp.eq.s32.totalorder %s18, 0
    %p39 = por %p37, %p38
    %p40 = scmp.ne.s32.totalorder %s26, %s27
    %p41 = scmp.eq.s32.totalorder %s19, 1
    %p42 = por %p40, %p41
    %p44 = scmp.ne.s32.totalorder %s27, %s43
    %p45 = scmp.eq.s32.totalorder %s19, 0
    %p46 = por %p44, %p45
    %s48 = sadd.s32 %s47, 1
    %p51 = scmp.eq.s32.totalorder %s13, 1
    %p52 = scmp.ne.s32.totalorder %s47, %s49
    %p53 = scmp.eq.s32.totalorder %s13, 0
    %p54 = por %p52, %p53
    %p55 = scmp.ne.s32.totalorder %s47, %s49
    %p56 = scmp.eq.s32.totalorder %s18, 1
    %p57 = por %p55, %p56
    %p58 = scmp.ne.s32.totalorder %s49, %s50
    %p59 = scmp.eq.s32.totalorder %s18, 0
    %p60 = por %p58, %p59
    %p61 = scmp.ne.s32.totalorder %s49, %s50
    %p62 = scmp.eq.s32.totalorder %s19, 1
    %p63 = por %p61, %p62
    %p65 = scmp.ne.s32.totalorder %s50, %s64
    %p66 = scmp.eq.s32.totalorder %s19, 0
    %p67 = por %p65, %p66
    %s69 = sadd.s32 %s68, 1
    %p72 = scmp.eq.s32.totalorder %s13, 1
    %p73 = scmp.ne.s32.totalorder %s68, %s70
    %p74 = scmp.eq.s32.totalorder %s13, 0
    %p75 = por %p73, %p74
    %p76 = scmp.ne.s32.totalorder %s68, %s70
    %p77 = scmp.eq.s32.totalorder %s18, 1
    %p78 = por %p76, %p77
    %p79 = scmp.ne.s32.totalorder %s70, %s71
    %p80 = scmp.eq.s32.totalorder %s18, 0
    %p81 = por %p79, %p80
    %p82 = scmp.ne.s32.totalorder %s70, %s71
    %p83 = scmp.eq.s32.totalorder %s19, 1
    %p84 = por %p82, %p83
    %p86 = scmp.ne.s32.totalorder %s71, %s85
    %p87 = scmp.eq.s32.totalorder %s19, 0
    %p88 = por %p86, %p87
    %s90 = sadd.s32 %s89, 1
    %p93 = scmp.eq.s32.totalorder %s13, 1
    %p94 = scmp.ne.s32.totalorder %s89, %s91
    %p95 = scmp.eq.s32.totalorder %s13, 0
    %p96 = por %p94, %p95
    %p97 = scmp.ne.s32.totalorder %s89, %s91
    %p98 = scmp.eq.s32.totalorder %s18, 1
    %p99 = por %p97, %p98
    %p100 = scmp.ne.s32.totalorder %s91, %s92
    %p101 = scmp.eq.s32.totalorder %s18, 0
    %p102 = por %p100, %p101
    %p103 = scmp.ne.s32.totalorder %s91, %s92
    %p104 = scmp.eq.s32.totalorder %s19, 1
    %p105 = por %p103, %p104
    %p107 = scmp.ne.s32.totalorder %s92, %s106
    %p108 = scmp.eq.s32.totalorder %s19, 0
    %p109 = por %p107, %p108
    %s110 = ssub.s32 %s13, %s20
    %p111 = scmp.eq.s32.totalorder %s110, 0
    %s113 = sadd.s32 %s112, 1
    %s114 = scalar_select %p111, %s112, %s113
    %p117 = pneg %p111
    %p118 = scmp.eq.s32.totalorder %s13, 1
    %p119 = por %p117, %p118
    %p120 = scmp.ne.s32.totalorder %s112, %s115
    %p121 = scmp.eq.s32.totalorder %s13, 0
    %p122 = por %p120, %p121
    %p123 = scmp.ne.s32.totalorder %s112, %s115
    %p124 = scmp.eq.s32.totalorder %s18, 1
    %p125 = por %p123, %p124
    %p126 = scmp.ne.s32.totalorder %s115, %s116
    %p127 = scmp.eq.s32.totalorder %s18, 0
    %p128 = por %p126, %p127
    %p129 = scmp.ne.s32.totalorder %s115, %s116
    %p130 = scmp.eq.s32.totalorder %s19, 1
    %p131 = por %p129, %p130
    %p133 = scmp.ne.s32.totalorder %s116, %s132
    %p134 = scmp.eq.s32.totalorder %s19, 0
    %p135 = por %p133, %p134
    %s136 = ssub.s32 %s13, %s20
    %p137 = scmp.eq.s32.totalorder %s136, 0
    %s139 = sadd.s32 %s138, 1
    %s140 = scalar_select %p137, %s138, %s139
    %p143 = pneg %p137
    %p144 = scmp.eq.s32.totalorder %s13, 1
    %p145 = por %p143, %p144
    %p146 = scmp.ne.s32.totalorder %s138, %s141
    %p147 = scmp.eq.s32.totalorder %s13, 0
    %p148 = por %p146, %p147
    %p149 = scmp.ne.s32.totalorder %s138, %s141
    %p150 = scmp.eq.s32.totalorder %s18, 1
    %p151 = por %p149, %p150
    %p152 = scmp.ne.s32.totalorder %s141, %s142
    %p153 = scmp.eq.s32.totalorder %s18, 0
    %p154 = por %p152, %p153
    %p155 = scmp.ne.s32.totalorder %s141, %s142
    %p156 = scmp.eq.s32.totalorder %s19, 1
    %p157 = por %p155, %p156
    %p159 = scmp.ne.s32.totalorder %s142, %s158
    %p160 = scmp.eq.s32.totalorder %s19, 0
    %p161 = por %p159, %p160
    %s162 = ssub.s32 %s13, %s20
    %p163 = scmp.eq.s32.totalorder %s162, 0
    %s165 = sadd.s32 %s164, 1
    %s166 = scalar_select %p163, %s164, %s165
    %p169 = pneg %p163
    %p170 = scmp.eq.s32.totalorder %s13, 1
    %p171 = por %p169, %p170
    %p172 = scmp.ne.s32.totalorder %s164, %s167
    %p173 = scmp.eq.s32.totalorder %s13, 0
    %p174 = por %p172, %p173
    %p175 = scmp.ne.s32.totalorder %s164, %s167
    %p176 = scmp.eq.s32.totalorder %s18, 1
    %p177 = por %p175, %p176
    %p178 = scmp.ne.s32.totalorder %s167, %s168
    %p179 = scmp.eq.s32.totalorder %s18, 0
    %p180 = por %p178, %p179
    %p181 = scmp.ne.s32.totalorder %s167, %s168
    %p182 = scmp.eq.s32.totalorder %s19, 1
    %p183 = por %p181, %p182
    %p185 = scmp.ne.s32.totalorder %s168, %s184
    %p186 = scmp.eq.s32.totalorder %s19, 0
    %p187 = por %p185, %p186
    %p188 = scmp.le.s32.totalorder 1, %s13
    %p189 = scmp.lt.s32.totalorder %s13, 3
    %p190 = pnand %p188, %p189
    %p191 = pneg %p190
    // Predicated region
    $region9: #{gat_forward.5} parent=5 // pred_check
      _
    $region10: #{gat_forward.5} parent=5 // pred_check_branch
      %193 = sbr.rel (%p190) target = $region12
    $region11: #{gat_forward.5} parent=5 // pred_region
      %s194 = ssub.s32 %s13, 1
      // Predicated region
      $region13: #{gat_forward.5} parent=11 // pred_check
        %p195 = pneg %p60
      $region14: #{gat_forward.5} parent=11 // pred_check_branch
        %197 = sbr.rel (%p195) target = $region16
      $region15: #{gat_forward.5} parent=11 // pred_region
        _
      $region16: #{gat_forward.5} parent=11 // pred_fallthru
        _
      // Predicated region
      $region17: #{gat_forward.5} parent=11 // pred_check
        %p198 = pneg %p81
      $region18: #{gat_forward.5} parent=11 // pred_check_branch
        %200 = sbr.rel (%p198) target = $region20
      $region19: #{gat_forward.5} parent=11 // pred_region
        _
      $region20: #{gat_forward.5} parent=11 // pred_fallthru
        _
      // Predicated region
      $region21: #{gat_forward.5} parent=11 // pred_check
        %p201 = pneg %p102
      $region22: #{gat_forward.5} parent=11 // pred_check_branch
        %203 = sbr.rel (%p201) target = $region24
      $region23: #{gat_forward.5} parent=11 // pred_region
        _
      $region24: #{gat_forward.5} parent=11 // pred_fallthru
        _
    $region12: #{gat_forward.5} parent=5 // pred_fallthru
      _
    %p204 = scmp.lt.s32.totalorder %s13, 2
    // Predicated region
    $region25: #{gat_forward.5} parent=5 // pred_check
      %p205 = pneg %p204
    $region26: #{gat_forward.5} parent=5 // pred_check_branch
      %207 = sbr.rel (%p205) target = $region28
    $region27: #{gat_forward.5} parent=5 // pred_region
      // Predicated region
      $region29: #{gat_forward.5} parent=27 // pred_check
        %p208 = pneg %p33
      $region30: #{gat_forward.5} parent=27 // pred_check_branch
        %210 = sbr.rel (%p208) target = $region32
      $region31: #{gat_forward.5} parent=27 // pred_region
        %s211 = smul.u32 8, %s13
        %p212 = scmp.lt.s32.totalorder %s211, 15
        %s213 = scalar_select %p212, %s211, 15
        %s214 = smul.addr %s213, 8
        %s215 = scalar_lea.vmem %s0, %s214
        %s216 = smul.u32 8, %s13
      $region32: #{gat_forward.5} parent=27 // pred_fallthru
        _
    $region28: #{gat_forward.5} parent=5 // pred_fallthru
      _
    %p217 = scmp.le.s32.totalorder 1, %s13
    %p218 = scmp.lt.s32.totalorder %s13, 3
    %p219 = pnand %p217, %p218
    %p220 = pneg %p219
    // Predicated region
    $region33: #{gat_forward.5} parent=5 // pred_check
      _
    $region34: #{gat_forward.5} parent=5 // pred_check_branch
      %222 = sbr.rel (%p219) target = $region36
    $region35: #{gat_forward.5} parent=5 // pred_region
      %s223 = ssub.s32 %s13, 1
      %s224 = smul.u32 8, %s18
      %p225 = scmp.lt.s32.totalorder %s224, 15
      %s226 = scalar_select %p225, %s224, 15
      %s227 = smul.addr %s226, 8
      %s228 = scalar_lea.vmem %s0, %s227
      %p229 = pneg %p39
      %p230 = pneg %p36
      %p231 = pneg %p60
      %p232 = pneg %p57
      %p233 = pneg %p81
      %p234 = pneg %p78
      %p235 = pneg %p102
      %p236 = pneg %p99
      %p237 = pneg %p128
      %p238 = pneg %p125
      %s239 = smul.u32 8, %s18
      %p240 = scmp.lt.s32.totalorder %s239, 15
      %s241 = scalar_select %p240, %s239, 15
      %s242 = smul.addr %s241, 4
      %s243 = scalar_lea.vmem %s4, %s242
      %p244 = pneg %p154
      %p245 = pneg %p151
      %s246 = smul.u32 8, %s18
      %p247 = scmp.lt.s32.totalorder %s246, 15
      %s248 = scalar_select %p247, %s246, 15
      %s249 = smul.addr %s248, 8
      %s250 = scalar_lea.vmem %s5, %s249
      %p251 = pneg %p180
      %p252 = pneg %p177
      %s253 = smul.u32 8, %s18
      %p254 = scmp.lt.s32.totalorder %s253, 15
      %s255 = scalar_select %p254, %s253, 15
      %s256 = smul.addr %s255, 8
      %s257 = scalar_lea.vmem %s6, %s256
      %s258 = smul.u32 8, %s18
      %p259 = scmp.lt.s32.totalorder %s258, 15
      %s260 = scalar_select %p259, %s258, 15
      %s261 = smul.addr %s260, 8
      %s262 = scalar_lea.vmem %s0, %s261
      %s263 = smul.u32 8, %s18
      %s264 = smul.u32 8, %s18
      %p265 = scmp.lt.s32.totalorder %s264, 15
      %s266 = scalar_select %p265, %s264, 15
      %s267 = smul.addr %s266, 4
      %s268 = scalar_lea.vmem %s4, %s267
      %s269 = smul.u32 8, %s18
      %s270 = smul.u32 8, %s18
      %p271 = scmp.lt.s32.totalorder %s270, 15
      %s272 = scalar_select %p271, %s270, 15
      %s273 = smul.addr %s272, 8
      %s274 = scalar_lea.vmem %s5, %s273
      %s275 = smul.u32 8, %s18
      %s276 = smul.u32 8, %s18
      %p277 = scmp.lt.s32.totalorder %s276, 15
      %s278 = scalar_select %p277, %s276, 15
      %s279 = smul.addr %s278, 8
      %s280 = scalar_lea.vmem %s6, %s279
      %s281 = smul.u32 8, %s18
      %v282 = vld [vmem:[%s262] sm:$0xff]
      %v283 = vld [vmem:[%s262 + $0x8] sm:$0xff]
      %v284 = vld [vmem:[%s262 + $0x10] sm:$0xff]
      %v285 = vld [vmem:[%s262 + $0x18] sm:$0xff]
      %v286 = vld [vmem:[%s262 + $0x20] sm:$0xff]
      %v287 = vld [vmem:[%s262 + $0x28] sm:$0xff]
      %v288 = vld [vmem:[%s262 + $0x30] sm:$0xff]
      %v289 = vld [vmem:[%s262 + $0x38] sm:$0xff]
      %v290 = vld [vmem:[%s1] sm:$0xf]
      %vm291 = vcmask 31744
      %v293 = vsel %vm291, %v282, 0
      %v296 = vsel %vm291, %v283, 0
      %v299 = vsel %vm291, %v284, 0
      %v302 = vsel %vm291, %v285, 0
      %v305 = vsel %vm291, %v286, 0
      %v308 = vsel %vm291, %v287, 0
      %v311 = vsel %vm291, %v288, 0
      %v314 = vsel %vm291, %v289, 0
      %vm316 = vcmask 1043456
      %v318 = vsel %vm316, %v290, 0
      %320 = vmatprep.subr.mxu0 0.0
      %321 = vmatpush1.msra.mxu0 %v318
      %322 = vmatprep.subr.mxu0 0.0
      %323 = vmatpush1.msra.mxu0 0.0
      %324 = vmatprep.subr.mxu0 0.0
      %325 = vmatpush1.msra.mxu0 0.0
      %326 = vmatprep.subr.mxu0 0.0
      %327 = vmatpush1.msra.mxu0 0.0
      %328 = vmatprep.subr.mxu0 0.0
      %329 = vmatpush1.msra.mxu0 0.0
      %330 = vmatprep.subr.mxu0 0.0
      %331 = vmatpush1.msra.mxu0 0.0
      %332 = vmatprep.subr.mxu0 0.0
      %333 = vmatpush1.msra.mxu0 0.0
      %334 = vmatprep.subr.mxu0 0.0
      %335 = vmatpush1.msra.mxu0 0.0
      %336 = vmatprep.subr.mxu0 0.0
      %337 = vmatpush1.msra.mxu0 0.0
      %338 = vmatprep.subr.mxu0 0.0
      %339 = vmatpush1.msra.mxu0 0.0
      %340 = vmatprep.subr.mxu0 0.0
      %341 = vmatpush1.msra.mxu0 0.0
      %342 = vmatprep.subr.mxu0 0.0
      %343 = vmatpush1.msra.mxu0 0.0
      %344 = vmatprep.subr.mxu0 0.0
      %345 = vmatpush1.msra.mxu0 0.0
      %346 = vmatprep.subr.mxu0 0.0
      %347 = vmatpush1.msra.mxu0 0.0
      %348 = vmatprep.subr.mxu0 0.0
      %349 = vmatpush1.msra.mxu0 0.0
      %350 = vmatprep.subr.mxu0 0.0
      %351 = vmatpush1.msra.mxu0 0.0
      %352 = vmatprep.subr.mxu0 0.0
      %353 = vmatpush1.msra.mxu0 0.0
      %354 = vmatprep.subr.mxu0 0.0
      %355 = vmatpush1.msra.mxu0 0.0
      %356 = vmatprep.subr.mxu0 0.0
      %357 = vmatpush1.msra.mxu0 0.0
      %358 = vmatprep.subr.mxu0 0.0
      %359 = vmatpush1.msra.mxu0 0.0
      %360 = vmatprep.subr.mxu0 0.0
      %361 = vmatpush1.msra.mxu0 0.0
      %362 = vmatprep.subr.mxu0 0.0
      %363 = vmatpush1.msra.mxu0 0.0
      %364 = vmatprep.subr.mxu0 0.0
      %365 = vmatpush1.msra.mxu0 0.0
      %366 = vmatprep.subr.mxu0 0.0
      %367 = vmatpush1.msra.mxu0 0.0
      %368 = vmatprep.subr.mxu0 0.0
      %369 = vmatpush1.msra.mxu0 0.0
      %370 = vmatprep.subr.mxu0 0.0
      %371 = vmatpush1.msra.mxu0 0.0
      %372 = vmatprep.subr.mxu0 0.0
      %373 = vmatpush1.msra.mxu0 0.0
      %374 = vmatprep.subr.mxu0 0.0
      %375 = vmatpush1.msra.mxu0 0.0
      %376 = vmatprep.subr.mxu0 0.0
      %377 = vmatpush1.msra.mxu0 0.0
      %378 = vmatprep.subr.mxu0 0.0
      %379 = vmatpush1.msra.mxu0 0.0
      %380 = vmatprep.subr.mxu0 0.0
      %381 = vmatpush1.msra.mxu0 0.0
      %382 = vmatprep.subr.mxu0 0.0
      %383 = vmatpush1.msra.mxu0 0.0
      %384 = vmatprep.mubr.f32.mxu0 0.0
      %385 = vmatmul.mubr.f32.gmra.mrb[0].mxu0 %v293
      %v386 = vpop.f32.mrb[0].mxu0
      %v387 = vadd.f32 0.0, %v386
      %v388 = vpop.f32.mrb[0].mxu0
      %389 = vmatprep.mubr.f32.mxu0 0.0
      %390 = vmatmul.mubr.f32.gmra.mrb[0].mxu0 %v296
      %v391 = vpop.f32.mrb[0].mxu0
      %v392 = vadd.f32 0.0, %v391
      %v393 = vpop.f32.mrb[0].mxu0
      %394 = vmatprep.mubr.f32.mxu0 0.0
      %395 = vmatmul.mubr.f32.gmra.mrb[0].mxu0 %v299
      %v396 = vpop.f32.mrb[0].mxu0
      %v397 = vadd.f32 0.0, %v396
      %v398 = vpop.f32.mrb[0].mxu0
      %399 = vmatprep.mubr.f32.mxu0 0.0
      %400 = vmatmul.mubr.f32.gmra.mrb[0].mxu0 %v302
      %v401 = vpop.f32.mrb[0].mxu0
      %v402 = vadd.f32 0.0, %v401
      %v403 = vpop.f32.mrb[0].mxu0
      %404 = vmatprep.mubr.f32.mxu0 0.0
      %405 = vmatmul.mubr.f32.gmra.mrb[0].mxu0 %v305
      %v406 = vpop.f32.mrb[0].mxu0
      %v407 = vadd.f32 0.0, %v406
      %v408 = vpop.f32.mrb[0].mxu0
      %409 = vmatprep.mubr.f32.mxu0 0.0
      %410 = vmatmul.mubr.f32.gmra.mrb[0].mxu0 %v308
      %v411 = vpop.f32.mrb[0].mxu0
      %v412 = vadd.f32 0.0, %v411
      %v413 = vpop.f32.mrb[0].mxu0
      %414 = vmatprep.mubr.f32.mxu0 0.0
      %415 = vmatmul.mubr.f32.gmra.mrb[0].mxu0 %v311
      %v416 = vpop.f32.mrb[0].mxu0
      %v417 = vadd.f32 0.0, %v416
      %v418 = vpop.f32.mrb[0].mxu0
      %419 = vmatprep.mubr.f32.mxu0 0.0
      %420 = vmatmul.mubr.f32.gmra.mrb[0].mxu0 %v314
      %v421 = vpop.f32.mrb[0].mxu0
      %v422 = vadd.f32 0.0, %v421
      %v423 = vpop.f32.mrb[0].mxu0
      %424 = vdwg.mxu0
      %v425 = vld [vmem:[%s2] sm:$0xff]
      %v426 = vld [vmem:[%s2 + $0x8] sm:$0xff]
      %v427 = vld [vmem:[%s2 + $0x10] sm:$0xff]
      %v428 = vld [vmem:[%s2 + $0x18] sm:$0xff]
      %v429 = vld [vmem:[%s2 + $0x20] sm:$0xff]
      %v430 = vld [vmem:[%s2 + $0x28] sm:$0xff]
      %v431 = vld [vmem:[%s2 + $0x30] sm:$0xff]
      %v432 = vld [vmem:[%s2 + $0x38] sm:$0xff]
      %vm433 = vcmask 523264
      %v435 = vsel %vm433, %v387, 0
      %v438 = vsel %vm433, %v392, 0
      %v441 = vsel %vm433, %v397, 0
      %v444 = vsel %vm433, %v402, 0
      %v447 = vsel %vm433, %v407, 0
      %v450 = vsel %vm433, %v412, 0
      %v453 = vsel %vm433, %v417, 0
      %v456 = vsel %vm433, %v422, 0
      %458 = vmatprep.subr.mxu0 0.0
      %459 = vmatpush1.msra.mxu0 %v425
      %460 = vmatprep.subr.mxu0 0.0
      %461 = vmatpush1.msra.mxu0 %v426
      %462 = vmatprep.subr.mxu0 0.0
      %463 = vmatpush1.msra.mxu0 %v427
      %464 = vmatprep.subr.mxu0 0.0
      %465 = vmatpush1.msra.mxu0 %v428
      %466 = vmatprep.subr.mxu0 0.0
      %467 = vmatpush1.msra.mxu0 %v429
      %468 = vmatprep.subr.mxu0 0.0
      %469 = vmatpush1.msra.mxu0 %v430
      %470 = vmatprep.subr.mxu0 0.0
      %471 = vmatpush1.msra.mxu0 %v431
      %472 = vmatprep.subr.mxu0 0.0
      %473 = vmatpush1.msra.mxu0 %v432
      %474 = vmatprep.subr.mxu0 0.0
      %475 = vmatpush1.msra.mxu0 0.0
      %476 = vmatprep.subr.mxu0 0.0
      %477 = vmatpush1.msra.mxu0 0.0
      %478 = vmatprep.subr.mxu0 0.0
      %479 = vmatpush1.msra.mxu0 0.0
      %480 = vmatprep.subr.mxu0 0.0
      %481 = vmatpush1.msra.mxu0 0.0
      %482 = vmatprep.subr.mxu0 0.0
      %483 = vmatpush1.msra.mxu0 0.0
      %484 = vmatprep.subr.mxu0 0.0
      %485 = vmatpush1.msra.mxu0 0.0
      %486 = vmatprep.subr.mxu0 0.0
      %487 = vmatpush1.msra.mxu0 0.0
      %488 = vmatprep.subr.mxu0 0.0
      %489 = vmatpush1.msra.mxu0 0.0
      %490 = vmatprep.subr.mxu0 0.0
      %491 = vmatpush1.msra.mxu0 0.0
      %492 = vmatprep.subr.mxu0 0.0
      %493 = vmatpush1.msra.mxu0 0.0
      %494 = vmatprep.subr.mxu0 0.0
      %495 = vmatpush1.msra.mxu0 0.0
      %496 = vmatprep.subr.mxu0 0.0
      %497 = vmatpush1.msra.mxu0 0.0
      %498 = vmatprep.subr.mxu0 0.0
      %499 = vmatpush1.msra.mxu0 0.0
      %500 = vmatprep.subr.mxu0 0.0
      %501 = vmatpush1.msra.mxu0 0.0
      %502 = vmatprep.subr.mxu0 0.0
      %503 = vmatpush1.msra.mxu0 0.0
      %504 = vmatprep.subr.mxu0 0.0
      %505 = vmatpush1.msra.mxu0 0.0
      %506 = vmatprep.subr.mxu0 0.0
      %507 = vmatpush1.msra.mxu0 0.0
      %508 = vmatprep.subr.mxu0 0.0
      %509 = vmatpush1.msra.mxu0 0.0
      %510 = vmatprep.subr.mxu0 0.0
      %511 = vmatpush1.msra.mxu0 0.0
      %512 = vmatprep.subr.mxu0 0.0
      %513 = vmatpush1.msra.mxu0 0.0
      %514 = vmatprep.subr.mxu0 0.0
      %515 = vmatpush1.msra.mxu0 0.0
      %516 = vmatprep.subr.mxu0 0.0
      %517 = vmatpush1.msra.mxu0 0.0
      %518 = vmatprep.subr.mxu0 0.0
      %519 = vmatpush1.msra.mxu0 0.0
      %520 = vmatprep.subr.mxu0 0.0
      %521 = vmatpush1.msra.mxu0 0.0
      %522 = vmatprep.mubr.f32.mxu0 0.0
      %523 = vmatmul.mubr.f32.gmra.mrb[0].mxu0 %v435
      %v524 = vpop.f32.mrb[0].mxu0
      %v525 = vadd.f32 0.0, %v524
      %v526 = vpop.f32.mrb[0].mxu0
      %527 = vmatprep.mubr.f32.mxu0 0.0
      %528 = vmatmul.mubr.f32.gmra.mrb[0].mxu0 %v438
      %v529 = vpop.f32.mrb[0].mxu0
      %v530 = vadd.f32 0.0, %v529
      %v531 = vpop.f32.mrb[0].mxu0
      %532 = vmatprep.mubr.f32.mxu0 0.0
      %533 = vmatmul.mubr.f32.gmra.mrb[0].mxu0 %v441
      %v534 = vpop.f32.mrb[0].mxu0
      %v535 = vadd.f32 0.0, %v534
      %v536 = vpop.f32.mrb[0].mxu0
      %537 = vmatprep.mubr.f32.mxu0 0.0
      %538 = vmatmul.mubr.f32.gmra.mrb[0].mxu0 %v444
      %v539 = vpop.f32.mrb[0].mxu0
      %v540 = vadd.f32 0.0, %v539
      %v541 = vpop.f32.mrb[0].mxu0
      %542 = vmatprep.mubr.f32.mxu0 0.0
      %543 = vmatmul.mubr.f32.gmra.mrb[0].mxu0 %v447
      %v544 = vpop.f32.mrb[0].mxu0
      %v545 = vadd.f32 0.0, %v544
      %v546 = vpop.f32.mrb[0].mxu0
      %547 = vmatprep.mubr.f32.mxu0 0.0
      %548 = vmatmul.mubr.f32.gmra.mrb[0].mxu0 %v450
      %v549 = vpop.f32.mrb[0].mxu0
      %v550 = vadd.f32 0.0, %v549
      %v551 = vpop.f32.mrb[0].mxu0
      %552 = vmatprep.mubr.f32.mxu0 0.0
      %553 = vmatmul.mubr.f32.gmra.mrb[0].mxu0 %v453
      %v554 = vpop.f32.mrb[0].mxu0
      %v555 = vadd.f32 0.0, %v554
      %v556 = vpop.f32.mrb[0].mxu0
      %557 = vmatprep.mubr.f32.mxu0 0.0
      %558 = vmatmul.mubr.f32.gmra.mrb[0].mxu0 %v456
      %v559 = vpop.f32.mrb[0].mxu0
      %v560 = vadd.f32 0.0, %v559
      %v561 = vpop.f32.mrb[0].mxu0
      %562 = vdwg.mxu0
      %vm563 = vcmask 64512
      %564 = vst.msk [vmem:[%s274] sm:$0xff] %vm563, %v525
      %565 = vst.msk [vmem:[%s274 + $0x8] sm:$0xff] %vm563, %v530
      %566 = vst.msk [vmem:[%s274 + $0x10] sm:$0xff] %vm563, %v535
      %567 = vst.msk [vmem:[%s274 + $0x18] sm:$0xff] %vm563, %v540
      %568 = vst.msk [vmem:[%s274 + $0x20] sm:$0xff] %vm563, %v545
      %569 = vst.msk [vmem:[%s274 + $0x28] sm:$0xff] %vm563, %v550
      %570 = vst.msk [vmem:[%s274 + $0x30] sm:$0xff] %vm563, %v555
      %571 = vst.msk [vmem:[%s274 + $0x38] sm:$0xff] %vm563, %v560
      %v572 = vld [vmem:[%s3] sm:$0xff]
      %v573 = vld [vmem:[%s3 + $0x8] sm:$0xff]
      %v574 = vld [vmem:[%s3 + $0x10] sm:$0xff]
      %v575 = vld [vmem:[%s3 + $0x18] sm:$0xff]
      %v576 = vld [vmem:[%s3 + $0x20] sm:$0xff]
      %v577 = vld [vmem:[%s3 + $0x28] sm:$0xff]
      %v578 = vld [vmem:[%s3 + $0x30] sm:$0xff]
      %v579 = vld [vmem:[%s3 + $0x38] sm:$0xff]
      %580 = vmatprep.subr.mxu0 0.0
      %581 = vmatpush1.msra.mxu0 %v572
      %582 = vmatprep.subr.mxu0 0.0
      %583 = vmatpush1.msra.mxu0 %v573
      %584 = vmatprep.subr.mxu0 0.0
      %585 = vmatpush1.msra.mxu0 %v574
      %586 = vmatprep.subr.mxu0 0.0
      %587 = vmatpush1.msra.mxu0 %v575
      %588 = vmatprep.subr.mxu0 0.0
      %589 = vmatpush1.msra.mxu0 %v576
      %590 = vmatprep.subr.mxu0 0.0
      %591 = vmatpush1.msra.mxu0 %v577
      %592 = vmatprep.subr.mxu0 0.0
      %593 = vmatpush1.msra.mxu0 %v578
      %594 = vmatprep.subr.mxu0 0.0
      %595 = vmatpush1.msra.mxu0 %v579
      %596 = vmatprep.subr.mxu0 0.0
      %597 = vmatpush1.msra.mxu0 0.0
      %598 = vmatprep.subr.mxu0 0.0
      %599 = vmatpush1.msra.mxu0 0.0
      %600 = vmatprep.subr.mxu0 0.0
      %601 = vmatpush1.msra.mxu0 0.0
      %602 = vmatprep.subr.mxu0 0.0
      %603 = vmatpush1.msra.mxu0 0.0
      %604 = vmatprep.subr.mxu0 0.0
      %605 = vmatpush1.msra.mxu0 0.0
      %606 = vmatprep.subr.mxu0 0.0
      %607 = vmatpush1.msra.mxu0 0.0
      %608 = vmatprep.subr.mxu0 0.0
      %609 = vmatpush1.msra.mxu0 0.0
      %610 = vmatprep.subr.mxu0 0.0
      %611 = vmatpush1.msra.mxu0 0.0
      %612 = vmatprep.subr.mxu0 0.0
      %613 = vmatpush1.msra.mxu0 0.0
      %614 = vmatprep.subr.mxu0 0.0
      %615 = vmatpush1.msra.mxu0 0.0
      %616 = vmatprep.subr.mxu0 0.0
      %617 = vmatpush1.msra.mxu0 0.0
      %618 = vmatprep.subr.mxu0 0.0
      %619 = vmatpush1.msra.mxu0 0.0
      %620 = vmatprep.subr.mxu0 0.0
      %621 = vmatpush1.msra.mxu0 0.0
      %622 = vmatprep.subr.mxu0 0.0
      %623 = vmatpush1.msra.mxu0 0.0
      %624 = vmatprep.subr.mxu0 0.0
      %625 = vmatpush1.msra.mxu0 0.0
      %626 = vmatprep.subr.mxu0 0.0
      %627 = vmatpush1.msra.mxu0 0.0
      %628 = vmatprep.subr.mxu0 0.0
      %629 = vmatpush1.msra.mxu0 0.0
      %630 = vmatprep.subr.mxu0 0.0
      %631 = vmatpush1.msra.mxu0 0.0
      %632 = vmatprep.subr.mxu0 0.0
      %633 = vmatpush1.msra.mxu0 0.0
      %634 = vmatprep.subr.mxu0 0.0
      %635 = vmatpush1.msra.mxu0 0.0
      %636 = vmatprep.subr.mxu0 0.0
      %637 = vmatpush1.msra.mxu0 0.0
      %638 = vmatprep.subr.mxu0 0.0
      %639 = vmatpush1.msra.mxu0 0.0
      %640 = vmatprep.subr.mxu0 0.0
      %641 = vmatpush1.msra.mxu0 0.0
      %642 = vmatprep.subr.mxu0 0.0
      %643 = vmatpush1.msra.mxu0 0.0
      %644 = vmatprep.mubr.f32.mxu0 0.0
      %645 = vmatmul.mubr.f32.gmra.mrb[0].mxu0 %v435
      %v646 = vpop.f32.mrb[0].mxu0
      %v647 = vadd.f32 0.0, %v646
      %v648 = vpop.f32.mrb[0].mxu0
      %649 = vmatprep.mubr.f32.mxu0 0.0
      %650 = vmatmul.mubr.f32.gmra.mrb[0].mxu0 %v438
      %v651 = vpop.f32.mrb[0].mxu0
      %v652 = vadd.f32 0.0, %v651
      %v653 = vpop.f32.mrb[0].mxu0
      %654 = vmatprep.mubr.f32.mxu0 0.0
      %655 = vmatmul.mubr.f32.gmra.mrb[0].mxu0 %v441
      %v656 = vpop.f32.mrb[0].mxu0
      %v657 = vadd.f32 0.0, %v656
      %v658 = vpop.f32.mrb[0].mxu0
      %659 = vmatprep.mubr.f32.mxu0 0.0
      %660 = vmatmul.mubr.f32.gmra.mrb[0].mxu0 %v444
      %v661 = vpop.f32.mrb[0].mxu0
      %v662 = vadd.f32 0.0, %v661
      %v663 = vpop.f32.mrb[0].mxu0
      %664 = vmatprep.mubr.f32.mxu0 0.0
      %665 = vmatmul.mubr.f32.gmra.mrb[0].mxu0 %v447
      %v666 = vpop.f32.mrb[0].mxu0
      %v667 = vadd.f32 0.0, %v666
      %v668 = vpop.f32.mrb[0].mxu0
      %669 = vmatprep.mubr.f32.mxu0 0.0
      %670 = vmatmul.mubr.f32.gmra.mrb[0].mxu0 %v450
      %v671 = vpop.f32.mrb[0].mxu0
      %v672 = vadd.f32 0.0, %v671
      %v673 = vpop.f32.mrb[0].mxu0
      %674 = vmatprep.mubr.f32.mxu0 0.0
      %675 = vmatmul.mubr.f32.gmra.mrb[0].mxu0 %v453
      %v676 = vpop.f32.mrb[0].mxu0
      %v677 = vadd.f32 0.0, %v676
      %v678 = vpop.f32.mrb[0].mxu0
      %679 = vmatprep.mubr.f32.mxu0 0.0
      %680 = vmatmul.mubr.f32.gmra.mrb[0].mxu0 %v456
      %v681 = vpop.f32.mrb[0].mxu0
      %v682 = vadd.f32 0.0, %v681
      %v683 = vpop.f32.mrb[0].mxu0
      %684 = vdwg.mxu0
      %685 = vst.msk [vmem:[%s280] sm:$0xff] %vm563, %v647
      %686 = vst.msk [vmem:[%s280 + $0x8] sm:$0xff] %vm563, %v652
      %687 = vst.msk [vmem:[%s280 + $0x10] sm:$0xff] %vm563, %v657
      %688 = vst.msk [vmem:[%s280 + $0x18] sm:$0xff] %vm563, %v662
      %689 = vst.msk [vmem:[%s280 + $0x20] sm:$0xff] %vm563, %v667
      %690 = vst.msk [vmem:[%s280 + $0x28] sm:$0xff] %vm563, %v672
      %691 = vst.msk [vmem:[%s280 + $0x30] sm:$0xff] %vm563, %v677
      %692 = vst.msk [vmem:[%s280 + $0x38] sm:$0xff] %vm563, %v682
      %v693 = vpack.c.bf16 %v392, %v387
      %v694 = vpack.c.bf16 %v402, %v397
      %v695 = vpack.c.bf16 %v412, %v407
      %v696 = vpack.c.bf16 %v422, %v417
      %v701 = vunpack.c.l.b16 %v693
      %v702 = vunpack.c.h.b16 %v693
      %v703 = vunpack.c.l.b16 %v694
      %v704 = vunpack.c.h.b16 %v694
      %v705 = vunpack.c.l.b16 %v695
      %v706 = vunpack.c.h.b16 %v695
      %v707 = vunpack.c.l.b16 %v696
      %v708 = vunpack.c.h.b16 %v696
      %v709 = vpack.c.b16 %v701, %v701
      %v710 = vpack.c.b16 %v702, %v702
      %v711 = vpack.c.b16 %v703, %v703
      %v712 = vpack.c.b16 %v704, %v704
      %v713 = vpack.c.b16 %v705, %v705
      %v714 = vpack.c.b16 %v706, %v706
      %v715 = vpack.c.b16 %v707, %v707
      %v716 = vpack.c.b16 %v708, %v708
      %vm725 = vcmask 519168
      %726 = vst.msk [vmem:[%s268] sm:$0xf] %vm725, %v709
      %727 = vst.msk [vmem:[%s268 + $0x4] sm:$0xf] %vm725, %v710
      %728 = vst.msk [vmem:[%s268 + $0x8] sm:$0xf] %vm725, %v711
      %729 = vst.msk [vmem:[%s268 + $0xc] sm:$0xf] %vm725, %v712
      %730 = vst.msk [vmem:[%s268 + $0x10] sm:$0xf] %vm725, %v713
      %731 = vst.msk [vmem:[%s268 + $0x14] sm:$0xf] %vm725, %v714
      %732 = vst.msk [vmem:[%s268 + $0x18] sm:$0xf] %vm725, %v715
      %733 = vst.msk [vmem:[%s268 + $0x1c] sm:$0xf] %vm725, %v716
      %s734 = smul.u32 8, %s18
      %p735 = scmp.lt.s32.totalorder %s734, 15
      %s736 = scalar_select %p735, %s734, 15
      %s737 = smul.addr %s736, 4
      %s738 = scalar_lea.vmem %s4, %s737
      %s739 = smul.u32 8, %s18
      %p740 = scmp.lt.s32.totalorder %s739, 15
      %s741 = scalar_select %p740, %s739, 15
      %s742 = smul.addr %s741, 8
      %s743 = scalar_lea.vmem %s5, %s742
      %s744 = smul.u32 8, %s18
      %p745 = scmp.lt.s32.totalorder %s744, 15
      %s746 = scalar_select %p745, %s744, 15
      %s747 = smul.addr %s746, 8
      %s748 = scalar_lea.vmem %s6, %s747
      // Predicated region
      $region37: #{gat_forward.5} parent=35 // pred_check
        %p749 = pneg %p125
      $region38: #{gat_forward.5} parent=35 // pred_check_branch
        %751 = sbr.rel (%p749) target = $region40
      $region39: #{gat_forward.5} parent=35 // pred_region
        %s752 = smul.u32 8, %s18
      $region40: #{gat_forward.5} parent=35 // pred_fallthru
        _
      // Predicated region
      $region41: #{gat_forward.5} parent=35 // pred_check
        %p753 = pneg %p151
      $region42: #{gat_forward.5} parent=35 // pred_check_branch
        %755 = sbr.rel (%p753) target = $region44
      $region43: #{gat_forward.5} parent=35 // pred_region
        %s756 = smul.u32 8, %s18
      $region44: #{gat_forward.5} parent=35 // pred_fallthru
        _
      // Predicated region
      $region45: #{gat_forward.5} parent=35 // pred_check
        %p757 = pneg %p177
      $region46: #{gat_forward.5} parent=35 // pred_check_branch
        %759 = sbr.rel (%p757) target = $region48
      $region47: #{gat_forward.5} parent=35 // pred_region
        %s760 = smul.u32 8, %s18
      $region48: #{gat_forward.5} parent=35 // pred_fallthru
        _
    $region36: #{gat_forward.5} parent=5 // pred_fallthru
      _
    %p761 = scmp.le.s32.totalorder 2, %s13
    // Predicated region
    $region49: #{gat_forward.5} parent=5 // pred_check
      %p762 = pneg %p761
    $region50: #{gat_forward.5} parent=5 // pred_check_branch
      %764 = sbr.rel (%p762) target = $region52
    $region51: #{gat_forward.5} parent=5 // pred_region
      %s765 = ssub.s32 %s13, 2
      // Predicated region
      $region53: #{gat_forward.5} parent=51 // pred_check
        %p766 = pneg %p131
      $region54: #{gat_forward.5} parent=51 // pred_check_branch
        %768 = sbr.rel (%p766) target = $region56
      $region55: #{gat_forward.5} parent=51 // pred_region
        %s769 = smul.u32 8, %s19
        %p770 = scmp.lt.s32.totalorder %s769, 15
        %s771 = scalar_select %p770, %s769, 15
        %s772 = smul.addr %s771, 4
        %s773 = scalar_lea.vmem %s4, %s772
      $region56: #{gat_forward.5} parent=51 // pred_fallthru
        _
      // Predicated region
      $region57: #{gat_forward.5} parent=51 // pred_check
        %p774 = pneg %p157
      $region58: #{gat_forward.5} parent=51 // pred_check_branch
        %776 = sbr.rel (%p774) target = $region60
      $region59: #{gat_forward.5} parent=51 // pred_region
        %s777 = smul.u32 8, %s19
        %p778 = scmp.lt.s32.totalorder %s777, 15
        %s779 = scalar_select %p778, %s777, 15
        %s780 = smul.addr %s779, 8
        %s781 = scalar_lea.vmem %s5, %s780
      $region60: #{gat_forward.5} parent=51 // pred_fallthru
        _
      // Predicated region
      $region61: #{gat_forward.5} parent=51 // pred_check
        %p782 = pneg %p183
      $region62: #{gat_forward.5} parent=51 // pred_check_branch
        %784 = sbr.rel (%p782) target = $region64
      $region63: #{gat_forward.5} parent=51 // pred_region
        %s785 = smul.u32 8, %s19
        %p786 = scmp.lt.s32.totalorder %s785, 15
        %s787 = scalar_select %p786, %s785, 15
        %s788 = smul.addr %s787, 8
        %s789 = scalar_lea.vmem %s6, %s788
      $region64: #{gat_forward.5} parent=51 // pred_fallthru
        _
    $region52: #{gat_forward.5} parent=5 // pred_fallthru
      _
  $region6: #{gat_forward.5} parent=0 // loop_footer
    %s17 = sadd.s32 1, %s13
  $region7: #{gat_forward.5} parent=0 // loop_footer_branch
    %12 = sbr.rel target = $region3
  $region8: #{gat_forward.5} parent=0 // loop_exit
    _

// kernel: gat_forward.7
$region0: #{gat_forward.7}
  #allocation0 [shape = 'u32[]', space=smem, size = 0x4, offset = 0x4, fixed_abs, tag = 'smem constant byte address 0x4 - core index']
  #allocation1 [shape = 'u32[144,128]{1,0:T(1,128)}', space=vmem, size = 0x12000, scoped, tag = 'internal scratch']
  %s0 = inlined_call_operand.vmem [shape: f32[128,64], index: 0, kind: input, shape index: {}]
  %s1 = inlined_call_operand.vmem [shape: f32[64,8], index: 1, kind: input, shape index: {}]
  %s2 = inlined_call_operand.vmem [shape: f32[8,1], index: 2, kind: input, shape index: {}]
  %s3 = inlined_call_operand.vmem [shape: f32[8,1], index: 3, kind: input, shape index: {}]
  %s4 = inlined_call_operand.vmem [shape: bf16[128,8], index: 4, kind: output, shape index: {0}]
  %s5 = inlined_call_operand.vmem [shape: f32[128,1], index: 5, kind: output, shape index: {1}]
  %s6 = inlined_call_operand.vmem [shape: f32[128,1], index: 6, kind: output, shape index: {2}]
  %7 = xla_tuple %s4, %s5, %s6
  %s8 = sld [smem:[#allocation0]]
  $region65: #{gat_forward.7} parent=0
    _
  %s10 = ssub.s32 1, %s8
  %s11 = scalar_select 0, %s10, %s8
  loop: start=0, step=1, limit=4
  $region2: #{gat_forward.7} parent=0 // loop_pre_header
    _
  $region3: #{gat_forward.7} parent=0 // loop_header
    %s13 = sphi 0, %s17
    %p14 = scmp.ge.s32.totalorder %s13, 4
    %s23 = sphi 0, %s25
    %s26 = sphi 0, %s23
    %s27 = sphi 0, %s26
    %s43 = sphi 0, %s27
    %s47 = sphi 0, %s47
    %s49 = sphi 0, %s47
    %s50 = sphi 0, %s49
    %s64 = sphi 0, %s50
    %s68 = sphi 0, %s68
    %s70 = sphi 0, %s68
    %s71 = sphi 0, %s70
    %s85 = sphi 0, %s71
    %s89 = sphi 0, %s89
    %s91 = sphi 0, %s89
    %s92 = sphi 0, %s91
    %s106 = sphi 0, %s92
    %s112 = sphi 0, %s114
    %s115 = sphi 0, %s112
    %s116 = sphi 0, %s115
    %s132 = sphi 0, %s116
    %s138 = sphi 0, %s140
    %s141 = sphi 0, %s138
    %s142 = sphi 0, %s141
    %s158 = sphi 0, %s142
    %s164 = sphi 0, %s166
    %s167 = sphi 0, %s164
    %s168 = sphi 0, %s167
    %s184 = sphi 0, %s168
  $region4: #{gat_forward.7} parent=0 // loop_header_branch
    %16 = sbr.rel (%p14) target = $region8
  $region5: #{gat_forward.7} parent=0 // loop_body
    %s18 = ssub.s32 %s13, 1
    %s19 = ssub.s32 %s13, 2
    %s20 = sadd.s32 %s13, 1
    %s21 = ssub.s32 %s13, %s20
    %p22 = scmp.eq.s32.totalorder %s21, 0
    %s24 = sadd.s32 %s23, 1
    %s25 = scalar_select %p22, %s23, %s24
    %p28 = pneg %p22
    %p29 = scmp.eq.s32.totalorder %s13, 1
    %p30 = por %p28, %p29
    %p31 = scmp.ne.s32.totalorder %s23, %s26
    %p32 = scmp.eq.s32.totalorder %s13, 0
    %p33 = por %p31, %p32
    %p34 = scmp.ne.s32.totalorder %s23, %s26
    %p35 = scmp.eq.s32.totalorder %s18, 1
    %p36 = por %p34, %p35
    %p37 = scmp.ne.s32.totalorder %s26, %s27
    %p38 = scmp.eq.s32.totalorder %s18, 0
    %p39 = por %p37, %p38
    %p40 = scmp.ne.s32.totalorder %s26, %s27
    %p41 = scmp.eq.s32.totalorder %s19, 1
    %p42 = por %p40, %p41
    %p44 = scmp.ne.s32.totalorder %s27, %s43
    %p45 = scmp.eq.s32.totalorder %s19, 0
    %p46 = por %p44, %p45
    %s48 = sadd.s32 %s47, 1
    %p51 = scmp.eq.s32.totalorder %s13, 1
    %p52 = scmp.ne.s32.totalorder %s47, %s49
    %p53 = scmp.eq.s32.totalorder %s13, 0
    %p54 = por %p52, %p53
    %p55 = scmp.ne.s32.totalorder %s47, %s49
    %p56 = scmp.eq.s32.totalorder %s18, 1
    %p57 = por %p55, %p56
    %p58 = scmp.ne.s32.totalorder %s49, %s50
    %p59 = scmp.eq.s32.totalorder %s18, 0
    %p60 = por %p58, %p59
    %p61 = scmp.ne.s32.totalorder %s49, %s50
    %p62 = scmp.eq.s32.totalorder %s19, 1
    %p63 = por %p61, %p62
    %p65 = scmp.ne.s32.totalorder %s50, %s64
    %p66 = scmp.eq.s32.totalorder %s19, 0
    %p67 = por %p65, %p66
    %s69 = sadd.s32 %s68, 1
    %p72 = scmp.eq.s32.totalorder %s13, 1
    %p73 = scmp.ne.s32.totalorder %s68, %s70
    %p74 = scmp.eq.s32.totalorder %s13, 0
    %p75 = por %p73, %p74
    %p76 = scmp.ne.s32.totalorder %s68, %s70
    %p77 = scmp.eq.s32.totalorder %s18, 1
    %p78 = por %p76, %p77
    %p79 = scmp.ne.s32.totalorder %s70, %s71
    %p80 = scmp.eq.s32.totalorder %s18, 0
    %p81 = por %p79, %p80
    %p82 = scmp.ne.s32.totalorder %s70, %s71
    %p83 = scmp.eq.s32.totalorder %s19, 1
    %p84 = por %p82, %p83
    %p86 = scmp.ne.s32.totalorder %s71, %s85
    %p87 = scmp.eq.s32.totalorder %s19, 0
    %p88 = por %p86, %p87
    %s90 = sadd.s32 %s89, 1
    %p93 = scmp.eq.s32.totalorder %s13, 1
    %p94 = scmp.ne.s32.totalorder %s89, %s91
    %p95 = scmp.eq.s32.totalorder %s13, 0
    %p96 = por %p94, %p95
    %p97 = scmp.ne.s32.totalorder %s89, %s91
    %p98 = scmp.eq.s32.totalorder %s18, 1
    %p99 = por %p97, %p98
    %p100 = scmp.ne.s32.totalorder %s91, %s92
    %p101 = scmp.eq.s32.totalorder %s18, 0
    %p102 = por %p100, %p101
    %p103 = scmp.ne.s32.totalorder %s91, %s92
    %p104 = scmp.eq.s32.totalorder %s19, 1
    %p105 = por %p103, %p104
    %p107 = scmp.ne.s32.totalorder %s92, %s106
    %p108 = scmp.eq.s32.totalorder %s19, 0
    %p109 = por %p107, %p108
    %s110 = ssub.s32 %s13, %s20
    %p111 = scmp.eq.s32.totalorder %s110, 0
    %s113 = sadd.s32 %s112, 1
    %s114 = scalar_select %p111, %s112, %s113
    %p117 = pneg %p111
    %p118 = scmp.eq.s32.totalorder %s13, 1
    %p119 = por %p117, %p118
    %p120 = scmp.ne.s32.totalorder %s112, %s115
    %p121 = scmp.eq.s32.totalorder %s13, 0
    %p122 = por %p120, %p121
    %p123 = scmp.ne.s32.totalorder %s112, %s115
    %p124 = scmp.eq.s32.totalorder %s18, 1
    %p125 = por %p123, %p124
    %p126 = scmp.ne.s32.totalorder %s115, %s116
    %p127 = scmp.eq.s32.totalorder %s18, 0
    %p128 = por %p126, %p127
    %p129 = scmp.ne.s32.totalorder %s115, %s116
    %p130 = scmp.eq.s32.totalorder %s19, 1
    %p131 = por %p129, %p130
    %p133 = scmp.ne.s32.totalorder %s116, %s132
    %p134 = scmp.eq.s32.totalorder %s19, 0
    %p135 = por %p133, %p134
    %s136 = ssub.s32 %s13, %s20
    %p137 = scmp.eq.s32.totalorder %s136, 0
    %s139 = sadd.s32 %s138, 1
    %s140 = scalar_select %p137, %s138, %s139
    %p143 = pneg %p137
    %p144 = scmp.eq.s32.totalorder %s13, 1
    %p145 = por %p143, %p144
    %p146 = scmp.ne.s32.totalorder %s138, %s141
    %p147 = scmp.eq.s32.totalorder %s13, 0
    %p148 = por %p146, %p147
    %p149 = scmp.ne.s32.totalorder %s138, %s141
    %p150 = scmp.eq.s32.totalorder %s18, 1
    %p151 = por %p149, %p150
    %p152 = scmp.ne.s32.totalorder %s141, %s142
    %p153 = scmp.eq.s32.totalorder %s18, 0
    %p154 = por %p152, %p153
    %p155 = scmp.ne.s32.totalorder %s141, %s142
    %p156 = scmp.eq.s32.totalorder %s19, 1
    %p157 = por %p155, %p156
    %p159 = scmp.ne.s32.totalorder %s142, %s158
    %p160 = scmp.eq.s32.totalorder %s19, 0
    %p161 = por %p159, %p160
    %s162 = ssub.s32 %s13, %s20
    %p163 = scmp.eq.s32.totalorder %s162, 0
    %s165 = sadd.s32 %s164, 1
    %s166 = scalar_select %p163, %s164, %s165
    %p169 = pneg %p163
    %p170 = scmp.eq.s32.totalorder %s13, 1
    %p171 = por %p169, %p170
    %p172 = scmp.ne.s32.totalorder %s164, %s167
    %p173 = scmp.eq.s32.totalorder %s13, 0
    %p174 = por %p172, %p173
    %p175 = scmp.ne.s32.totalorder %s164, %s167
    %p176 = scmp.eq.s32.totalorder %s18, 1
    %p177 = por %p175, %p176
    %p178 = scmp.ne.s32.totalorder %s167, %s168
    %p179 = scmp.eq.s32.totalorder %s18, 0
    %p180 = por %p178, %p179
    %p181 = scmp.ne.s32.totalorder %s167, %s168
    %p182 = scmp.eq.s32.totalorder %s19, 1
    %p183 = por %p181, %p182
    %p185 = scmp.ne.s32.totalorder %s168, %s184
    %p186 = scmp.eq.s32.totalorder %s19, 0
    %p187 = por %p185, %p186
    %p188 = scmp.le.s32.totalorder 1, %s13
    %p189 = scmp.lt.s32.totalorder %s13, 3
    %p190 = pnand %p188, %p189
    %p191 = pneg %p190
    // Predicated region
    $region9: #{gat_forward.7} parent=5 // pred_check
      _
    $region10: #{gat_forward.7} parent=5 // pred_check_branch
      %193 = sbr.rel (%p190) target = $region12
    $region11: #{gat_forward.7} parent=5 // pred_region
      %s194 = ssub.s32 %s13, 1
      // Predicated region
      $region13: #{gat_forward.7} parent=11 // pred_check
        %p195 = pneg %p60
      $region14: #{gat_forward.7} parent=11 // pred_check_branch
        %197 = sbr.rel (%p195) target = $region16
      $region15: #{gat_forward.7} parent=11 // pred_region
        _
      $region16: #{gat_forward.7} parent=11 // pred_fallthru
        _
      // Predicated region
      $region17: #{gat_forward.7} parent=11 // pred_check
        %p198 = pneg %p81
      $region18: #{gat_forward.7} parent=11 // pred_check_branch
        %200 = sbr.rel (%p198) target = $region20
      $region19: #{gat_forward.7} parent=11 // pred_region
        _
      $region20: #{gat_forward.7} parent=11 // pred_fallthru
        _
      // Predicated region
      $region21: #{gat_forward.7} parent=11 // pred_check
        %p201 = pneg %p102
      $region22: #{gat_forward.7} parent=11 // pred_check_branch
        %203 = sbr.rel (%p201) target = $region24
      $region23: #{gat_forward.7} parent=11 // pred_region
        _
      $region24: #{gat_forward.7} parent=11 // pred_fallthru
        _
    $region12: #{gat_forward.7} parent=5 // pred_fallthru
      _
    %p204 = scmp.lt.s32.totalorder %s13, 2
    // Predicated region
    $region25: #{gat_forward.7} parent=5 // pred_check
      %p205 = pneg %p204
    $region26: #{gat_forward.7} parent=5 // pred_check_branch
      %207 = sbr.rel (%p205) target = $region28
    $region27: #{gat_forward.7} parent=5 // pred_region
      // Predicated region
      $region29: #{gat_forward.7} parent=27 // pred_check
        %p208 = pneg %p33
      $region30: #{gat_forward.7} parent=27 // pred_check_branch
        %210 = sbr.rel (%p208) target = $region32
      $region31: #{gat_forward.7} parent=27 // pred_region
        %s211 = smul.u32 8, %s13
        %p212 = scmp.lt.s32.totalorder %s211, 15
        %s213 = scalar_select %p212, %s211, 15
        %s214 = smul.addr %s213, 8
        %s215 = scalar_lea.vmem %s0, %s214
        %s216 = smul.u32 8, %s13
      $region32: #{gat_forward.7} parent=27 // pred_fallthru
        _
    $region28: #{gat_forward.7} parent=5 // pred_fallthru
      _
    %p217 = scmp.le.s32.totalorder 1, %s13
    %p218 = scmp.lt.s32.totalorder %s13, 3
    %p219 = pnand %p217, %p218
    %p220 = pneg %p219
    // Predicated region
    $region33: #{gat_forward.7} parent=5 // pred_check
      _
    $region34: #{gat_forward.7} parent=5 // pred_check_branch
      %222 = sbr.rel (%p219) target = $region36
    $region35: #{gat_forward.7} parent=5 // pred_region
      %s223 = ssub.s32 %s13, 1
      %s224 = smul.u32 8, %s18
      %p225 = scmp.lt.s32.totalorder %s224, 15
      %s226 = scalar_select %p225, %s224, 15
      %s227 = smul.addr %s226, 8
      %s228 = scalar_lea.vmem %s0, %s227
      %p229 = pneg %p39
      %p230 = pneg %p36
      %p231 = pneg %p60
      %p232 = pneg %p57
      %p233 = pneg %p81
      %p234 = pneg %p78
      %p235 = pneg %p102
      %p236 = pneg %p99
      %p237 = pneg %p128
      %p238 = pneg %p125
      %s239 = smul.u32 8, %s18
      %p240 = scmp.lt.s32.totalorder %s239, 15
      %s241 = scalar_select %p240, %s239, 15
      %s242 = smul.addr %s241, 4
      %s243 = scalar_lea.vmem %s4, %s242
      %p244 = pneg %p154
      %p245 = pneg %p151
      %s246 = smul.u32 8, %s18
      %p247 = scmp.lt.s32.totalorder %s246, 15
      %s248 = scalar_select %p247, %s246, 15
      %s249 = smul.addr %s248, 8
      %s250 = scalar_lea.vmem %s5, %s249
      %p251 = pneg %p180
      %p252 = pneg %p177
      %s253 = smul.u32 8, %s18
      %p254 = scmp.lt.s32.totalorder %s253, 15
      %s255 = scalar_select %p254, %s253, 15
      %s256 = smul.addr %s255, 8
      %s257 = scalar_lea.vmem %s6, %s256
      %s258 = smul.u32 8, %s18
      %p259 = scmp.lt.s32.totalorder %s258, 15
      %s260 = scalar_select %p259, %s258, 15
      %s261 = smul.addr %s260, 8
      %s262 = scalar_lea.vmem %s0, %s261
      %s263 = smul.u32 8, %s18
      %s264 = smul.u32 8, %s18
      %p265 = scmp.lt.s32.totalorder %s264, 15
      %s266 = scalar_select %p265, %s264, 15
      %s267 = smul.addr %s266, 4
      %s268 = scalar_lea.vmem %s4, %s267
      %s269 = smul.u32 8, %s18
      %s270 = smul.u32 8, %s18
      %p271 = scmp.lt.s32.totalorder %s270, 15
      %s272 = scalar_select %p271, %s270, 15
      %s273 = smul.addr %s272, 8
      %s274 = scalar_lea.vmem %s5, %s273
      %s275 = smul.u32 8, %s18
      %s276 = smul.u32 8, %s18
      %p277 = scmp.lt.s32.totalorder %s276, 15
      %s278 = scalar_select %p277, %s276, 15
      %s279 = smul.addr %s278, 8
      %s280 = scalar_lea.vmem %s6, %s279
      %s281 = smul.u32 8, %s18
      %v282 = vld [vmem:[%s262] sm:$0xff]
      %v283 = vld [vmem:[%s262 + $0x8] sm:$0xff]
      %v284 = vld [vmem:[%s262 + $0x10] sm:$0xff]
      %v285 = vld [vmem:[%s262 + $0x18] sm:$0xff]
      %v286 = vld [vmem:[%s262 + $0x20] sm:$0xff]
      %v287 = vld [vmem:[%s262 + $0x28] sm:$0xff]
      %v288 = vld [vmem:[%s262 + $0x30] sm:$0xff]
      %v289 = vld [vmem:[%s262 + $0x38] sm:$0xff]
      %v290 = vld [vmem:[%s1] sm:$0xff]
      %v291 = vld [vmem:[%s1 + $0x8] sm:$0xff]
      %v292 = vld [vmem:[%s1 + $0x10] sm:$0xff]
      %v293 = vld [vmem:[%s1 + $0x18] sm:$0xff]
      %v294 = vld [vmem:[%s1 + $0x20] sm:$0xff]
      %v295 = vld [vmem:[%s1 + $0x28] sm:$0xff]
      %v296 = vld [vmem:[%s1 + $0x30] sm:$0xff]
      %v297 = vld [vmem:[%s1 + $0x38] sm:$0xff]
      %vm298 = vcmask 523264
      %v300 = vsel %vm298, %v282, 0
      %v303 = vsel %vm298, %v283, 0
      %v306 = vsel %vm298, %v284, 0
      %v309 = vsel %vm298, %v285, 0
      %v312 = vsel %vm298, %v286, 0
      %v315 = vsel %vm298, %v287, 0
      %v318 = vsel %vm298, %v288, 0
      %v321 = vsel %vm298, %v289, 0
      %323 = vmatprep.subr.mxu0 0.0
      %324 = vmatpush1.msra.mxu0 %v290
      %325 = vmatprep.subr.mxu0 0.0
      %326 = vmatpush1.msra.mxu0 %v291
      %327 = vmatprep.subr.mxu0 0.0
      %328 = vmatpush1.msra.mxu0 %v292
      %329 = vmatprep.subr.mxu0 0.0
      %330 = vmatpush1.msra.mxu0 %v293
      %331 = vmatprep.subr.mxu0 0.0
      %332 = vmatpush1.msra.mxu0 %v294
      %333 = vmatprep.subr.mxu0 0.0
      %334 = vmatpush1.msra.mxu0 %v295
      %335 = vmatprep.subr.mxu0 0.0
      %336 = vmatpush1.msra.mxu0 %v296
      %337 = vmatprep.subr.mxu0 0.0
      %338 = vmatpush1.msra.mxu0 %v297
      %339 = vmatprep.subr.mxu0 0.0
      %340 = vmatpush1.msra.mxu0 0.0
      %341 = vmatprep.subr.mxu0 0.0
      %342 = vmatpush1.msra.mxu0 0.0
      %343 = vmatprep.subr.mxu0 0.0
      %344 = vmatpush1.msra.mxu0 0.0
      %345 = vmatprep.subr.mxu0 0.0
      %346 = vmatpush1.msra.mxu0 0.0
      %347 = vmatprep.subr.mxu0 0.0
      %348 = vmatpush1.msra.mxu0 0.0
      %349 = vmatprep.subr.mxu0 0.0
      %350 = vmatpush1.msra.mxu0 0.0
      %351 = vmatprep.subr.mxu0 0.0
      %352 = vmatpush1.msra.mxu0 0.0
      %353 = vmatprep.subr.mxu0 0.0
      %354 = vmatpush1.msra.mxu0 0.0
      %355 = vmatprep.subr.mxu0 0.0
      %356 = vmatpush1.msra.mxu0 0.0
      %357 = vmatprep.subr.mxu0 0.0
      %358 = vmatpush1.msra.mxu0 0.0
      %359 = vmatprep.subr.mxu0 0.0
      %360 = vmatpush1.msra.mxu0 0.0
      %361 = vmatprep.subr.mxu0 0.0
      %362 = vmatpush1.msra.mxu0 0.0
      %363 = vmatprep.subr.mxu0 0.0
      %364 = vmatpush1.msra.mxu0 0.0
      %365 = vmatprep.subr.mxu0 0.0
      %366 = vmatpush1.msra.mxu0 0.0
      %367 = vmatprep.subr.mxu0 0.0
      %368 = vmatpush1.msra.mxu0 0.0
      %369 = vmatprep.subr.mxu0 0.0
      %370 = vmatpush1.msra.mxu0 0.0
      %371 = vmatprep.subr.mxu0 0.0
      %372 = vmatpush1.msra.mxu0 0.0
      %373 = vmatprep.subr.mxu0 0.0
      %374 = vmatpush1.msra.mxu0 0.0
      %375 = vmatprep.subr.mxu0 0.0
      %376 = vmatpush1.msra.mxu0 0.0
      %377 = vmatprep.subr.mxu0 0.0
      %378 = vmatpush1.msra.mxu0 0.0
      %379 = vmatprep.subr.mxu0 0.0
      %380 = vmatpush1.msra.mxu0 0.0
      %381 = vmatprep.subr.mxu0 0.0
      %382 = vmatpush1.msra.mxu0 0.0
      %383 = vmatprep.subr.mxu0 0.0
      %384 = vmatpush1.msra.mxu0 0.0
      %385 = vmatprep.subr.mxu0 0.0
      %386 = vmatpush1.msra.mxu0 0.0
      %387 = vmatprep.mubr.f32.mxu0 0.0
      %388 = vmatmul.mubr.f32.gmra.mrb[0].mxu0 %v300
      %v389 = vpop.f32.mrb[0].mxu0
      %v390 = vadd.f32 0.0, %v389
      %v391 = vpop.f32.mrb[0].mxu0
      %392 = vmatprep.mubr.f32.mxu0 0.0
      %393 = vmatmul.mubr.f32.gmra.mrb[0].mxu0 %v303
      %v394 = vpop.f32.mrb[0].mxu0
      %v395 = vadd.f32 0.0, %v394
      %v396 = vpop.f32.mrb[0].mxu0
      %397 = vmatprep.mubr.f32.mxu0 0.0
      %398 = vmatmul.mubr.f32.gmra.mrb[0].mxu0 %v306
      %v399 = vpop.f32.mrb[0].mxu0
      %v400 = vadd.f32 0.0, %v399
      %v401 = vpop.f32.mrb[0].mxu0
      %402 = vmatprep.mubr.f32.mxu0 0.0
      %403 = vmatmul.mubr.f32.gmra.mrb[0].mxu0 %v309
      %v404 = vpop.f32.mrb[0].mxu0
      %v405 = vadd.f32 0.0, %v404
      %v406 = vpop.f32.mrb[0].mxu0
      %407 = vmatprep.mubr.f32.mxu0 0.0
      %408 = vmatmul.mubr.f32.gmra.mrb[0].mxu0 %v312
      %v409 = vpop.f32.mrb[0].mxu0
      %v410 = vadd.f32 0.0, %v409
      %v411 = vpop.f32.mrb[0].mxu0
      %412 = vmatprep.mubr.f32.mxu0 0.0
      %413 = vmatmul.mubr.f32.gmra.mrb[0].mxu0 %v315
      %v414 = vpop.f32.mrb[0].mxu0
      %v415 = vadd.f32 0.0, %v414
      %v416 = vpop.f32.mrb[0].mxu0
      %417 = vmatprep.mubr.f32.mxu0 0.0
      %418 = vmatmul.mubr.f32.gmra.mrb[0].mxu0 %v318
      %v419 = vpop.f32.mrb[0].mxu0
      %v420 = vadd.f32 0.0, %v419
      %v421 = vpop.f32.mrb[0].mxu0
      %422 = vmatprep.mubr.f32.mxu0 0.0
      %423 = vmatmul.mubr.f32.gmra.mrb[0].mxu0 %v321
      %v424 = vpop.f32.mrb[0].mxu0
      %v425 = vadd.f32 0.0, %v424
      %v426 = vpop.f32.mrb[0].mxu0
      %427 = vdwg.mxu0
      %v428 = vld [vmem:[%s2] sm:$0xff]
      %vm429 = vcmask 64512
      %v431 = vsel %vm429, %v390, 0
      %v434 = vsel %vm429, %v395, 0
      %v437 = vsel %vm429, %v400, 0
      %v440 = vsel %vm429, %v405, 0
      %v443 = vsel %vm429, %v410, 0
      %v446 = vsel %vm429, %v415, 0
      %v449 = vsel %vm429, %v420, 0
      %v452 = vsel %vm429, %v425, 0
      %454 = vmatprep.subr.mxu0 0.0
      %455 = vmatpush1.msra.mxu0 %v428
      %456 = vmatprep.subr.mxu0 0.0
      %457 = vmatpush1.msra.mxu0 0.0
      %458 = vmatprep.subr.mxu0 0.0
      %459 = vmatpush1.msra.mxu0 0.0
      %460 = vmatprep.subr.mxu0 0.0
      %461 = vmatpush1.msra.mxu0 0.0
      %462 = vmatprep.subr.mxu0 0.0
      %463 = vmatpush1.msra.mxu0 0.0
      %464 = vmatprep.subr.mxu0 0.0
      %465 = vmatpush1.msra.mxu0 0.0
      %466 = vmatprep.subr.mxu0 0.0
      %467 = vmatpush1.msra.mxu0 0.0
      %468 = vmatprep.subr.mxu0 0.0
      %469 = vmatpush1.msra.mxu0 0.0
      %470 = vmatprep.subr.mxu0 0.0
      %471 = vmatpush1.msra.mxu0 0.0
      %472 = vmatprep.subr.mxu0 0.0
      %473 = vmatpush1.msra.mxu0 0.0
      %474 = vmatprep.subr.mxu0 0.0
      %475 = vmatpush1.msra.mxu0 0.0
      %476 = vmatprep.subr.mxu0 0.0
      %477 = vmatpush1.msra.mxu0 0.0
      %478 = vmatprep.subr.mxu0 0.0
      %479 = vmatpush1.msra.mxu0 0.0
      %480 = vmatprep.subr.mxu0 0.0
      %481 = vmatpush1.msra.mxu0 0.0
      %482 = vmatprep.subr.mxu0 0.0
      %483 = vmatpush1.msra.mxu0 0.0
      %484 = vmatprep.subr.mxu0 0.0
      %485 = vmatpush1.msra.mxu0 0.0
      %486 = vmatprep.subr.mxu0 0.0
      %487 = vmatpush1.msra.mxu0 0.0
      %488 = vmatprep.subr.mxu0 0.0
      %489 = vmatpush1.msra.mxu0 0.0
      %490 = vmatprep.subr.mxu0 0.0
      %491 = vmatpush1.msra.mxu0 0.0
      %492 = vmatprep.subr.mxu0 0.0
      %493 = vmatpush1.msra.mxu0 0.0
      %494 = vmatprep.subr.mxu0 0.0
      %495 = vmatpush1.msra.mxu0 0.0
      %496 = vmatprep.subr.mxu0 0.0
      %497 = vmatpush1.msra.mxu0 0.0
      %498 = vmatprep.subr.mxu0 0.0
      %499 = vmatpush1.msra.mxu0 0.0
      %500 = vmatprep.subr.mxu0 0.0
      %501 = vmatpush1.msra.mxu0 0.0
      %502 = vmatprep.subr.mxu0 0.0
      %503 = vmatpush1.msra.mxu0 0.0
      %504 = vmatprep.subr.mxu0 0.0
      %505 = vmatpush1.msra.mxu0 0.0
      %506 = vmatprep.subr.mxu0 0.0
      %507 = vmatpush1.msra.mxu0 0.0
      %508 = vmatprep.subr.mxu0 0.0
      %509 = vmatpush1.msra.mxu0 0.0
      %510 = vmatprep.subr.mxu0 0.0
      %511 = vmatpush1.msra.mxu0 0.0
      %512 = vmatprep.subr.mxu0 0.0
      %513 = vmatpush1.msra.mxu0 0.0
      %514 = vmatprep.subr.mxu0 0.0
      %515 = vmatpush1.msra.mxu0 0.0
      %516 = vmatprep.subr.mxu0 0.0
      %517 = vmatpush1.msra.mxu0 0.0
      %518 = vmatprep.mubr.f32.mxu0 0.0
      %519 = vmatmul.mubr.f32.gmra.mrb[0].mxu0 %v431
      %v520 = vpop.f32.mrb[0].mxu0
      %v521 = vadd.f32 0.0, %v520
      %v522 = vpop.f32.mrb[0].mxu0
      %523 = vmatprep.mubr.f32.mxu0 0.0
      %524 = vmatmul.mubr.f32.gmra.mrb[0].mxu0 %v434
      %v525 = vpop.f32.mrb[0].mxu0
      %v526 = vadd.f32 0.0, %v525
      %v527 = vpop.f32.mrb[0].mxu0
      %528 = vmatprep.mubr.f32.mxu0 0.0
      %529 = vmatmul.mubr.f32.gmra.mrb[0].mxu0 %v437
      %v530 = vpop.f32.mrb[0].mxu0
      %v531 = vadd.f32 0.0, %v530
      %v532 = vpop.f32.mrb[0].mxu0
      %533 = vmatprep.mubr.f32.mxu0 0.0
      %534 = vmatmul.mubr.f32.gmra.mrb[0].mxu0 %v440
      %v535 = vpop.f32.mrb[0].mxu0
      %v536 = vadd.f32 0.0, %v535
      %v537 = vpop.f32.mrb[0].mxu0
      %538 = vmatprep.mubr.f32.mxu0 0.0
      %539 = vmatmul.mubr.f32.gmra.mrb[0].mxu0 %v443
      %v540 = vpop.f32.mrb[0].mxu0
      %v541 = vadd.f32 0.0, %v540
      %v542 = vpop.f32.mrb[0].mxu0
      %543 = vmatprep.mubr.f32.mxu0 0.0
      %544 = vmatmul.mubr.f32.gmra.mrb[0].mxu0 %v446
      %v545 = vpop.f32.mrb[0].mxu0
      %v546 = vadd.f32 0.0, %v545
      %v547 = vpop.f32.mrb[0].mxu0
      %548 = vmatprep.mubr.f32.mxu0 0.0
      %549 = vmatmul.mubr.f32.gmra.mrb[0].mxu0 %v449
      %v550 = vpop.f32.mrb[0].mxu0
      %v551 = vadd.f32 0.0, %v550
      %v552 = vpop.f32.mrb[0].mxu0
      %553 = vmatprep.mubr.f32.mxu0 0.0
      %554 = vmatmul.mubr.f32.gmra.mrb[0].mxu0 %v452
      %v555 = vpop.f32.mrb[0].mxu0
      %v556 = vadd.f32 0.0, %v555
      %v557 = vpop.f32.mrb[0].mxu0
      %558 = vdwg.mxu0
      %vm559 = vcmask 7168
      %560 = vst.msk [vmem:[%s274] sm:$0xff] %vm559, %v521
      %561 = vst.msk [vmem:[%s274 + $0x8] sm:$0xff] %vm559, %v526
      %562 = vst.msk [vmem:[%s274 + $0x10] sm:$0xff] %vm559, %v531
      %563 = vst.msk [vmem:[%s274 + $0x18] sm:$0xff] %vm559, %v536
      %564 = vst.msk [vmem:[%s274 + $0x20] sm:$0xff] %vm559, %v541
      %565 = vst.msk [vmem:[%s274 + $0x28] sm:$0xff] %vm559, %v546
      %566 = vst.msk [vmem:[%s274 + $0x30] sm:$0xff] %vm559, %v551
      %567 = vst.msk [vmem:[%s274 + $0x38] sm:$0xff] %vm559, %v556
      %v568 = vld [vmem:[%s3] sm:$0xff]
      %569 = vmatprep.subr.mxu0 0.0
      %570 = vmatpush1.msra.mxu0 %v568
      %571 = vmatprep.subr.mxu0 0.0
      %572 = vmatpush1.msra.mxu0 0.0
      %573 = vmatprep.subr.mxu0 0.0
      %574 = vmatpush1.msra.mxu0 0.0
      %575 = vmatprep.subr.mxu0 0.0
      %576 = vmatpush1.msra.mxu0 0.0
      %577 = vmatprep.subr.mxu0 0.0
      %578 = vmatpush1.msra.mxu0 0.0
      %579 = vmatprep.subr.mxu0 0.0
      %580 = vmatpush1.msra.mxu0 0.0
      %581 = vmatprep.subr.mxu0 0.0
      %582 = vmatpush1.msra.mxu0 0.0
      %583 = vmatprep.subr.mxu0 0.0
      %584 = vmatpush1.msra.mxu0 0.0
      %585 = vmatprep.subr.mxu0 0.0
      %586 = vmatpush1.msra.mxu0 0.0
      %587 = vmatprep.subr.mxu0 0.0
      %588 = vmatpush1.msra.mxu0 0.0
      %589 = vmatprep.subr.mxu0 0.0
      %590 = vmatpush1.msra.mxu0 0.0
      %591 = vmatprep.subr.mxu0 0.0
      %592 = vmatpush1.msra.mxu0 0.0
      %593 = vmatprep.subr.mxu0 0.0
      %594 = vmatpush1.msra.mxu0 0.0
      %595 = vmatprep.subr.mxu0 0.0
      %596 = vmatpush1.msra.mxu0 0.0
      %597 = vmatprep.subr.mxu0 0.0
      %598 = vmatpush1.msra.mxu0 0.0
      %599 = vmatprep.subr.mxu0 0.0
      %600 = vmatpush1.msra.mxu0 0.0
      %601 = vmatprep.subr.mxu0 0.0
      %602 = vmatpush1.msra.mxu0 0.0
      %603 = vmatprep.subr.mxu0 0.0
      %604 = vmatpush1.msra.mxu0 0.0
      %605 = vmatprep.subr.mxu0 0.0
      %606 = vmatpush1.msra.mxu0 0.0
      %607 = vmatprep.subr.mxu0 0.0
      %608 = vmatpush1.msra.mxu0 0.0
      %609 = vmatprep.subr.mxu0 0.0
      %610 = vmatpush1.msra.mxu0 0.0
      %611 = vmatprep.subr.mxu0 0.0
      %612 = vmatpush1.msra.mxu0 0.0
      %613 = vmatprep.subr.mxu0 0.0
      %614 = vmatpush1.msra.mxu0 0.0
      %615 = vmatprep.subr.mxu0 0.0
      %616 = vmatpush1.msra.mxu0 0.0
      %617 = vmatprep.subr.mxu0 0.0
      %618 = vmatpush1.msra.mxu0 0.0
      %619 = vmatprep.subr.mxu0 0.0
      %620 = vmatpush1.msra.mxu0 0.0
      %621 = vmatprep.subr.mxu0 0.0
      %622 = vmatpush1.msra.mxu0 0.0
      %623 = vmatprep.subr.mxu0 0.0
      %624 = vmatpush1.msra.mxu0 0.0
      %625 = vmatprep.subr.mxu0 0.0
      %626 = vmatpush1.msra.mxu0 0.0
      %627 = vmatprep.subr.mxu0 0.0
      %628 = vmatpush1.msra.mxu0 0.0
      %629 = vmatprep.subr.mxu0 0.0
      %630 = vmatpush1.msra.mxu0 0.0
      %631 = vmatprep.subr.mxu0 0.0
      %632 = vmatpush1.msra.mxu0 0.0
      %633 = vmatprep.mubr.f32.mxu0 0.0
      %634 = vmatmul.mubr.f32.gmra.mrb[0].mxu0 %v431
      %v635 = vpop.f32.mrb[0].mxu0
      %v636 = vadd.f32 0.0, %v635
      %v637 = vpop.f32.mrb[0].mxu0
      %638 = vmatprep.mubr.f32.mxu0 0.0
      %639 = vmatmul.mubr.f32.gmra.mrb[0].mxu0 %v434
      %v640 = vpop.f32.mrb[0].mxu0
      %v641 = vadd.f32 0.0, %v640
      %v642 = vpop.f32.mrb[0].mxu0
      %643 = vmatprep.mubr.f32.mxu0 0.0
      %644 = vmatmul.mubr.f32.gmra.mrb[0].mxu0 %v437
      %v645 = vpop.f32.mrb[0].mxu0
      %v646 = vadd.f32 0.0, %v645
      %v647 = vpop.f32.mrb[0].mxu0
      %648 = vmatprep.mubr.f32.mxu0 0.0
      %649 = vmatmul.mubr.f32.gmra.mrb[0].mxu0 %v440
      %v650 = vpop.f32.mrb[0].mxu0
      %v651 = vadd.f32 0.0, %v650
      %v652 = vpop.f32.mrb[0].mxu0
      %653 = vmatprep.mubr.f32.mxu0 0.0
      %654 = vmatmul.mubr.f32.gmra.mrb[0].mxu0 %v443
      %v655 = vpop.f32.mrb[0].mxu0
      %v656 = vadd.f32 0.0, %v655
      %v657 = vpop.f32.mrb[0].mxu0
      %658 = vmatprep.mubr.f32.mxu0 0.0
      %659 = vmatmul.mubr.f32.gmra.mrb[0].mxu0 %v446
      %v660 = vpop.f32.mrb[0].mxu0
      %v661 = vadd.f32 0.0, %v660
      %v662 = vpop.f32.mrb[0].mxu0
      %663 = vmatprep.mubr.f32.mxu0 0.0
      %664 = vmatmul.mubr.f32.gmra.mrb[0].mxu0 %v449
      %v665 = vpop.f32.mrb[0].mxu0
      %v666 = vadd.f32 0.0, %v665
      %v667 = vpop.f32.mrb[0].mxu0
      %668 = vmatprep.mubr.f32.mxu0 0.0
      %669 = vmatmul.mubr.f32.gmra.mrb[0].mxu0 %v452
      %v670 = vpop.f32.mrb[0].mxu0
      %v671 = vadd.f32 0.0, %v670
      %v672 = vpop.f32.mrb[0].mxu0
      %673 = vdwg.mxu0
      %674 = vst.msk [vmem:[%s280] sm:$0xff] %vm559, %v636
      %675 = vst.msk [vmem:[%s280 + $0x8] sm:$0xff] %vm559, %v641
      %676 = vst.msk [vmem:[%s280 + $0x10] sm:$0xff] %vm559, %v646
      %677 = vst.msk [vmem:[%s280 + $0x18] sm:$0xff] %vm559, %v651
      %678 = vst.msk [vmem:[%s280 + $0x20] sm:$0xff] %vm559, %v656
      %679 = vst.msk [vmem:[%s280 + $0x28] sm:$0xff] %vm559, %v661
      %680 = vst.msk [vmem:[%s280 + $0x30] sm:$0xff] %vm559, %v666
      %681 = vst.msk [vmem:[%s280 + $0x38] sm:$0xff] %vm559, %v671
      %v682 = vpack.c.bf16 %v395, %v390
      %v683 = vpack.c.bf16 %v405, %v400
      %v684 = vpack.c.bf16 %v415, %v410
      %v685 = vpack.c.bf16 %v425, %v420
      %v690 = vunpack.c.l.b16 %v682
      %v691 = vunpack.c.h.b16 %v682
      %v692 = vunpack.c.l.b16 %v683
      %v693 = vunpack.c.h.b16 %v683
      %v694 = vunpack.c.l.b16 %v684
      %v695 = vunpack.c.h.b16 %v684
      %v696 = vunpack.c.l.b16 %v685
      %v697 = vunpack.c.h.b16 %v685
      %v698 = vpack.c.b16 %v690, %v690
      %v699 = vpack.c.b16 %v691, %v691
      %v700 = vpack.c.b16 %v692, %v692
      %v701 = vpack.c.b16 %v693, %v693
      %v702 = vpack.c.b16 %v694, %v694
      %v703 = vpack.c.b16 %v695, %v695
      %v704 = vpack.c.b16 %v696, %v696
      %v705 = vpack.c.b16 %v697, %v697
      %vm714 = vcmask 60416
      %715 = vst.msk [vmem:[%s268] sm:$0xf] %vm714, %v698
      %716 = vst.msk [vmem:[%s268 + $0x4] sm:$0xf] %vm714, %v699
      %717 = vst.msk [vmem:[%s268 + $0x8] sm:$0xf] %vm714, %v700
      %718 = vst.msk [vmem:[%s268 + $0xc] sm:$0xf] %vm714, %v701
      %719 = vst.msk [vmem:[%s268 + $0x10] sm:$0xf] %vm714, %v702
      %720 = vst.msk [vmem:[%s268 + $0x14] sm:$0xf] %vm714, %v703
      %721 = vst.msk [vmem:[%s268 + $0x18] sm:$0xf] %vm714, %v704
      %722 = vst.msk [vmem:[%s268 + $0x1c] sm:$0xf] %vm714, %v705
      %s723 = smul.u32 8, %s18
      %p724 = scmp.lt.s32.totalorder %s723, 15
      %s725 = scalar_select %p724, %s723, 15
      %s726 = smul.addr %s725, 4
      %s727 = scalar_lea.vmem %s4, %s726
      %s728 = smul.u32 8, %s18
      %p729 = scmp.lt.s32.totalorder %s728, 15
      %s730 = scalar_select %p729, %s728, 15
      %s731 = smul.addr %s730, 8
      %s732 = scalar_lea.vmem %s5, %s731
      %s733 = smul.u32 8, %s18
      %p734 = scmp.lt.s32.totalorder %s733, 15
      %s735 = scalar_select %p734, %s733, 15
      %s736 = smul.addr %s735, 8
      %s737 = scalar_lea.vmem %s6, %s736
      // Predicated region
      $region37: #{gat_forward.7} parent=35 // pred_check
        %p738 = pneg %p125
      $region38: #{gat_forward.7} parent=35 // pred_check_branch
        %740 = sbr.rel (%p738) target = $region40
      $region39: #{gat_forward.7} parent=35 // pred_region
        %s741 = smul.u32 8, %s18
      $region40: #{gat_forward.7} parent=35 // pred_fallthru
        _
      // Predicated region
      $region41: #{gat_forward.7} parent=35 // pred_check
        %p742 = pneg %p151
      $region42: #{gat_forward.7} parent=35 // pred_check_branch
        %744 = sbr.rel (%p742) target = $region44
      $region43: #{gat_forward.7} parent=35 // pred_region
        %s745 = smul.u32 8, %s18
      $region44: #{gat_forward.7} parent=35 // pred_fallthru
        _
      // Predicated region
      $region45: #{gat_forward.7} parent=35 // pred_check
        %p746 = pneg %p177
      $region46: #{gat_forward.7} parent=35 // pred_check_branch
        %748 = sbr.rel (%p746) target = $region48
      $region47: #{gat_forward.7} parent=35 // pred_region
        %s749 = smul.u32 8, %s18
      $region48: #{gat_forward.7} parent=35 // pred_fallthru
        _
    $region36: #{gat_forward.7} parent=5 // pred_fallthru
      _
    %p750 = scmp.le.s32.totalorder 2, %s13
    // Predicated region
    $region49: #{gat_forward.7} parent=5 // pred_check
      %p751 = pneg %p750
    $region50: #{gat_forward.7} parent=5 // pred_check_branch
      %753 = sbr.rel (%p751) target = $region52
    $region51: #{gat_forward.7} parent=5 // pred_region
      %s754 = ssub.s32 %s13, 2
      // Predicated region
      $region53: #{gat_forward.7} parent=51 // pred_check
        %p755 = pneg %p131
      $region54: #{gat_forward.7} parent=51 // pred_check_branch
        %757 = sbr.rel (%p755) target = $region56
      $region55: #{gat_forward.7} parent=51 // pred_region
        %s758 = smul.u32 8, %s19
        %p759 = scmp.lt.s32.totalorder %s758, 15
        %s760 = scalar_select %p759, %s758, 15
        %s761 = smul.addr %s760, 4
        %s762 = scalar_lea.vmem %s4, %s761
      $region56: #{gat_forward.7} parent=51 // pred_fallthru
        _
      // Predicated region
      $region57: #{gat_forward.7} parent=51 // pred_check
        %p763 = pneg %p157
      $region58: #{gat_forward.7} parent=51 // pred_check_branch
        %765 = sbr.rel (%p763) target = $region60
      $region59: #{gat_forward.7} parent=51 // pred_region
        %s766 = smul.u32 8, %s19
        %p767 = scmp.lt.s32.totalorder %s766, 15
        %s768 = scalar_select %p767, %s766, 15
        %s769 = smul.addr %s768, 8
        %s770 = scalar_lea.vmem %s5, %s769
      $region60: #{gat_forward.7} parent=51 // pred_fallthru
        _
      // Predicated region
      $region61: #{gat_forward.7} parent=51 // pred_check
        %p771 = pneg %p183
      $region62: #{gat_forward.7} parent=51 // pred_check_branch
        %773 = sbr.rel (%p771) target = $region64
      $region63: #{gat_forward.7} parent=51 // pred_region
        %s774 = smul.u32 8, %s19
        %p775 = scmp.lt.s32.totalorder %s774, 15
        %s776 = scalar_select %p775, %s774, 15
        %s777 = smul.addr %s776, 8
        %s778 = scalar_lea.vmem %s6, %s777
      $region64: #{gat_forward.7} parent=51 // pred_fallthru
        _
    $region52: #{gat_forward.7} parent=5 // pred_fallthru
      _
  $region6: #{gat_forward.7} parent=0 // loop_footer
    %s17 = sadd.s32 1, %s13
  $region7: #{gat_forward.7} parent=0 // loop_footer_branch
    %12 = sbr.rel target = $region3
  $region8: #{gat_forward.7} parent=0 // loop_exit
    _

// kernel: gat_forward.8
$region0: #{gat_forward.8}
  #allocation0 [shape = 'u32[]', space=smem, size = 0x4, offset = 0x4, fixed_abs, tag = 'smem constant byte address 0x4 - core index']
  #allocation1 [shape = 'u32[144,128]{1,0:T(1,128)}', space=vmem, size = 0x12000, scoped, tag = 'internal scratch']
  %s0 = inlined_call_operand.vmem [shape: bf16[128,8], index: 0, kind: input, shape index: {}]
  %s1 = inlined_call_operand.vmem [shape: s8[128,128], index: 1, kind: input, shape index: {}]
  %s2 = inlined_call_operand.vmem [shape: f32[1,128], index: 2, kind: input, shape index: {}]
  %s3 = inlined_call_operand.vmem [shape: f32[128,1], index: 3, kind: input, shape index: {}]
  %s4 = inlined_call_operand.vmem [shape: f32[1,8], index: 4, kind: input, shape index: {}]
  %s5 = inlined_call_operand.vmem [shape: f32[128,8], index: 5, kind: output, shape index: {}]
  %s6 = sld [smem:[#allocation0]]
  $region53: #{gat_forward.8} parent=0
    _
  %s8 = ssub.s32 1, %s6
  %s9 = scalar_select 0, %s8, %s6
  loop: start=0, step=1, limit=4
  $region2: #{gat_forward.8} parent=0 // loop_pre_header
    _
  $region3: #{gat_forward.8} parent=0 // loop_header
    %s11 = sphi 0, %s15
    %p12 = scmp.ge.s32.totalorder %s11, 4
    %s19 = sphi 0, %s19
    %s21 = sphi 0, %s19
    %s22 = sphi 0, %s21
    %s36 = sphi 0, %s22
    %s42 = sphi 0, %s44
    %s45 = sphi 0, %s42
    %s46 = sphi 0, %s45
    %s62 = sphi 0, %s46
    %s66 = sphi 0, %s66
    %s68 = sphi 0, %s66
    %s69 = sphi 0, %s68
    %s83 = sphi 0, %s69
    %s89 = sphi 0, %s91
    %s92 = sphi 0, %s89
    %s93 = sphi 0, %s92
    %s109 = sphi 0, %s93
    %s113 = sphi 0, %s113
    %s115 = sphi 0, %s113
    %s116 = sphi 0, %s115
    %s130 = sphi 0, %s116
    %s136 = sphi 0, %s138
    %s139 = sphi 0, %s136
    %s140 = sphi 0, %s139
    %s156 = sphi 0, %s140
  $region4: #{gat_forward.8} parent=0 // loop_header_branch
    %14 = sbr.rel (%p12) target = $region8
  $region5: #{gat_forward.8} parent=0 // loop_body
    %s16 = ssub.s32 %s11, 1
    %s17 = ssub.s32 %s11, 2
    %s18 = sadd.s32 %s11, 1
    %s20 = sadd.s32 %s19, 1
    %p23 = scmp.eq.s32.totalorder %s11, 1
    %p24 = scmp.ne.s32.totalorder %s19, %s21
    %p25 = scmp.eq.s32.totalorder %s11, 0
    %p26 = por %p24, %p25
    %p27 = scmp.ne.s32.totalorder %s19, %s21
    %p28 = scmp.eq.s32.totalorder %s16, 1
    %p29 = por %p27, %p28
    %p30 = scmp.ne.s32.totalorder %s21, %s22
    %p31 = scmp.eq.s32.totalorder %s16, 0
    %p32 = por %p30, %p31
    %p33 = scmp.ne.s32.totalorder %s21, %s22
    %p34 = scmp.eq.s32.totalorder %s17, 1
    %p35 = por %p33, %p34
    %p37 = scmp.ne.s32.totalorder %s22, %s36
    %p38 = scmp.eq.s32.totalorder %s17, 0
    %p39 = por %p37, %p38
    %s40 = ssub.s32 %s11, %s18
    %p41 = scmp.eq.s32.totalorder %s40, 0
    %s43 = sadd.s32 %s42, 1
    %s44 = scalar_select %p41, %s42, %s43
    %p47 = pneg %p41
    %p48 = scmp.eq.s32.totalorder %s11, 1
    %p49 = por %p47, %p48
    %p50 = scmp.ne.s32.totalorder %s42, %s45
    %p51 = scmp.eq.s32.totalorder %s11, 0
    %p52 = por %p50, %p51
    %p53 = scmp.ne.s32.totalorder %s42, %s45
    %p54 = scmp.eq.s32.totalorder %s16, 1
    %p55 = por %p53, %p54
    %p56 = scmp.ne.s32.totalorder %s45, %s46
    %p57 = scmp.eq.s32.totalorder %s16, 0
    %p58 = por %p56, %p57
    %p59 = scmp.ne.s32.totalorder %s45, %s46
    %p60 = scmp.eq.s32.totalorder %s17, 1
    %p61 = por %p59, %p60
    %p63 = scmp.ne.s32.totalorder %s46, %s62
    %p64 = scmp.eq.s32.totalorder %s17, 0
    %p65 = por %p63, %p64
    %s67 = sadd.s32 %s66, 1
    %p70 = scmp.eq.s32.totalorder %s11, 1
    %p71 = scmp.ne.s32.totalorder %s66, %s68
    %p72 = scmp.eq.s32.totalorder %s11, 0
    %p73 = por %p71, %p72
    %p74 = scmp.ne.s32.totalorder %s66, %s68
    %p75 = scmp.eq.s32.totalorder %s16, 1
    %p76 = por %p74, %p75
    %p77 = scmp.ne.s32.totalorder %s68, %s69
    %p78 = scmp.eq.s32.totalorder %s16, 0
    %p79 = por %p77, %p78
    %p80 = scmp.ne.s32.totalorder %s68, %s69
    %p81 = scmp.eq.s32.totalorder %s17, 1
    %p82 = por %p80, %p81
    %p84 = scmp.ne.s32.totalorder %s69, %s83
    %p85 = scmp.eq.s32.totalorder %s17, 0
    %p86 = por %p84, %p85
    %s87 = ssub.s32 %s11, %s18
    %p88 = scmp.eq.s32.totalorder %s87, 0
    %s90 = sadd.s32 %s89, 1
    %s91 = scalar_select %p88, %s89, %s90
    %p94 = pneg %p88
    %p95 = scmp.eq.s32.totalorder %s11, 1
    %p96 = por %p94, %p95
    %p97 = scmp.ne.s32.totalorder %s89, %s92
    %p98 = scmp.eq.s32.totalorder %s11, 0
    %p99 = por %p97, %p98
    %p100 = scmp.ne.s32.totalorder %s89, %s92
    %p101 = scmp.eq.s32.totalorder %s16, 1
    %p102 = por %p100, %p101
    %p103 = scmp.ne.s32.totalorder %s92, %s93
    %p104 = scmp.eq.s32.totalorder %s16, 0
    %p105 = por %p103, %p104
    %p106 = scmp.ne.s32.totalorder %s92, %s93
    %p107 = scmp.eq.s32.totalorder %s17, 1
    %p108 = por %p106, %p107
    %p110 = scmp.ne.s32.totalorder %s93, %s109
    %p111 = scmp.eq.s32.totalorder %s17, 0
    %p112 = por %p110, %p111
    %s114 = sadd.s32 %s113, 1
    %p117 = scmp.eq.s32.totalorder %s11, 1
    %p118 = scmp.ne.s32.totalorder %s113, %s115
    %p119 = scmp.eq.s32.totalorder %s11, 0
    %p120 = por %p118, %p119
    %p121 = scmp.ne.s32.totalorder %s113, %s115
    %p122 = scmp.eq.s32.totalorder %s16, 1
    %p123 = por %p121, %p122
    %p124 = scmp.ne.s32.totalorder %s115, %s116
    %p125 = scmp.eq.s32.totalorder %s16, 0
    %p126 = por %p124, %p125
    %p127 = scmp.ne.s32.totalorder %s115, %s116
    %p128 = scmp.eq.s32.totalorder %s17, 1
    %p129 = por %p127, %p128
    %p131 = scmp.ne.s32.totalorder %s116, %s130
    %p132 = scmp.eq.s32.totalorder %s17, 0
    %p133 = por %p131, %p132
    %s134 = ssub.s32 %s11, %s18
    %p135 = scmp.eq.s32.totalorder %s134, 0
    %s137 = sadd.s32 %s136, 1
    %s138 = scalar_select %p135, %s136, %s137
    %p141 = pneg %p135
    %p142 = scmp.eq.s32.totalorder %s11, 1
    %p143 = por %p141, %p142
    %p144 = scmp.ne.s32.totalorder %s136, %s139
    %p145 = scmp.eq.s32.totalorder %s11, 0
    %p146 = por %p144, %p145
    %p147 = scmp.ne.s32.totalorder %s136, %s139
    %p148 = scmp.eq.s32.totalorder %s16, 1
    %p149 = por %p147, %p148
    %p150 = scmp.ne.s32.totalorder %s139, %s140
    %p151 = scmp.eq.s32.totalorder %s16, 0
    %p152 = por %p150, %p151
    %p153 = scmp.ne.s32.totalorder %s139, %s140
    %p154 = scmp.eq.s32.totalorder %s17, 1
    %p155 = por %p153, %p154
    %p157 = scmp.ne.s32.totalorder %s140, %s156
    %p158 = scmp.eq.s32.totalorder %s17, 0
    %p159 = por %p157, %p158
    %p160 = scmp.le.s32.totalorder 1, %s11
    %p161 = scmp.lt.s32.totalorder %s11, 3
    %p162 = pnand %p160, %p161
    %p163 = pneg %p162
    // Predicated region
    $region9: #{gat_forward.8} parent=5 // pred_check
      _
    $region10: #{gat_forward.8} parent=5 // pred_check_branch
      %165 = sbr.rel (%p162) target = $region12
    $region11: #{gat_forward.8} parent=5 // pred_region
      %s166 = ssub.s32 %s11, 1
      // Predicated region
      $region13: #{gat_forward.8} parent=11 // pred_check
        %p167 = pneg %p32
      $region14: #{gat_forward.8} parent=11 // pred_check_branch
        %169 = sbr.rel (%p167) target = $region16
      $region15: #{gat_forward.8} parent=11 // pred_region
        _
      $region16: #{gat_forward.8} parent=11 // pred_fallthru
        _
      // Predicated region
      $region17: #{gat_forward.8} parent=11 // pred_check
        %p170 = pneg %p79
      $region18: #{gat_forward.8} parent=11 // pred_check_branch
        %172 = sbr.rel (%p170) target = $region20
      $region19: #{gat_forward.8} parent=11 // pred_region
        _
      $region20: #{gat_forward.8} parent=11 // pred_fallthru
        _
      // Predicated region
      $region21: #{gat_forward.8} parent=11 // pred_check
        %p173 = pneg %p126
      $region22: #{gat_forward.8} parent=11 // pred_check_branch
        %175 = sbr.rel (%p173) target = $region24
      $region23: #{gat_forward.8} parent=11 // pred_region
        _
      $region24: #{gat_forward.8} parent=11 // pred_fallthru
        _
    $region12: #{gat_forward.8} parent=5 // pred_fallthru
      _
    %p176 = scmp.lt.s32.totalorder %s11, 2
    // Predicated region
    $region25: #{gat_forward.8} parent=5 // pred_check
      %p177 = pneg %p176
    $region26: #{gat_forward.8} parent=5 // pred_check_branch
      %179 = sbr.rel (%p177) target = $region28
    $region27: #{gat_forward.8} parent=5 // pred_region
      // Predicated region
      $region29: #{gat_forward.8} parent=27 // pred_check
        %p180 = pneg %p52
      $region30: #{gat_forward.8} parent=27 // pred_check_branch
        %182 = sbr.rel (%p180) target = $region32
      $region31: #{gat_forward.8} parent=27 // pred_region
        %s183 = smul.u32 2, %s11
        %p184 = scmp.lt.s32.totalorder %s183, 3
        %s185 = scalar_select %p184, %s183, 3
        %s186 = smul.addr %s185, 8
        %s187 = scalar_lea.vmem %s1, %s186
        %s188 = smul.u32 2, %s11
      $region32: #{gat_forward.8} parent=27 // pred_fallthru
        _
      // Predicated region
      $region33: #{gat_forward.8} parent=27 // pred_check
        %p189 = pneg %p99
      $region34: #{gat_forward.8} parent=27 // pred_check_branch
        %191 = sbr.rel (%p189) target = $region36
      $region35: #{gat_forward.8} parent=27 // pred_region
        %s192 = smul.u32 8, %s11
        %p193 = scmp.lt.s32.totalorder %s192, 15
        %s194 = scalar_select %p193, %s192, 15
        %s195 = smul.addr %s194, 8
        %s196 = scalar_lea.vmem %s3, %s195
        %s197 = smul.u32 8, %s11
      $region36: #{gat_forward.8} parent=27 // pred_fallthru
        _
    $region28: #{gat_forward.8} parent=5 // pred_fallthru
      _
    %p198 = scmp.le.s32.totalorder 1, %s11
    %p199 = scmp.lt.s32.totalorder %s11, 3
    %p200 = pnand %p198, %p199
    %p201 = pneg %p200
    // Predicated region
    $region37: #{gat_forward.8} parent=5 // pred_check
      _
    $region38: #{gat_forward.8} parent=5 // pred_check_branch
      %203 = sbr.rel (%p200) target = $region40
    $region39: #{gat_forward.8} parent=5 // pred_region
      %s204 = ssub.s32 %s11, 1
      %p205 = pneg %p32
      %p206 = pneg %p29
      %s207 = smul.u32 2, %s16
      %p208 = scmp.lt.s32.totalorder %s207, 3
      %s209 = scalar_select %p208, %s207, 3
      %s210 = smul.addr %s209, 8
      %s211 = scalar_lea.vmem %s1, %s210
      %p212 = pneg %p58
      %p213 = pneg %p55
      %p214 = pneg %p79
      %p215 = pneg %p76
      %s216 = smul.u32 8, %s16
      %p217 = scmp.lt.s32.totalorder %s216, 15
      %s218 = scalar_select %p217, %s216, 15
      %s219 = smul.addr %s218, 8
      %s220 = scalar_lea.vmem %s3, %s219
      %p221 = pneg %p105
      %p222 = pneg %p102
      %p223 = pneg %p126
      %p224 = pneg %p123
      %p225 = pneg %p152
      %p226 = pneg %p149
      %s227 = smul.u32 8, %s16
      %p228 = scmp.lt.s32.totalorder %s227, 15
      %s229 = scalar_select %p228, %s227, 15
      %s230 = smul.addr %s229, 8
      %s231 = scalar_lea.vmem %s5, %s230
      %s232 = smul.u32 2, %s16
      %p233 = scmp.lt.s32.totalorder %s232, 3
      %s234 = scalar_select %p233, %s232, 3
      %s235 = smul.addr %s234, 8
      %s236 = scalar_lea.vmem %s1, %s235
      %s237 = smul.u32 2, %s16
      %s238 = smul.u32 8, %s16
      %p239 = scmp.lt.s32.totalorder %s238, 15
      %s240 = scalar_select %p239, %s238, 15
      %s241 = smul.addr %s240, 8
      %s242 = scalar_lea.vmem %s3, %s241
      %s243 = smul.u32 8, %s16
      %s244 = smul.u32 8, %s16
      %p245 = scmp.lt.s32.totalorder %s244, 15
      %s246 = scalar_select %p245, %s244, 15
      %s247 = smul.addr %s246, 8
      %s248 = scalar_lea.vmem %s5, %s247
      %s249 = smul.u32 8, %s16
      %v250 = vld [vmem:[%s236] sm:$0xff]
      %v251 = vld [vmem:[%s236 + $0x8] sm:$0xff]
      %v252 = vunpack.c.0.s8 %v250
      %v253 = vunpack.c.1.s8 %v250
      %v254 = vunpack.c.2.s8 %v250
      %v255 = vunpack.c.3.s8 %v250
      %v256 = vunpack.c.0.s8 %v251
      %v257 = vunpack.c.1.s8 %v251
      %v258 = vunpack.c.2.s8 %v251
      %v259 = vunpack.c.3.s8 %v251
      %v260 = vcvt.s32.f32 %v252
      %v261 = vcvt.s32.f32 %v253
      %v262 = vcvt.s32.f32 %v254
      %v263 = vcvt.s32.f32 %v255
      %v264 = vcvt.s32.f32 %v256
      %v265 = vcvt.s32.f32 %v257
      %v266 = vcvt.s32.f32 %v258
      %v267 = vcvt.s32.f32 %v259
      %v268 = vsub.f32 1.0, %v260
      %v269 = vsub.f32 1.0, %v261
      %v270 = vsub.f32 1.0, %v262
      %v271 = vsub.f32 1.0, %v263
      %v272 = vsub.f32 1.0, %v264
      %v273 = vsub.f32 1.0, %v265
      %v274 = vsub.f32 1.0, %v266
      %v275 = vsub.f32 1.0, %v267
      %v276 = vmul.f32 %v268, -1e+30
      %v277 = vmul.f32 %v269, -1e+30
      %v278 = vmul.f32 %v270, -1e+30
      %v279 = vmul.f32 %v271, -1e+30
      %v280 = vmul.f32 %v272, -1e+30
      %v281 = vmul.f32 %v273, -1e+30
      %v282 = vmul.f32 %v274, -1e+30
      %v283 = vmul.f32 %v275, -1e+30
      %v284 = vld [vmem:[%s0] sm:$0xf]
      %v285 = vld [vmem:[%s0 + $0x4] sm:$0xf]
      %v286 = vld [vmem:[%s0 + $0x8] sm:$0xf]
      %v287 = vld [vmem:[%s0 + $0xc] sm:$0xf]
      %v288 = vld [vmem:[%s0 + $0x10] sm:$0xf]
      %v289 = vld [vmem:[%s0 + $0x14] sm:$0xf]
      %v290 = vld [vmem:[%s0 + $0x18] sm:$0xf]
      %v291 = vld [vmem:[%s0 + $0x1c] sm:$0xf]
      %v292 = vld [vmem:[%s0 + $0x20] sm:$0xf]
      %v293 = vld [vmem:[%s0 + $0x24] sm:$0xf]
      %v294 = vld [vmem:[%s0 + $0x28] sm:$0xf]
      %v295 = vld [vmem:[%s0 + $0x2c] sm:$0xf]
      %v296 = vld [vmem:[%s0 + $0x30] sm:$0xf]
      %v297 = vld [vmem:[%s0 + $0x34] sm:$0xf]
      %v298 = vld [vmem:[%s0 + $0x38] sm:$0xf]
      %v299 = vld [vmem:[%s0 + $0x3c] sm:$0xf]
      %v300 = vunpack.c.l.bf16 %v284
      %v301 = vunpack.c.l.bf16 %v285
      %v302 = vunpack.c.l.bf16 %v286
      %v303 = vunpack.c.l.bf16 %v287
      %v304 = vunpack.c.l.bf16 %v288
      %v305 = vunpack.c.l.bf16 %v289
      %v306 = vunpack.c.l.bf16 %v290
      %v307 = vunpack.c.l.bf16 %v291
      %v308 = vunpack.c.l.bf16 %v292
      %v309 = vunpack.c.l.bf16 %v293
      %v310 = vunpack.c.l.bf16 %v294
      %v311 = vunpack.c.l.bf16 %v295
      %v312 = vunpack.c.l.bf16 %v296
      %v313 = vunpack.c.l.bf16 %v297
      %v314 = vunpack.c.l.bf16 %v298
      %v315 = vunpack.c.l.bf16 %v299
      %v316 = vld [vmem:[%s242] sm:$0xff]
      %v317 = vld [vmem:[%s242 + $0x8] sm:$0xff]
      %v318 = vld [vmem:[%s242 + $0x10] sm:$0xff]
      %v319 = vld [vmem:[%s242 + $0x18] sm:$0xff]
      %v320 = vld [vmem:[%s242 + $0x20] sm:$0xff]
      %v321 = vld [vmem:[%s242 + $0x28] sm:$0xff]
      %v322 = vld [vmem:[%s242 + $0x30] sm:$0xff]
      %v323 = vld [vmem:[%s242 + $0x38] sm:$0xff]
      %v324 = vld [vmem:[%s2] sm:$0x1]
      %326 = vset.pattern.permute.xlu0 0
      %327 = vperm.xlu0 %326, %v316
      %v328 = vpop.permute.xlu0 %327
      %331 = vset.pattern.permute.xlu0 0
      %332 = vperm.xlu0 %331, %v317
      %v333 = vpop.permute.xlu0 %332
      %336 = vset.pattern.permute.xlu0 0
      %337 = vperm.xlu0 %336, %v318
      %v338 = vpop.permute.xlu0 %337
      %341 = vset.pattern.permute.xlu0 0
      %342 = vperm.xlu0 %341, %v319
      %v343 = vpop.permute.xlu0 %342
      %346 = vset.pattern.permute.xlu0 0
      %347 = vperm.xlu0 %346, %v320
      %v348 = vpop.permute.xlu0 %347
      %351 = vset.pattern.permute.xlu0 0
      %352 = vperm.xlu0 %351, %v321
      %v353 = vpop.permute.xlu0 %352
      %356 = vset.pattern.permute.xlu0 0
      %357 = vperm.xlu0 %356, %v322
      %v358 = vpop.permute.xlu0 %357
      %361 = vset.pattern.permute.xlu0 0
      %362 = vperm.xlu0 %361, %v323
      %v363 = vpop.permute.xlu0 %362
      %v366 = vlaneseq
      %v367 = vshrl.u32 %v366, 7
      %v368 = vsub.s32 0, %v367
      %v369 = vrot.slane %v324, %v368
      %v371 = vadd.f32 %v328, %v369
      %v372 = vadd.f32 %v333, %v369
      %v373 = vadd.f32 %v338, %v369
      %v374 = vadd.f32 %v343, %v369
      %v375 = vadd.f32 %v348, %v369
      %v376 = vadd.f32 %v353, %v369
      %v377 = vadd.f32 %v358, %v369
      %v378 = vadd.f32 %v363, %v369
      %v379 = vmul.f32 %v371, 0.2
      %v380 = vmul.f32 %v372, 0.2
      %v381 = vmul.f32 %v373, 0.2
      %v382 = vmul.f32 %v374, 0.2
      %v383 = vmul.f32 %v375, 0.2
      %v384 = vmul.f32 %v376, 0.2
      %v385 = vmul.f32 %v377, 0.2
      %v386 = vmul.f32 %v378, 0.2
      %v387 = vmax.f32 %v371, %v379
      %v388 = vmax.f32 %v372, %v380
      %v389 = vmax.f32 %v373, %v381
      %v390 = vmax.f32 %v374, %v382
      %v391 = vmax.f32 %v375, %v383
      %v392 = vmax.f32 %v376, %v384
      %v393 = vmax.f32 %v377, %v385
      %v394 = vmax.f32 %v378, %v386
      %v395 = vadd.f32 %v387, %v276
      %v396 = vadd.f32 %v388, %v277
      %v397 = vadd.f32 %v389, %v278
      %v398 = vadd.f32 %v390, %v279
      %v399 = vadd.f32 %v391, %v280
      %v400 = vadd.f32 %v392, %v281
      %v401 = vadd.f32 %v393, %v282
      %v402 = vadd.f32 %v394, %v283
      %403 = vmax.xlane.f32.xlu0 %v395
      %v404 = vpop.xlane.xlu0 %403
      %405 = vmax.xlane.f32.xlu0 %v396
      %v406 = vpop.xlane.xlu0 %405
      %407 = vmax.xlane.f32.xlu0 %v397
      %v408 = vpop.xlane.xlu0 %407
      %409 = vmax.xlane.f32.xlu0 %v398
      %v410 = vpop.xlane.xlu0 %409
      %411 = vmax.xlane.f32.xlu0 %v399
      %v412 = vpop.xlane.xlu0 %411
      %413 = vmax.xlane.f32.xlu0 %v400
      %v414 = vpop.xlane.xlu0 %413
      %415 = vmax.xlane.f32.xlu0 %v401
      %v416 = vpop.xlane.xlu0 %415
      %417 = vmax.xlane.f32.xlu0 %v402
      %v418 = vpop.xlane.xlu0 %417
      %v419 = vsub.f32 %v395, %v404
      %v420 = vsub.f32 %v396, %v406
      %v421 = vsub.f32 %v397, %v408
      %v422 = vsub.f32 %v398, %v410
      %v423 = vsub.f32 %v399, %v412
      %v424 = vsub.f32 %v400, %v414
      %v425 = vsub.f32 %v401, %v416
      %v426 = vsub.f32 %v402, %v418
      %v427 = vmul.f32 %v419, 1.442695
      %v428 = vpow.pop %v427
      %v429 = vmul.f32 %v420, 1.442695
      %v430 = vpow.pop %v429
      %v431 = vmul.f32 %v421, 1.442695
      %v432 = vpow.pop %v431
      %v433 = vmul.f32 %v422, 1.442695
      %v434 = vpow.pop %v433
      %v435 = vmul.f32 %v423, 1.442695
      %v436 = vpow.pop %v435
      %v437 = vmul.f32 %v424, 1.442695
      %v438 = vpow.pop %v437
      %v439 = vmul.f32 %v425, 1.442695
      %v440 = vpow.pop %v439
      %v441 = vmul.f32 %v426, 1.442695
      %v442 = vpow.pop %v441
      %443 = vadd.xlane.f32.xlu0 %v428
      %v444 = vpop.xlane.xlu0 %443
      %445 = vadd.xlane.f32.xlu0 %v430
      %v446 = vpop.xlane.xlu0 %445
      %447 = vadd.xlane.f32.xlu0 %v432
      %v448 = vpop.xlane.xlu0 %447
      %449 = vadd.xlane.f32.xlu0 %v434
      %v450 = vpop.xlane.xlu0 %449
      %451 = vadd.xlane.f32.xlu0 %v436
      %v452 = vpop.xlane.xlu0 %451
      %453 = vadd.xlane.f32.xlu0 %v438
      %v454 = vpop.xlane.xlu0 %453
      %455 = vadd.xlane.f32.xlu0 %v440
      %v456 = vpop.xlane.xlu0 %455
      %457 = vadd.xlane.f32.xlu0 %v442
      %v458 = vpop.xlane.xlu0 %457
      %459 = vmatprep.subr.mxu0 0.0
      %460 = vmatpush1.msra.mxu0 %v300
      %461 = vmatprep.subr.mxu0 0.0
      %462 = vmatpush1.msra.mxu0 %v301
      %463 = vmatprep.subr.mxu0 0.0
      %464 = vmatpush1.msra.mxu0 %v302
      %465 = vmatprep.subr.mxu0 0.0
      %466 = vmatpush1.msra.mxu0 %v303
      %467 = vmatprep.subr.mxu0 0.0
      %468 = vmatpush1.msra.mxu0 %v304
      %469 = vmatprep.subr.mxu0 0.0
      %470 = vmatpush1.msra.mxu0 %v305
      %471 = vmatprep.subr.mxu0 0.0
      %472 = vmatpush1.msra.mxu0 %v306
      %473 = vmatprep.subr.mxu0 0.0
      %474 = vmatpush1.msra.mxu0 %v307
      %475 = vmatprep.subr.mxu0 0.0
      %476 = vmatpush1.msra.mxu0 %v308
      %477 = vmatprep.subr.mxu0 0.0
      %478 = vmatpush1.msra.mxu0 %v309
      %479 = vmatprep.subr.mxu0 0.0
      %480 = vmatpush1.msra.mxu0 %v310
      %481 = vmatprep.subr.mxu0 0.0
      %482 = vmatpush1.msra.mxu0 %v311
      %483 = vmatprep.subr.mxu0 0.0
      %484 = vmatpush1.msra.mxu0 %v312
      %485 = vmatprep.subr.mxu0 0.0
      %486 = vmatpush1.msra.mxu0 %v313
      %487 = vmatprep.subr.mxu0 0.0
      %488 = vmatpush1.msra.mxu0 %v314
      %489 = vmatprep.subr.mxu0 0.0
      %490 = vmatpush1.msra.mxu0 %v315
      %491 = vmatprep.subr.mxu0 0.0
      %492 = vmatpush1.msra.mxu0 0.0
      %493 = vmatprep.subr.mxu0 0.0
      %494 = vmatpush1.msra.mxu0 0.0
      %495 = vmatprep.subr.mxu0 0.0
      %496 = vmatpush1.msra.mxu0 0.0
      %497 = vmatprep.subr.mxu0 0.0
      %498 = vmatpush1.msra.mxu0 0.0
      %499 = vmatprep.subr.mxu0 0.0
      %500 = vmatpush1.msra.mxu0 0.0
      %501 = vmatprep.subr.mxu0 0.0
      %502 = vmatpush1.msra.mxu0 0.0
      %503 = vmatprep.subr.mxu0 0.0
      %504 = vmatpush1.msra.mxu0 0.0
      %505 = vmatprep.subr.mxu0 0.0
      %506 = vmatpush1.msra.mxu0 0.0
      %507 = vmatprep.subr.mxu0 0.0
      %508 = vmatpush1.msra.mxu0 0.0
      %509 = vmatprep.subr.mxu0 0.0
      %510 = vmatpush1.msra.mxu0 0.0
      %511 = vmatprep.subr.mxu0 0.0
      %512 = vmatpush1.msra.mxu0 0.0
      %513 = vmatprep.subr.mxu0 0.0
      %514 = vmatpush1.msra.mxu0 0.0
      %515 = vmatprep.subr.mxu0 0.0
      %516 = vmatpush1.msra.mxu0 0.0
      %517 = vmatprep.subr.mxu0 0.0
      %518 = vmatpush1.msra.mxu0 0.0
      %519 = vmatprep.subr.mxu0 0.0
      %520 = vmatpush1.msra.mxu0 0.0
      %521 = vmatprep.subr.mxu0 0.0
      %522 = vmatpush1.msra.mxu0 0.0
      %523 = vmatprep.mubr.f32.mxu0 0.0
      %524 = vmatmul.mubr.f32.gmra.mrb[0].mxu0 %v428
      %v525 = vpop.f32.mrb[0].mxu0
      %v526 = vadd.f32 0.0, %v525
      %v527 = vpop.f32.mrb[0].mxu0
      %528 = vmatprep.mubr.f32.mxu0 0.0
      %529 = vmatmul.mubr.f32.gmra.mrb[0].mxu0 %v430
      %v530 = vpop.f32.mrb[0].mxu0
      %v531 = vadd.f32 0.0, %v530
      %v532 = vpop.f32.mrb[0].mxu0
      %533 = vmatprep.mubr.f32.mxu0 0.0
      %534 = vmatmul.mubr.f32.gmra.mrb[0].mxu0 %v432
      %v535 = vpop.f32.mrb[0].mxu0
      %v536 = vadd.f32 0.0, %v535
      %v537 = vpop.f32.mrb[0].mxu0
      %538 = vmatprep.mubr.f32.mxu0 0.0
      %539 = vmatmul.mubr.f32.gmra.mrb[0].mxu0 %v434
      %v540 = vpop.f32.mrb[0].mxu0
      %v541 = vadd.f32 0.0, %v540
      %v542 = vpop.f32.mrb[0].mxu0
      %543 = vmatprep.mubr.f32.mxu0 0.0
      %544 = vmatmul.mubr.f32.gmra.mrb[0].mxu0 %v436
      %v545 = vpop.f32.mrb[0].mxu0
      %v546 = vadd.f32 0.0, %v545
      %v547 = vpop.f32.mrb[0].mxu0
      %548 = vmatprep.mubr.f32.mxu0 0.0
      %549 = vmatmul.mubr.f32.gmra.mrb[0].mxu0 %v438
      %v550 = vpop.f32.mrb[0].mxu0
      %v551 = vadd.f32 0.0, %v550
      %v552 = vpop.f32.mrb[0].mxu0
      %553 = vmatprep.mubr.f32.mxu0 0.0
      %554 = vmatmul.mubr.f32.gmra.mrb[0].mxu0 %v440
      %v555 = vpop.f32.mrb[0].mxu0
      %v556 = vadd.f32 0.0, %v555
      %v557 = vpop.f32.mrb[0].mxu0
      %558 = vmatprep.mubr.f32.mxu0 0.0
      %559 = vmatmul.mubr.f32.gmra.mrb[0].mxu0 %v442
      %v560 = vpop.f32.mrb[0].mxu0
      %v561 = vadd.f32 0.0, %v560
      %v562 = vpop.f32.mrb[0].mxu0
      %563 = vdwg.mxu0
      %v564 = vrcp.pop %v444
      %v565 = vmul.f32 1.0, %v564
      %v566 = vrcp.pop %v446
      %v567 = vmul.f32 1.0, %v566
      %v568 = vrcp.pop %v448
      %v569 = vmul.f32 1.0, %v568
      %v570 = vrcp.pop %v450
      %v571 = vmul.f32 1.0, %v570
      %v572 = vrcp.pop %v452
      %v573 = vmul.f32 1.0, %v572
      %v574 = vrcp.pop %v454
      %v575 = vmul.f32 1.0, %v574
      %v576 = vrcp.pop %v456
      %v577 = vmul.f32 1.0, %v576
      %v578 = vrcp.pop %v458
      %v579 = vmul.f32 1.0, %v578
      %v580 = vmul.f32 %v526, %v565
      %v581 = vmul.f32 %v531, %v567
      %v582 = vmul.f32 %v536, %v569
      %v583 = vmul.f32 %v541, %v571
      %v584 = vmul.f32 %v546, %v573
      %v585 = vmul.f32 %v551, %v575
      %v586 = vmul.f32 %v556, %v577
      %v587 = vmul.f32 %v561, %v579
      %v588 = vld [vmem:[%s4] sm:$0x1]
      %v590 = vlaneseq
      %v591 = vshrl.u32 %v590, 7
      %v592 = vsub.s32 0, %v591
      %v593 = vrot.slane %v588, %v592
      %v595 = vadd.f32 %v580, %v593
      %v596 = vadd.f32 %v581, %v593
      %v597 = vadd.f32 %v582, %v593
      %v598 = vadd.f32 %v583, %v593
      %v599 = vadd.f32 %v584, %v593
      %v600 = vadd.f32 %v585, %v593
      %v601 = vadd.f32 %v586, %v593
      %v602 = vadd.f32 %v587, %v593
      %vm603 = vcmask 64512
      %604 = vst.msk [vmem:[%s248] sm:$0xff] %vm603, %v595
      %605 = vst.msk [vmem:[%s248 + $0x8] sm:$0xff] %vm603, %v596
      %606 = vst.msk [vmem:[%s248 + $0x10] sm:$0xff] %vm603, %v597
      %607 = vst.msk [vmem:[%s248 + $0x18] sm:$0xff] %vm603, %v598
      %608 = vst.msk [vmem:[%s248 + $0x20] sm:$0xff] %vm603, %v599
      %609 = vst.msk [vmem:[%s248 + $0x28] sm:$0xff] %vm603, %v600
      %610 = vst.msk [vmem:[%s248 + $0x30] sm:$0xff] %vm603, %v601
      %611 = vst.msk [vmem:[%s248 + $0x38] sm:$0xff] %vm603, %v602
      %s612 = smul.u32 8, %s16
      %p613 = scmp.lt.s32.totalorder %s612, 15
      %s614 = scalar_select %p613, %s612, 15
      %s615 = smul.addr %s614, 8
      %s616 = scalar_lea.vmem %s5, %s615
      // Predicated region
      $region41: #{gat_forward.8} parent=39 // pred_check
        %p617 = pneg %p149
      $region42: #{gat_forward.8} parent=39 // pred_check_branch
        %619 = sbr.rel (%p617) target = $region44
      $region43: #{gat_forward.8} parent=39 // pred_region
        %s620 = smul.u32 8, %s16
      $region44: #{gat_forward.8} parent=39 // pred_fallthru
        _
    $region40: #{gat_forward.8} parent=5 // pred_fallthru
      _
    %p621 = scmp.le.s32.totalorder 2, %s11
    // Predicated region
    $region45: #{gat_forward.8} parent=5 // pred_check
      %p622 = pneg %p621
    $region46: #{gat_forward.8} parent=5 // pred_check_branch
      %624 = sbr.rel (%p622) target = $region48
    $region47: #{gat_forward.8} parent=5 // pred_region
      %s625 = ssub.s32 %s11, 2
      // Predicated region
      $region49: #{gat_forward.8} parent=47 // pred_check
        %p626 = pneg %p155
      $region50: #{gat_forward.8} parent=47 // pred_check_branch
        %628 = sbr.rel (%p626) target = $region52
      $region51: #{gat_forward.8} parent=47 // pred_region
        %s629 = smul.u32 8, %s17
        %p630 = scmp.lt.s32.totalorder %s629, 15
        %s631 = scalar_select %p630, %s629, 15
        %s632 = smul.addr %s631, 8
        %s633 = scalar_lea.vmem %s5, %s632
      $region52: #{gat_forward.8} parent=47 // pred_fallthru
        _
    $region48: #{gat_forward.8} parent=5 // pred_fallthru
      _
  $region6: #{gat_forward.8} parent=0 // loop_footer
    %s15 = sadd.s32 1, %s11
  $region7: #{gat_forward.8} parent=0 // loop_footer_branch
    %10 = sbr.rel target = $region3
  $region8: #{gat_forward.8} parent=0 // loop_exit
    _

// kernel: gat_forward.6
$region0: #{gat_forward.6}
  #allocation0 [shape = 'u32[]', space=smem, size = 0x4, offset = 0x4, fixed_abs, tag = 'smem constant byte address 0x4 - core index']
  #allocation1 [shape = 'u32[144,128]{1,0:T(1,128)}', space=vmem, size = 0x12000, scoped, tag = 'internal scratch']
  %s0 = inlined_call_operand.vmem [shape: bf16[128,64], index: 0, kind: input, shape index: {}]
  %s1 = inlined_call_operand.vmem [shape: s8[128,128], index: 1, kind: input, shape index: {}]
  %s2 = inlined_call_operand.vmem [shape: f32[8,128], index: 2, kind: input, shape index: {}]
  %s3 = inlined_call_operand.vmem [shape: f32[128,8], index: 3, kind: input, shape index: {}]
  %s4 = inlined_call_operand.vmem [shape: f32[1,64], index: 4, kind: input, shape index: {}]
  %s5 = inlined_call_operand.vmem [shape: f32[128,64], index: 5, kind: output, shape index: {}]
  %s6 = sld [smem:[#allocation0]]
  $region53: #{gat_forward.6} parent=0
    _
  %s8 = ssub.s32 1, %s6
  %s9 = scalar_select 0, %s8, %s6
  loop: start=0, step=1, limit=4
  $region2: #{gat_forward.6} parent=0 // loop_pre_header
    _
  $region3: #{gat_forward.6} parent=0 // loop_header
    %s11 = sphi 0, %s15
    %p12 = scmp.ge.s32.totalorder %s11, 4
    %s19 = sphi 0, %s19
    %s21 = sphi 0, %s19
    %s22 = sphi 0, %s21
    %s36 = sphi 0, %s22
    %s42 = sphi 0, %s44
    %s45 = sphi 0, %s42
    %s46 = sphi 0, %s45
    %s62 = sphi 0, %s46
    %s66 = sphi 0, %s66
    %s68 = sphi 0, %s66
    %s69 = sphi 0, %s68
    %s83 = sphi 0, %s69
    %s89 = sphi 0, %s91
    %s92 = sphi 0, %s89
    %s93 = sphi 0, %s92
    %s109 = sphi 0, %s93
    %s113 = sphi 0, %s113
    %s115 = sphi 0, %s113
    %s116 = sphi 0, %s115
    %s130 = sphi 0, %s116
    %s136 = sphi 0, %s138
    %s139 = sphi 0, %s136
    %s140 = sphi 0, %s139
    %s156 = sphi 0, %s140
  $region4: #{gat_forward.6} parent=0 // loop_header_branch
    %14 = sbr.rel (%p12) target = $region8
  $region5: #{gat_forward.6} parent=0 // loop_body
    %s16 = ssub.s32 %s11, 1
    %s17 = ssub.s32 %s11, 2
    %s18 = sadd.s32 %s11, 1
    %s20 = sadd.s32 %s19, 1
    %p23 = scmp.eq.s32.totalorder %s11, 1
    %p24 = scmp.ne.s32.totalorder %s19, %s21
    %p25 = scmp.eq.s32.totalorder %s11, 0
    %p26 = por %p24, %p25
    %p27 = scmp.ne.s32.totalorder %s19, %s21
    %p28 = scmp.eq.s32.totalorder %s16, 1
    %p29 = por %p27, %p28
    %p30 = scmp.ne.s32.totalorder %s21, %s22
    %p31 = scmp.eq.s32.totalorder %s16, 0
    %p32 = por %p30, %p31
    %p33 = scmp.ne.s32.totalorder %s21, %s22
    %p34 = scmp.eq.s32.totalorder %s17, 1
    %p35 = por %p33, %p34
    %p37 = scmp.ne.s32.totalorder %s22, %s36
    %p38 = scmp.eq.s32.totalorder %s17, 0
    %p39 = por %p37, %p38
    %s40 = ssub.s32 %s11, %s18
    %p41 = scmp.eq.s32.totalorder %s40, 0
    %s43 = sadd.s32 %s42, 1
    %s44 = scalar_select %p41, %s42, %s43
    %p47 = pneg %p41
    %p48 = scmp.eq.s32.totalorder %s11, 1
    %p49 = por %p47, %p48
    %p50 = scmp.ne.s32.totalorder %s42, %s45
    %p51 = scmp.eq.s32.totalorder %s11, 0
    %p52 = por %p50, %p51
    %p53 = scmp.ne.s32.totalorder %s42, %s45
    %p54 = scmp.eq.s32.totalorder %s16, 1
    %p55 = por %p53, %p54
    %p56 = scmp.ne.s32.totalorder %s45, %s46
    %p57 = scmp.eq.s32.totalorder %s16, 0
    %p58 = por %p56, %p57
    %p59 = scmp.ne.s32.totalorder %s45, %s46
    %p60 = scmp.eq.s32.totalorder %s17, 1
    %p61 = por %p59, %p60
    %p63 = scmp.ne.s32.totalorder %s46, %s62
    %p64 = scmp.eq.s32.totalorder %s17, 0
    %p65 = por %p63, %p64
    %s67 = sadd.s32 %s66, 1
    %p70 = scmp.eq.s32.totalorder %s11, 1
    %p71 = scmp.ne.s32.totalorder %s66, %s68
    %p72 = scmp.eq.s32.totalorder %s11, 0
    %p73 = por %p71, %p72
    %p74 = scmp.ne.s32.totalorder %s66, %s68
    %p75 = scmp.eq.s32.totalorder %s16, 1
    %p76 = por %p74, %p75
    %p77 = scmp.ne.s32.totalorder %s68, %s69
    %p78 = scmp.eq.s32.totalorder %s16, 0
    %p79 = por %p77, %p78
    %p80 = scmp.ne.s32.totalorder %s68, %s69
    %p81 = scmp.eq.s32.totalorder %s17, 1
    %p82 = por %p80, %p81
    %p84 = scmp.ne.s32.totalorder %s69, %s83
    %p85 = scmp.eq.s32.totalorder %s17, 0
    %p86 = por %p84, %p85
    %s87 = ssub.s32 %s11, %s18
    %p88 = scmp.eq.s32.totalorder %s87, 0
    %s90 = sadd.s32 %s89, 1
    %s91 = scalar_select %p88, %s89, %s90
    %p94 = pneg %p88
    %p95 = scmp.eq.s32.totalorder %s11, 1
    %p96 = por %p94, %p95
    %p97 = scmp.ne.s32.totalorder %s89, %s92
    %p98 = scmp.eq.s32.totalorder %s11, 0
    %p99 = por %p97, %p98
    %p100 = scmp.ne.s32.totalorder %s89, %s92
    %p101 = scmp.eq.s32.totalorder %s16, 1
    %p102 = por %p100, %p101
    %p103 = scmp.ne.s32.totalorder %s92, %s93
    %p104 = scmp.eq.s32.totalorder %s16, 0
    %p105 = por %p103, %p104
    %p106 = scmp.ne.s32.totalorder %s92, %s93
    %p107 = scmp.eq.s32.totalorder %s17, 1
    %p108 = por %p106, %p107
    %p110 = scmp.ne.s32.totalorder %s93, %s109
    %p111 = scmp.eq.s32.totalorder %s17, 0
    %p112 = por %p110, %p111
    %s114 = sadd.s32 %s113, 1
    %p117 = scmp.eq.s32.totalorder %s11, 1
    %p118 = scmp.ne.s32.totalorder %s113, %s115
    %p119 = scmp.eq.s32.totalorder %s11, 0
    %p120 = por %p118, %p119
    %p121 = scmp.ne.s32.totalorder %s113, %s115
    %p122 = scmp.eq.s32.totalorder %s16, 1
    %p123 = por %p121, %p122
    %p124 = scmp.ne.s32.totalorder %s115, %s116
    %p125 = scmp.eq.s32.totalorder %s16, 0
    %p126 = por %p124, %p125
    %p127 = scmp.ne.s32.totalorder %s115, %s116
    %p128 = scmp.eq.s32.totalorder %s17, 1
    %p129 = por %p127, %p128
    %p131 = scmp.ne.s32.totalorder %s116, %s130
    %p132 = scmp.eq.s32.totalorder %s17, 0
    %p133 = por %p131, %p132
    %s134 = ssub.s32 %s11, %s18
    %p135 = scmp.eq.s32.totalorder %s134, 0
    %s137 = sadd.s32 %s136, 1
    %s138 = scalar_select %p135, %s136, %s137
    %p141 = pneg %p135
    %p142 = scmp.eq.s32.totalorder %s11, 1
    %p143 = por %p141, %p142
    %p144 = scmp.ne.s32.totalorder %s136, %s139
    %p145 = scmp.eq.s32.totalorder %s11, 0
    %p146 = por %p144, %p145
    %p147 = scmp.ne.s32.totalorder %s136, %s139
    %p148 = scmp.eq.s32.totalorder %s16, 1
    %p149 = por %p147, %p148
    %p150 = scmp.ne.s32.totalorder %s139, %s140
    %p151 = scmp.eq.s32.totalorder %s16, 0
    %p152 = por %p150, %p151
    %p153 = scmp.ne.s32.totalorder %s139, %s140
    %p154 = scmp.eq.s32.totalorder %s17, 1
    %p155 = por %p153, %p154
    %p157 = scmp.ne.s32.totalorder %s140, %s156
    %p158 = scmp.eq.s32.totalorder %s17, 0
    %p159 = por %p157, %p158
    %p160 = scmp.le.s32.totalorder 1, %s11
    %p161 = scmp.lt.s32.totalorder %s11, 3
    %p162 = pnand %p160, %p161
    %p163 = pneg %p162
    // Predicated region
    $region9: #{gat_forward.6} parent=5 // pred_check
      _
    $region10: #{gat_forward.6} parent=5 // pred_check_branch
      %165 = sbr.rel (%p162) target = $region12
    $region11: #{gat_forward.6} parent=5 // pred_region
      %s166 = ssub.s32 %s11, 1
      // Predicated region
      $region13: #{gat_forward.6} parent=11 // pred_check
        %p167 = pneg %p32
      $region14: #{gat_forward.6} parent=11 // pred_check_branch
        %169 = sbr.rel (%p167) target = $region16
      $region15: #{gat_forward.6} parent=11 // pred_region
        _
      $region16: #{gat_forward.6} parent=11 // pred_fallthru
        _
      // Predicated region
      $region17: #{gat_forward.6} parent=11 // pred_check
        %p170 = pneg %p79
      $region18: #{gat_forward.6} parent=11 // pred_check_branch
        %172 = sbr.rel (%p170) target = $region20
      $region19: #{gat_forward.6} parent=11 // pred_region
        _
      $region20: #{gat_forward.6} parent=11 // pred_fallthru
        _
      // Predicated region
      $region21: #{gat_forward.6} parent=11 // pred_check
        %p173 = pneg %p126
      $region22: #{gat_forward.6} parent=11 // pred_check_branch
        %175 = sbr.rel (%p173) target = $region24
      $region23: #{gat_forward.6} parent=11 // pred_region
        _
      $region24: #{gat_forward.6} parent=11 // pred_fallthru
        _
    $region12: #{gat_forward.6} parent=5 // pred_fallthru
      _
    %p176 = scmp.lt.s32.totalorder %s11, 2
    // Predicated region
    $region25: #{gat_forward.6} parent=5 // pred_check
      %p177 = pneg %p176
    $region26: #{gat_forward.6} parent=5 // pred_check_branch
      %179 = sbr.rel (%p177) target = $region28
    $region27: #{gat_forward.6} parent=5 // pred_region
      // Predicated region
      $region29: #{gat_forward.6} parent=27 // pred_check
        %p180 = pneg %p52
      $region30: #{gat_forward.6} parent=27 // pred_check_branch
        %182 = sbr.rel (%p180) target = $region32
      $region31: #{gat_forward.6} parent=27 // pred_region
        %s183 = smul.u32 2, %s11
        %p184 = scmp.lt.s32.totalorder %s183, 3
        %s185 = scalar_select %p184, %s183, 3
        %s186 = smul.addr %s185, 8
        %s187 = scalar_lea.vmem %s1, %s186
        %s188 = smul.u32 2, %s11
      $region32: #{gat_forward.6} parent=27 // pred_fallthru
        _
      // Predicated region
      $region33: #{gat_forward.6} parent=27 // pred_check
        %p189 = pneg %p99
      $region34: #{gat_forward.6} parent=27 // pred_check_branch
        %191 = sbr.rel (%p189) target = $region36
      $region35: #{gat_forward.6} parent=27 // pred_region
        %s192 = smul.u32 8, %s11
        %p193 = scmp.lt.s32.totalorder %s192, 15
        %s194 = scalar_select %p193, %s192, 15
        %s195 = smul.addr %s194, 8
        %s196 = scalar_lea.vmem %s3, %s195
        %s197 = smul.u32 8, %s11
      $region36: #{gat_forward.6} parent=27 // pred_fallthru
        _
    $region28: #{gat_forward.6} parent=5 // pred_fallthru
      _
    %p198 = scmp.le.s32.totalorder 1, %s11
    %p199 = scmp.lt.s32.totalorder %s11, 3
    %p200 = pnand %p198, %p199
    %p201 = pneg %p200
    // Predicated region
    $region37: #{gat_forward.6} parent=5 // pred_check
      _
    $region38: #{gat_forward.6} parent=5 // pred_check_branch
      %203 = sbr.rel (%p200) target = $region40
    $region39: #{gat_forward.6} parent=5 // pred_region
      %s204 = ssub.s32 %s11, 1
      %p205 = pneg %p32
      %p206 = pneg %p29
      %s207 = smul.u32 2, %s16
      %p208 = scmp.lt.s32.totalorder %s207, 3
      %s209 = scalar_select %p208, %s207, 3
      %s210 = smul.addr %s209, 8
      %s211 = scalar_lea.vmem %s1, %s210
      %p212 = pneg %p58
      %p213 = pneg %p55
      %p214 = pneg %p79
      %p215 = pneg %p76
      %s216 = smul.u32 8, %s16
      %p217 = scmp.lt.s32.totalorder %s216, 15
      %s218 = scalar_select %p217, %s216, 15
      %s219 = smul.addr %s218, 8
      %s220 = scalar_lea.vmem %s3, %s219
      %p221 = pneg %p105
      %p222 = pneg %p102
      %p223 = pneg %p126
      %p224 = pneg %p123
      %p225 = pneg %p152
      %p226 = pneg %p149
      %s227 = smul.u32 8, %s16
      %p228 = scmp.lt.s32.totalorder %s227, 15
      %s229 = scalar_select %p228, %s227, 15
      %s230 = smul.addr %s229, 8
      %s231 = scalar_lea.vmem %s5, %s230
      %s232 = smul.u32 2, %s16
      %p233 = scmp.lt.s32.totalorder %s232, 3
      %s234 = scalar_select %p233, %s232, 3
      %s235 = smul.addr %s234, 8
      %s236 = scalar_lea.vmem %s1, %s235
      %s237 = smul.u32 2, %s16
      %s238 = smul.u32 8, %s16
      %p239 = scmp.lt.s32.totalorder %s238, 15
      %s240 = scalar_select %p239, %s238, 15
      %s241 = smul.addr %s240, 8
      %s242 = scalar_lea.vmem %s3, %s241
      %s243 = smul.u32 8, %s16
      %s244 = smul.u32 8, %s16
      %p245 = scmp.lt.s32.totalorder %s244, 15
      %s246 = scalar_select %p245, %s244, 15
      %s247 = smul.addr %s246, 8
      %s248 = scalar_lea.vmem %s5, %s247
      %s249 = smul.u32 8, %s16
      %v250 = vld [vmem:[%s236] sm:$0xff]
      %v251 = vld [vmem:[%s236 + $0x8] sm:$0xff]
      %v252 = vunpack.c.0.s8 %v250
      %v253 = vunpack.c.1.s8 %v250
      %v254 = vunpack.c.2.s8 %v250
      %v255 = vunpack.c.3.s8 %v250
      %v256 = vunpack.c.0.s8 %v251
      %v257 = vunpack.c.1.s8 %v251
      %v258 = vunpack.c.2.s8 %v251
      %v259 = vunpack.c.3.s8 %v251
      %v260 = vcvt.s32.f32 %v252
      %v261 = vcvt.s32.f32 %v253
      %v262 = vcvt.s32.f32 %v254
      %v263 = vcvt.s32.f32 %v255
      %v264 = vcvt.s32.f32 %v256
      %v265 = vcvt.s32.f32 %v257
      %v266 = vcvt.s32.f32 %v258
      %v267 = vcvt.s32.f32 %v259
      %v268 = vsub.f32 1.0, %v260
      %v269 = vsub.f32 1.0, %v261
      %v270 = vsub.f32 1.0, %v262
      %v271 = vsub.f32 1.0, %v263
      %v272 = vsub.f32 1.0, %v264
      %v273 = vsub.f32 1.0, %v265
      %v274 = vsub.f32 1.0, %v266
      %v275 = vsub.f32 1.0, %v267
      %v276 = vmul.f32 %v268, -1e+30
      %v277 = vmul.f32 %v269, -1e+30
      %v278 = vmul.f32 %v270, -1e+30
      %v279 = vmul.f32 %v271, -1e+30
      %v280 = vmul.f32 %v272, -1e+30
      %v281 = vmul.f32 %v273, -1e+30
      %v282 = vmul.f32 %v274, -1e+30
      %v283 = vmul.f32 %v275, -1e+30
      %v284 = vld [vmem:[%s0] sm:$0xf]
      %v285 = vld [vmem:[%s0 + $0x4] sm:$0xf]
      %v286 = vld [vmem:[%s0 + $0x8] sm:$0xf]
      %v287 = vld [vmem:[%s0 + $0xc] sm:$0xf]
      %v288 = vld [vmem:[%s0 + $0x10] sm:$0xf]
      %v289 = vld [vmem:[%s0 + $0x14] sm:$0xf]
      %v290 = vld [vmem:[%s0 + $0x18] sm:$0xf]
      %v291 = vld [vmem:[%s0 + $0x1c] sm:$0xf]
      %v292 = vld [vmem:[%s0 + $0x20] sm:$0xf]
      %v293 = vld [vmem:[%s0 + $0x24] sm:$0xf]
      %v294 = vld [vmem:[%s0 + $0x28] sm:$0xf]
      %v295 = vld [vmem:[%s0 + $0x2c] sm:$0xf]
      %v296 = vld [vmem:[%s0 + $0x30] sm:$0xf]
      %v297 = vld [vmem:[%s0 + $0x34] sm:$0xf]
      %v298 = vld [vmem:[%s0 + $0x38] sm:$0xf]
      %v299 = vld [vmem:[%s0 + $0x3c] sm:$0xf]
      %v300 = vunpack.c.l.bf16 %v284
      %v301 = vunpack.c.l.bf16 %v285
      %v302 = vunpack.c.l.bf16 %v286
      %v303 = vunpack.c.l.bf16 %v287
      %v304 = vunpack.c.l.bf16 %v288
      %v305 = vunpack.c.l.bf16 %v289
      %v306 = vunpack.c.l.bf16 %v290
      %v307 = vunpack.c.l.bf16 %v291
      %v308 = vunpack.c.l.bf16 %v292
      %v309 = vunpack.c.l.bf16 %v293
      %v310 = vunpack.c.l.bf16 %v294
      %v311 = vunpack.c.l.bf16 %v295
      %v312 = vunpack.c.l.bf16 %v296
      %v313 = vunpack.c.l.bf16 %v297
      %v314 = vunpack.c.l.bf16 %v298
      %v315 = vunpack.c.l.bf16 %v299
      %v316 = vld [vmem:[%s242] sm:$0xff]
      %v317 = vld [vmem:[%s242 + $0x8] sm:$0xff]
      %v318 = vld [vmem:[%s242 + $0x10] sm:$0xff]
      %v319 = vld [vmem:[%s242 + $0x18] sm:$0xff]
      %v320 = vld [vmem:[%s242 + $0x20] sm:$0xff]
      %v321 = vld [vmem:[%s242 + $0x28] sm:$0xff]
      %v322 = vld [vmem:[%s242 + $0x30] sm:$0xff]
      %v323 = vld [vmem:[%s242 + $0x38] sm:$0xff]
      %v324 = vld [vmem:[%s2] sm:$0xff]
      %326 = vset.pattern.permute.xlu0 0
      %327 = vperm.xlu0 %326, %v316
      %v328 = vpop.permute.xlu0 %327
      %331 = vset.pattern.permute.xlu0 0
      %332 = vperm.xlu0 %331, %v317
      %v333 = vpop.permute.xlu0 %332
      %336 = vset.pattern.permute.xlu0 0
      %337 = vperm.xlu0 %336, %v318
      %v338 = vpop.permute.xlu0 %337
      %341 = vset.pattern.permute.xlu0 0
      %342 = vperm.xlu0 %341, %v319
      %v343 = vpop.permute.xlu0 %342
      %346 = vset.pattern.permute.xlu0 0
      %347 = vperm.xlu0 %346, %v320
      %v348 = vpop.permute.xlu0 %347
      %351 = vset.pattern.permute.xlu0 0
      %352 = vperm.xlu0 %351, %v321
      %v353 = vpop.permute.xlu0 %352
      %356 = vset.pattern.permute.xlu0 0
      %357 = vperm.xlu0 %356, %v322
      %v358 = vpop.permute.xlu0 %357
      %361 = vset.pattern.permute.xlu0 0
      %362 = vperm.xlu0 %361, %v323
      %v363 = vpop.permute.xlu0 %362
      %v365 = vlaneseq
      %v366 = vshrl.u32 %v365, 7
      %v367 = vsub.s32 0, %v366
      %v368 = vrot.slane %v324, %v367
      %v369 = vadd.f32 %v328, %v368
      %v370 = vadd.f32 %v333, %v368
      %v371 = vadd.f32 %v338, %v368
      %v372 = vadd.f32 %v343, %v368
      %v373 = vadd.f32 %v348, %v368
      %v374 = vadd.f32 %v353, %v368
      %v375 = vadd.f32 %v358, %v368
      %v376 = vadd.f32 %v363, %v368
      %v377 = vmul.f32 %v369, 0.2
      %v378 = vmul.f32 %v370, 0.2
      %v379 = vmul.f32 %v371, 0.2
      %v380 = vmul.f32 %v372, 0.2
      %v381 = vmul.f32 %v373, 0.2
      %v382 = vmul.f32 %v374, 0.2
      %v383 = vmul.f32 %v375, 0.2
      %v384 = vmul.f32 %v376, 0.2
      %v385 = vmax.f32 %v369, %v377
      %v386 = vmax.f32 %v370, %v378
      %v387 = vmax.f32 %v371, %v379
      %v388 = vmax.f32 %v372, %v380
      %v389 = vmax.f32 %v373, %v381
      %v390 = vmax.f32 %v374, %v382
      %v391 = vmax.f32 %v375, %v383
      %v392 = vmax.f32 %v376, %v384
      %v393 = vadd.f32 %v385, %v276
      %v394 = vadd.f32 %v386, %v277
      %v395 = vadd.f32 %v387, %v278
      %v396 = vadd.f32 %v388, %v279
      %v397 = vadd.f32 %v389, %v280
      %v398 = vadd.f32 %v390, %v281
      %v399 = vadd.f32 %v391, %v282
      %v400 = vadd.f32 %v392, %v283
      %401 = vmax.xlane.f32.xlu0 %v393
      %v402 = vpop.xlane.xlu0 %401
      %403 = vmax.xlane.f32.xlu0 %v394
      %v404 = vpop.xlane.xlu0 %403
      %405 = vmax.xlane.f32.xlu0 %v395
      %v406 = vpop.xlane.xlu0 %405
      %407 = vmax.xlane.f32.xlu0 %v396
      %v408 = vpop.xlane.xlu0 %407
      %409 = vmax.xlane.f32.xlu0 %v397
      %v410 = vpop.xlane.xlu0 %409
      %411 = vmax.xlane.f32.xlu0 %v398
      %v412 = vpop.xlane.xlu0 %411
      %413 = vmax.xlane.f32.xlu0 %v399
      %v414 = vpop.xlane.xlu0 %413
      %415 = vmax.xlane.f32.xlu0 %v400
      %v416 = vpop.xlane.xlu0 %415
      %v417 = vsub.f32 %v393, %v402
      %v418 = vsub.f32 %v394, %v404
      %v419 = vsub.f32 %v395, %v406
      %v420 = vsub.f32 %v396, %v408
      %v421 = vsub.f32 %v397, %v410
      %v422 = vsub.f32 %v398, %v412
      %v423 = vsub.f32 %v399, %v414
      %v424 = vsub.f32 %v400, %v416
      %v425 = vmul.f32 %v417, 1.442695
      %v426 = vpow.pop %v425
      %v427 = vmul.f32 %v418, 1.442695
      %v428 = vpow.pop %v427
      %v429 = vmul.f32 %v419, 1.442695
      %v430 = vpow.pop %v429
      %v431 = vmul.f32 %v420, 1.442695
      %v432 = vpow.pop %v431
      %v433 = vmul.f32 %v421, 1.442695
      %v434 = vpow.pop %v433
      %v435 = vmul.f32 %v422, 1.442695
      %v436 = vpow.pop %v435
      %v437 = vmul.f32 %v423, 1.442695
      %v438 = vpow.pop %v437
      %v439 = vmul.f32 %v424, 1.442695
      %v440 = vpow.pop %v439
      %441 = vadd.xlane.f32.xlu0 %v426
      %v442 = vpop.xlane.xlu0 %441
      %443 = vadd.xlane.f32.xlu0 %v428
      %v444 = vpop.xlane.xlu0 %443
      %445 = vadd.xlane.f32.xlu0 %v430
      %v446 = vpop.xlane.xlu0 %445
      %447 = vadd.xlane.f32.xlu0 %v432
      %v448 = vpop.xlane.xlu0 %447
      %449 = vadd.xlane.f32.xlu0 %v434
      %v450 = vpop.xlane.xlu0 %449
      %451 = vadd.xlane.f32.xlu0 %v436
      %v452 = vpop.xlane.xlu0 %451
      %453 = vadd.xlane.f32.xlu0 %v438
      %v454 = vpop.xlane.xlu0 %453
      %455 = vadd.xlane.f32.xlu0 %v440
      %v456 = vpop.xlane.xlu0 %455
      %457 = vmatprep.subr.mxu0 0.0
      %458 = vmatpush1.msra.mxu0 %v300
      %459 = vmatprep.subr.mxu0 0.0
      %460 = vmatpush1.msra.mxu0 %v301
      %461 = vmatprep.subr.mxu0 0.0
      %462 = vmatpush1.msra.mxu0 %v302
      %463 = vmatprep.subr.mxu0 0.0
      %464 = vmatpush1.msra.mxu0 %v303
      %465 = vmatprep.subr.mxu0 0.0
      %466 = vmatpush1.msra.mxu0 %v304
      %467 = vmatprep.subr.mxu0 0.0
      %468 = vmatpush1.msra.mxu0 %v305
      %469 = vmatprep.subr.mxu0 0.0
      %470 = vmatpush1.msra.mxu0 %v306
      %471 = vmatprep.subr.mxu0 0.0
      %472 = vmatpush1.msra.mxu0 %v307
      %473 = vmatprep.subr.mxu0 0.0
      %474 = vmatpush1.msra.mxu0 %v308
      %475 = vmatprep.subr.mxu0 0.0
      %476 = vmatpush1.msra.mxu0 %v309
      %477 = vmatprep.subr.mxu0 0.0
      %478 = vmatpush1.msra.mxu0 %v310
      %479 = vmatprep.subr.mxu0 0.0
      %480 = vmatpush1.msra.mxu0 %v311
      %481 = vmatprep.subr.mxu0 0.0
      %482 = vmatpush1.msra.mxu0 %v312
      %483 = vmatprep.subr.mxu0 0.0
      %484 = vmatpush1.msra.mxu0 %v313
      %485 = vmatprep.subr.mxu0 0.0
      %486 = vmatpush1.msra.mxu0 %v314
      %487 = vmatprep.subr.mxu0 0.0
      %488 = vmatpush1.msra.mxu0 %v315
      %489 = vmatprep.subr.mxu0 0.0
      %490 = vmatpush1.msra.mxu0 0.0
      %491 = vmatprep.subr.mxu0 0.0
      %492 = vmatpush1.msra.mxu0 0.0
      %493 = vmatprep.subr.mxu0 0.0
      %494 = vmatpush1.msra.mxu0 0.0
      %495 = vmatprep.subr.mxu0 0.0
      %496 = vmatpush1.msra.mxu0 0.0
      %497 = vmatprep.subr.mxu0 0.0
      %498 = vmatpush1.msra.mxu0 0.0
      %499 = vmatprep.subr.mxu0 0.0
      %500 = vmatpush1.msra.mxu0 0.0
      %501 = vmatprep.subr.mxu0 0.0
      %502 = vmatpush1.msra.mxu0 0.0
      %503 = vmatprep.subr.mxu0 0.0
      %504 = vmatpush1.msra.mxu0 0.0
      %505 = vmatprep.subr.mxu0 0.0
      %506 = vmatpush1.msra.mxu0 0.0
      %507 = vmatprep.subr.mxu0 0.0
      %508 = vmatpush1.msra.mxu0 0.0
      %509 = vmatprep.subr.mxu0 0.0
      %510 = vmatpush1.msra.mxu0 0.0
      %511 = vmatprep.subr.mxu0 0.0
      %512 = vmatpush1.msra.mxu0 0.0
      %513 = vmatprep.subr.mxu0 0.0
      %514 = vmatpush1.msra.mxu0 0.0
      %515 = vmatprep.subr.mxu0 0.0
      %516 = vmatpush1.msra.mxu0 0.0
      %517 = vmatprep.subr.mxu0 0.0
      %518 = vmatpush1.msra.mxu0 0.0
      %519 = vmatprep.subr.mxu0 0.0
      %520 = vmatpush1.msra.mxu0 0.0
      %521 = vmatprep.mubr.f32.mxu0 0.0
      %522 = vmatmul.mubr.f32.gmra.mrb[0].mxu0 %v426
      %v523 = vpop.f32.mrb[0].mxu0
      %v524 = vadd.f32 0.0, %v523
      %v525 = vpop.f32.mrb[0].mxu0
      %526 = vmatprep.mubr.f32.mxu0 0.0
      %527 = vmatmul.mubr.f32.gmra.mrb[0].mxu0 %v428
      %v528 = vpop.f32.mrb[0].mxu0
      %v529 = vadd.f32 0.0, %v528
      %v530 = vpop.f32.mrb[0].mxu0
      %531 = vmatprep.mubr.f32.mxu0 0.0
      %532 = vmatmul.mubr.f32.gmra.mrb[0].mxu0 %v430
      %v533 = vpop.f32.mrb[0].mxu0
      %v534 = vadd.f32 0.0, %v533
      %v535 = vpop.f32.mrb[0].mxu0
      %536 = vmatprep.mubr.f32.mxu0 0.0
      %537 = vmatmul.mubr.f32.gmra.mrb[0].mxu0 %v432
      %v538 = vpop.f32.mrb[0].mxu0
      %v539 = vadd.f32 0.0, %v538
      %v540 = vpop.f32.mrb[0].mxu0
      %541 = vmatprep.mubr.f32.mxu0 0.0
      %542 = vmatmul.mubr.f32.gmra.mrb[0].mxu0 %v434
      %v543 = vpop.f32.mrb[0].mxu0
      %v544 = vadd.f32 0.0, %v543
      %v545 = vpop.f32.mrb[0].mxu0
      %546 = vmatprep.mubr.f32.mxu0 0.0
      %547 = vmatmul.mubr.f32.gmra.mrb[0].mxu0 %v436
      %v548 = vpop.f32.mrb[0].mxu0
      %v549 = vadd.f32 0.0, %v548
      %v550 = vpop.f32.mrb[0].mxu0
      %551 = vmatprep.mubr.f32.mxu0 0.0
      %552 = vmatmul.mubr.f32.gmra.mrb[0].mxu0 %v438
      %v553 = vpop.f32.mrb[0].mxu0
      %v554 = vadd.f32 0.0, %v553
      %v555 = vpop.f32.mrb[0].mxu0
      %556 = vmatprep.mubr.f32.mxu0 0.0
      %557 = vmatmul.mubr.f32.gmra.mrb[0].mxu0 %v440
      %v558 = vpop.f32.mrb[0].mxu0
      %v559 = vadd.f32 0.0, %v558
      %v560 = vpop.f32.mrb[0].mxu0
      %561 = vdwg.mxu0
      %v562 = vrcp.pop %v442
      %v563 = vmul.f32 1.0, %v562
      %v564 = vrcp.pop %v444
      %v565 = vmul.f32 1.0, %v564
      %v566 = vrcp.pop %v446
      %v567 = vmul.f32 1.0, %v566
      %v568 = vrcp.pop %v448
      %v569 = vmul.f32 1.0, %v568
      %v570 = vrcp.pop %v450
      %v571 = vmul.f32 1.0, %v570
      %v572 = vrcp.pop %v452
      %v573 = vmul.f32 1.0, %v572
      %v574 = vrcp.pop %v454
      %v575 = vmul.f32 1.0, %v574
      %v576 = vrcp.pop %v456
      %v577 = vmul.f32 1.0, %v576
      %v578 = vmul.f32 %v524, %v563
      %v579 = vmul.f32 %v529, %v565
      %v580 = vmul.f32 %v534, %v567
      %v581 = vmul.f32 %v539, %v569
      %v582 = vmul.f32 %v544, %v571
      %v583 = vmul.f32 %v549, %v573
      %v584 = vmul.f32 %v554, %v575
      %v585 = vmul.f32 %v559, %v577
      %586 = vset.pattern.permute.xlu0 1
      %587 = vperm.xlu0 %586, %v316
      %v588 = vpop.permute.xlu0 %587
      %590 = vset.pattern.permute.xlu0 1
      %591 = vperm.xlu0 %590, %v317
      %v592 = vpop.permute.xlu0 %591
      %594 = vset.pattern.permute.xlu0 1
      %595 = vperm.xlu0 %594, %v318
      %v596 = vpop.permute.xlu0 %595
      %598 = vset.pattern.permute.xlu0 1
      %599 = vperm.xlu0 %598, %v319
      %v600 = vpop.permute.xlu0 %599
      %602 = vset.pattern.permute.xlu0 1
      %603 = vperm.xlu0 %602, %v320
      %v604 = vpop.permute.xlu0 %603
      %606 = vset.pattern.permute.xlu0 1
      %607 = vperm.xlu0 %606, %v321
      %v608 = vpop.permute.xlu0 %607
      %610 = vset.pattern.permute.xlu0 1
      %611 = vperm.xlu0 %610, %v322
      %v612 = vpop.permute.xlu0 %611
      %614 = vset.pattern.permute.xlu0 1
      %615 = vperm.xlu0 %614, %v323
      %v616 = vpop.permute.xlu0 %615
      %v618 = vlaneseq
      %v619 = vshrl.u32 %v618, 7
      %v620 = vsub.s32 1, %v619
      %v621 = vrot.slane %v324, %v620
      %v622 = vadd.f32 %v588, %v621
      %v623 = vadd.f32 %v592, %v621
      %v624 = vadd.f32 %v596, %v621
      %v625 = vadd.f32 %v600, %v621
      %v626 = vadd.f32 %v604, %v621
      %v627 = vadd.f32 %v608, %v621
      %v628 = vadd.f32 %v612, %v621
      %v629 = vadd.f32 %v616, %v621
      %v630 = vmul.f32 %v622, 0.2
      %v631 = vmul.f32 %v623, 0.2
      %v632 = vmul.f32 %v624, 0.2
      %v633 = vmul.f32 %v625, 0.2
      %v634 = vmul.f32 %v626, 0.2
      %v635 = vmul.f32 %v627, 0.2
      %v636 = vmul.f32 %v628, 0.2
      %v637 = vmul.f32 %v629, 0.2
      %v638 = vmax.f32 %v622, %v630
      %v639 = vmax.f32 %v623, %v631
      %v640 = vmax.f32 %v624, %v632
      %v641 = vmax.f32 %v625, %v633
      %v642 = vmax.f32 %v626, %v634
      %v643 = vmax.f32 %v627, %v635
      %v644 = vmax.f32 %v628, %v636
      %v645 = vmax.f32 %v629, %v637
      %v646 = vadd.f32 %v638, %v276
      %v647 = vadd.f32 %v639, %v277
      %v648 = vadd.f32 %v640, %v278
      %v649 = vadd.f32 %v641, %v279
      %v650 = vadd.f32 %v642, %v280
      %v651 = vadd.f32 %v643, %v281
      %v652 = vadd.f32 %v644, %v282
      %v653 = vadd.f32 %v645, %v283
      %654 = vmax.xlane.f32.xlu0 %v646
      %v655 = vpop.xlane.xlu0 %654
      %656 = vmax.xlane.f32.xlu0 %v647
      %v657 = vpop.xlane.xlu0 %656
      %658 = vmax.xlane.f32.xlu0 %v648
      %v659 = vpop.xlane.xlu0 %658
      %660 = vmax.xlane.f32.xlu0 %v649
      %v661 = vpop.xlane.xlu0 %660
      %662 = vmax.xlane.f32.xlu0 %v650
      %v663 = vpop.xlane.xlu0 %662
      %664 = vmax.xlane.f32.xlu0 %v651
      %v665 = vpop.xlane.xlu0 %664
      %666 = vmax.xlane.f32.xlu0 %v652
      %v667 = vpop.xlane.xlu0 %666
      %668 = vmax.xlane.f32.xlu0 %v653
      %v669 = vpop.xlane.xlu0 %668
      %v670 = vsub.f32 %v646, %v655
      %v671 = vsub.f32 %v647, %v657
      %v672 = vsub.f32 %v648, %v659
      %v673 = vsub.f32 %v649, %v661
      %v674 = vsub.f32 %v650, %v663
      %v675 = vsub.f32 %v651, %v665
      %v676 = vsub.f32 %v652, %v667
      %v677 = vsub.f32 %v653, %v669
      %v678 = vmul.f32 %v670, 1.442695
      %v679 = vpow.pop %v678
      %v680 = vmul.f32 %v671, 1.442695
      %v681 = vpow.pop %v680
      %v682 = vmul.f32 %v672, 1.442695
      %v683 = vpow.pop %v682
      %v684 = vmul.f32 %v673, 1.442695
      %v685 = vpow.pop %v684
      %v686 = vmul.f32 %v674, 1.442695
      %v687 = vpow.pop %v686
      %v688 = vmul.f32 %v675, 1.442695
      %v689 = vpow.pop %v688
      %v690 = vmul.f32 %v676, 1.442695
      %v691 = vpow.pop %v690
      %v692 = vmul.f32 %v677, 1.442695
      %v693 = vpow.pop %v692
      %694 = vadd.xlane.f32.xlu0 %v679
      %v695 = vpop.xlane.xlu0 %694
      %696 = vadd.xlane.f32.xlu0 %v681
      %v697 = vpop.xlane.xlu0 %696
      %698 = vadd.xlane.f32.xlu0 %v683
      %v699 = vpop.xlane.xlu0 %698
      %700 = vadd.xlane.f32.xlu0 %v685
      %v701 = vpop.xlane.xlu0 %700
      %702 = vadd.xlane.f32.xlu0 %v687
      %v703 = vpop.xlane.xlu0 %702
      %704 = vadd.xlane.f32.xlu0 %v689
      %v705 = vpop.xlane.xlu0 %704
      %706 = vadd.xlane.f32.xlu0 %v691
      %v707 = vpop.xlane.xlu0 %706
      %708 = vadd.xlane.f32.xlu0 %v693
      %v709 = vpop.xlane.xlu0 %708
      %726 = vrot.lane.b32.xlu0 %v300, 120
      %v727 = vpop.permute.xlu0 %726
      %728 = vrot.lane.b32.xlu0 %v301, 120
      %v729 = vpop.permute.xlu0 %728
      %730 = vrot.lane.b32.xlu0 %v302, 120
      %v731 = vpop.permute.xlu0 %730
      %732 = vrot.lane.b32.xlu0 %v303, 120
      %v733 = vpop.permute.xlu0 %732
      %734 = vrot.lane.b32.xlu0 %v304, 120
      %v735 = vpop.permute.xlu0 %734
      %736 = vrot.lane.b32.xlu0 %v305, 120
      %v737 = vpop.permute.xlu0 %736
      %738 = vrot.lane.b32.xlu0 %v306, 120
      %v739 = vpop.permute.xlu0 %738
      %740 = vrot.lane.b32.xlu0 %v307, 120
      %v741 = vpop.permute.xlu0 %740
      %742 = vrot.lane.b32.xlu0 %v308, 120
      %v743 = vpop.permute.xlu0 %742
      %744 = vrot.lane.b32.xlu0 %v309, 120
      %v745 = vpop.permute.xlu0 %744
      %746 = vrot.lane.b32.xlu0 %v310, 120
      %v747 = vpop.permute.xlu0 %746
      %748 = vrot.lane.b32.xlu0 %v311, 120
      %v749 = vpop.permute.xlu0 %748
      %750 = vrot.lane.b32.xlu0 %v312, 120
      %v751 = vpop.permute.xlu0 %750
      %752 = vrot.lane.b32.xlu0 %v313, 120
      %v753 = vpop.permute.xlu0 %752
      %754 = vrot.lane.b32.xlu0 %v314, 120
      %v755 = vpop.permute.xlu0 %754
      %756 = vrot.lane.b32.xlu0 %v315, 120
      %v757 = vpop.permute.xlu0 %756
      %774 = vmatprep.subr.mxu0 0.0
      %775 = vmatpush1.msra.mxu0 %v727
      %776 = vmatprep.subr.mxu0 0.0
      %777 = vmatpush1.msra.mxu0 %v729
      %778 = vmatprep.subr.mxu0 0.0
      %779 = vmatpush1.msra.mxu0 %v731
      %780 = vmatprep.subr.mxu0 0.0
      %781 = vmatpush1.msra.mxu0 %v733
      %782 = vmatprep.subr.mxu0 0.0
      %783 = vmatpush1.msra.mxu0 %v735
      %784 = vmatprep.subr.mxu0 0.0
      %785 = vmatpush1.msra.mxu0 %v737
      %786 = vmatprep.subr.mxu0 0.0
      %787 = vmatpush1.msra.mxu0 %v739
      %788 = vmatprep.subr.mxu0 0.0
      %789 = vmatpush1.msra.mxu0 %v741
      %790 = vmatprep.subr.mxu0 0.0
      %791 = vmatpush1.msra.mxu0 %v743
      %792 = vmatprep.subr.mxu0 0.0
      %793 = vmatpush1.msra.mxu0 %v745
      %794 = vmatprep.subr.mxu0 0.0
      %795 = vmatpush1.msra.mxu0 %v747
      %796 = vmatprep.subr.mxu0 0.0
      %797 = vmatpush1.msra.mxu0 %v749
      %798 = vmatprep.subr.mxu0 0.0
      %799 = vmatpush1.msra.mxu0 %v751
      %800 = vmatprep.subr.mxu0 0.0
      %801 = vmatpush1.msra.mxu0 %v753
      %802 = vmatprep.subr.mxu0 0.0
      %803 = vmatpush1.msra.mxu0 %v755
      %804 = vmatprep.subr.mxu0 0.0
      %805 = vmatpush1.msra.mxu0 %v757
      %806 = vmatprep.subr.mxu0 0.0
      %807 = vmatpush1.msra.mxu0 0.0
      %808 = vmatprep.subr.mxu0 0.0
      %809 = vmatpush1.msra.mxu0 0.0
      %810 = vmatprep.subr.mxu0 0.0
      %811 = vmatpush1.msra.mxu0 0.0
      %812 = vmatprep.subr.mxu0 0.0
      %813 = vmatpush1.msra.mxu0 0.0
      %814 = vmatprep.subr.mxu0 0.0
      %815 = vmatpush1.msra.mxu0 0.0
      %816 = vmatprep.subr.mxu0 0.0
      %817 = vmatpush1.msra.mxu0 0.0
      %818 = vmatprep.subr.mxu0 0.0
      %819 = vmatpush1.msra.mxu0 0.0
      %820 = vmatprep.subr.mxu0 0.0
      %821 = vmatpush1.msra.mxu0 0.0
      %822 = vmatprep.subr.mxu0 0.0
      %823 = vmatpush1.msra.mxu0 0.0
      %824 = vmatprep.subr.mxu0 0.0
      %825 = vmatpush1.msra.mxu0 0.0
      %826 = vmatprep.subr.mxu0 0.0
      %827 = vmatpush1.msra.mxu0 0.0
      %828 = vmatprep.subr.mxu0 0.0
      %829 = vmatpush1.msra.mxu0 0.0
      %830 = vmatprep.subr.mxu0 0.0
      %831 = vmatpush1.msra.mxu0 0.0
      %832 = vmatprep.subr.mxu0 0.0
      %833 = vmatpush1.msra.mxu0 0.0
      %834 = vmatprep.subr.mxu0 0.0
      %835 = vmatpush1.msra.mxu0 0.0
      %836 = vmatprep.subr.mxu0 0.0
      %837 = vmatpush1.msra.mxu0 0.0
      %838 = vmatprep.mubr.f32.mxu0 0.0
      %839 = vmatmul.mubr.f32.gmra.mrb[0].mxu0 %v679
      %v840 = vpop.f32.mrb[0].mxu0
      %v841 = vadd.f32 0.0, %v840
      %v842 = vpop.f32.mrb[0].mxu0
      %843 = vmatprep.mubr.f32.mxu0 0.0
      %844 = vmatmul.mubr.f32.gmra.mrb[0].mxu0 %v681
      %v845 = vpop.f32.mrb[0].mxu0
      %v846 = vadd.f32 0.0, %v845
      %v847 = vpop.f32.mrb[0].mxu0
      %848 = vmatprep.mubr.f32.mxu0 0.0
      %849 = vmatmul.mubr.f32.gmra.mrb[0].mxu0 %v683
      %v850 = vpop.f32.mrb[0].mxu0
      %v851 = vadd.f32 0.0, %v850
      %v852 = vpop.f32.mrb[0].mxu0
      %853 = vmatprep.mubr.f32.mxu0 0.0
      %854 = vmatmul.mubr.f32.gmra.mrb[0].mxu0 %v685
      %v855 = vpop.f32.mrb[0].mxu0
      %v856 = vadd.f32 0.0, %v855
      %v857 = vpop.f32.mrb[0].mxu0
      %858 = vmatprep.mubr.f32.mxu0 0.0
      %859 = vmatmul.mubr.f32.gmra.mrb[0].mxu0 %v687
      %v860 = vpop.f32.mrb[0].mxu0
      %v861 = vadd.f32 0.0, %v860
      %v862 = vpop.f32.mrb[0].mxu0
      %863 = vmatprep.mubr.f32.mxu0 0.0
      %864 = vmatmul.mubr.f32.gmra.mrb[0].mxu0 %v689
      %v865 = vpop.f32.mrb[0].mxu0
      %v866 = vadd.f32 0.0, %v865
      %v867 = vpop.f32.mrb[0].mxu0
      %868 = vmatprep.mubr.f32.mxu0 0.0
      %869 = vmatmul.mubr.f32.gmra.mrb[0].mxu0 %v691
      %v870 = vpop.f32.mrb[0].mxu0
      %v871 = vadd.f32 0.0, %v870
      %v872 = vpop.f32.mrb[0].mxu0
      %873 = vmatprep.mubr.f32.mxu0 0.0
      %874 = vmatmul.mubr.f32.gmra.mrb[0].mxu0 %v693
      %v875 = vpop.f32.mrb[0].mxu0
      %v876 = vadd.f32 0.0, %v875
      %v877 = vpop.f32.mrb[0].mxu0
      %878 = vdwg.mxu0
      %v879 = vrcp.pop %v695
      %v880 = vmul.f32 1.0, %v879
      %v881 = vrcp.pop %v697
      %v882 = vmul.f32 1.0, %v881
      %v883 = vrcp.pop %v699
      %v884 = vmul.f32 1.0, %v883
      %v885 = vrcp.pop %v701
      %v886 = vmul.f32 1.0, %v885
      %v887 = vrcp.pop %v703
      %v888 = vmul.f32 1.0, %v887
      %v889 = vrcp.pop %v705
      %v890 = vmul.f32 1.0, %v889
      %v891 = vrcp.pop %v707
      %v892 = vmul.f32 1.0, %v891
      %v893 = vrcp.pop %v709
      %v894 = vmul.f32 1.0, %v893
      %v895 = vmul.f32 %v841, %v880
      %v896 = vmul.f32 %v846, %v882
      %v897 = vmul.f32 %v851, %v884
      %v898 = vmul.f32 %v856, %v886
      %v899 = vmul.f32 %v861, %v888
      %v900 = vmul.f32 %v866, %v890
      %v901 = vmul.f32 %v871, %v892
      %v902 = vmul.f32 %v876, %v894
      %903 = vset.pattern.permute.xlu0 2
      %904 = vperm.xlu0 %903, %v316
      %v905 = vpop.permute.xlu0 %904
      %907 = vset.pattern.permute.xlu0 2
      %908 = vperm.xlu0 %907, %v317
      %v909 = vpop.permute.xlu0 %908
      %911 = vset.pattern.permute.xlu0 2
      %912 = vperm.xlu0 %911, %v318
      %v913 = vpop.permute.xlu0 %912
      %915 = vset.pattern.permute.xlu0 2
      %916 = vperm.xlu0 %915, %v319
      %v917 = vpop.permute.xlu0 %916
      %919 = vset.pattern.permute.xlu0 2
      %920 = vperm.xlu0 %919, %v320
      %v921 = vpop.permute.xlu0 %920
      %923 = vset.pattern.permute.xlu0 2
      %924 = vperm.xlu0 %923, %v321
      %v925 = vpop.permute.xlu0 %924
      %927 = vset.pattern.permute.xlu0 2
      %928 = vperm.xlu0 %927, %v322
      %v929 = vpop.permute.xlu0 %928
      %931 = vset.pattern.permute.xlu0 2
      %932 = vperm.xlu0 %931, %v323
      %v933 = vpop.permute.xlu0 %932
      %v935 = vlaneseq
      %v936 = vshrl.u32 %v935, 7
      %v937 = vsub.s32 2, %v936
      %v938 = vrot.slane %v324, %v937
      %v939 = vadd.f32 %v905, %v938
      %v940 = vadd.f32 %v909, %v938
      %v941 = vadd.f32 %v913, %v938
      %v942 = vadd.f32 %v917, %v938
      %v943 = vadd.f32 %v921, %v938
      %v944 = vadd.f32 %v925, %v938
      %v945 = vadd.f32 %v929, %v938
      %v946 = vadd.f32 %v933, %v938
      %v947 = vmul.f32 %v939, 0.2
      %v948 = vmul.f32 %v940, 0.2
      %v949 = vmul.f32 %v941, 0.2
      %v950 = vmul.f32 %v942, 0.2
      %v951 = vmul.f32 %v943, 0.2
      %v952 = vmul.f32 %v944, 0.2
      %v953 = vmul.f32 %v945, 0.2
      %v954 = vmul.f32 %v946, 0.2
      %v955 = vmax.f32 %v939, %v947
      %v956 = vmax.f32 %v940, %v948
      %v957 = vmax.f32 %v941, %v949
      %v958 = vmax.f32 %v942, %v950
      %v959 = vmax.f32 %v943, %v951
      %v960 = vmax.f32 %v944, %v952
      %v961 = vmax.f32 %v945, %v953
      %v962 = vmax.f32 %v946, %v954
      %v963 = vadd.f32 %v955, %v276
      %v964 = vadd.f32 %v956, %v277
      %v965 = vadd.f32 %v957, %v278
      %v966 = vadd.f32 %v958, %v279
      %v967 = vadd.f32 %v959, %v280
      %v968 = vadd.f32 %v960, %v281
      %v969 = vadd.f32 %v961, %v282
      %v970 = vadd.f32 %v962, %v283
      %971 = vmax.xlane.f32.xlu0 %v963
      %v972 = vpop.xlane.xlu0 %971
      %973 = vmax.xlane.f32.xlu0 %v964
      %v974 = vpop.xlane.xlu0 %973
      %975 = vmax.xlane.f32.xlu0 %v965
      %v976 = vpop.xlane.xlu0 %975
      %977 = vmax.xlane.f32.xlu0 %v966
      %v978 = vpop.xlane.xlu0 %977
      %979 = vmax.xlane.f32.xlu0 %v967
      %v980 = vpop.xlane.xlu0 %979
      %981 = vmax.xlane.f32.xlu0 %v968
      %v982 = vpop.xlane.xlu0 %981
      %983 = vmax.xlane.f32.xlu0 %v969
      %v984 = vpop.xlane.xlu0 %983
      %985 = vmax.xlane.f32.xlu0 %v970
      %v986 = vpop.xlane.xlu0 %985
      %v987 = vsub.f32 %v963, %v972
      %v988 = vsub.f32 %v964, %v974
      %v989 = vsub.f32 %v965, %v976
      %v990 = vsub.f32 %v966, %v978
      %v991 = vsub.f32 %v967, %v980
      %v992 = vsub.f32 %v968, %v982
      %v993 = vsub.f32 %v969, %v984
      %v994 = vsub.f32 %v970, %v986
      %v995 = vmul.f32 %v987, 1.442695
      %v996 = vpow.pop %v995
      %v997 = vmul.f32 %v988, 1.442695
      %v998 = vpow.pop %v997
      %v999 = vmul.f32 %v989, 1.442695
      %v1000 = vpow.pop %v999
      %v1001 = vmul.f32 %v990, 1.442695
      %v1002 = vpow.pop %v1001
      %v1003 = vmul.f32 %v991, 1.442695
      %v1004 = vpow.pop %v1003
      %v1005 = vmul.f32 %v992, 1.442695
      %v1006 = vpow.pop %v1005
      %v1007 = vmul.f32 %v993, 1.442695
      %v1008 = vpow.pop %v1007
      %v1009 = vmul.f32 %v994, 1.442695
      %v1010 = vpow.pop %v1009
      %1011 = vadd.xlane.f32.xlu0 %v996
      %v1012 = vpop.xlane.xlu0 %1011
      %1013 = vadd.xlane.f32.xlu0 %v998
      %v1014 = vpop.xlane.xlu0 %1013
      %1015 = vadd.xlane.f32.xlu0 %v1000
      %v1016 = vpop.xlane.xlu0 %1015
      %1017 = vadd.xlane.f32.xlu0 %v1002
      %v1018 = vpop.xlane.xlu0 %1017
      %1019 = vadd.xlane.f32.xlu0 %v1004
      %v1020 = vpop.xlane.xlu0 %1019
      %1021 = vadd.xlane.f32.xlu0 %v1006
      %v1022 = vpop.xlane.xlu0 %1021
      %1023 = vadd.xlane.f32.xlu0 %v1008
      %v1024 = vpop.xlane.xlu0 %1023
      %1025 = vadd.xlane.f32.xlu0 %v1010
      %v1026 = vpop.xlane.xlu0 %1025
      %1027 = vrot.lane.b32.xlu0 %v300, 112
      %v1028 = vpop.permute.xlu0 %1027
      %1029 = vrot.lane.b32.xlu0 %v301, 112
      %v1030 = vpop.permute.xlu0 %1029
      %1031 = vrot.lane.b32.xlu0 %v302, 112
      %v1032 = vpop.permute.xlu0 %1031
      %1033 = vrot.lane.b32.xlu0 %v303, 112
      %v1034 = vpop.permute.xlu0 %1033
      %1035 = vrot.lane.b32.xlu0 %v304, 112
      %v1036 = vpop.permute.xlu0 %1035
      %1037 = vrot.lane.b32.xlu0 %v305, 112
      %v1038 = vpop.permute.xlu0 %1037
      %1039 = vrot.lane.b32.xlu0 %v306, 112
      %v1040 = vpop.permute.xlu0 %1039
      %1041 = vrot.lane.b32.xlu0 %v307, 112
      %v1042 = vpop.permute.xlu0 %1041
      %1043 = vrot.lane.b32.xlu0 %v308, 112
      %v1044 = vpop.permute.xlu0 %1043
      %1045 = vrot.lane.b32.xlu0 %v309, 112
      %v1046 = vpop.permute.xlu0 %1045
      %1047 = vrot.lane.b32.xlu0 %v310, 112
      %v1048 = vpop.permute.xlu0 %1047
      %1049 = vrot.lane.b32.xlu0 %v311, 112
      %v1050 = vpop.permute.xlu0 %1049
      %1051 = vrot.lane.b32.xlu0 %v312, 112
      %v1052 = vpop.permute.xlu0 %1051
      %1053 = vrot.lane.b32.xlu0 %v313, 112
      %v1054 = vpop.permute.xlu0 %1053
      %1055 = vrot.lane.b32.xlu0 %v314, 112
      %v1056 = vpop.permute.xlu0 %1055
      %1057 = vrot.lane.b32.xlu0 %v315, 112
      %v1058 = vpop.permute.xlu0 %1057
      %1075 = vmatprep.subr.mxu0 0.0
      %1076 = vmatpush1.msra.mxu0 %v1028
      %1077 = vmatprep.subr.mxu0 0.0
      %1078 = vmatpush1.msra.mxu0 %v1030
      %1079 = vmatprep.subr.mxu0 0.0
      %1080 = vmatpush1.msra.mxu0 %v1032
      %1081 = vmatprep.subr.mxu0 0.0
      %1082 = vmatpush1.msra.mxu0 %v1034
      %1083 = vmatprep.subr.mxu0 0.0
      %1084 = vmatpush1.msra.mxu0 %v1036
      %1085 = vmatprep.subr.mxu0 0.0
      %1086 = vmatpush1.msra.mxu0 %v1038
      %1087 = vmatprep.subr.mxu0 0.0
      %1088 = vmatpush1.msra.mxu0 %v1040
      %1089 = vmatprep.subr.mxu0 0.0
      %1090 = vmatpush1.msra.mxu0 %v1042
      %1091 = vmatprep.subr.mxu0 0.0
      %1092 = vmatpush1.msra.mxu0 %v1044
      %1093 = vmatprep.subr.mxu0 0.0
      %1094 = vmatpush1.msra.mxu0 %v1046
      %1095 = vmatprep.subr.mxu0 0.0
      %1096 = vmatpush1.msra.mxu0 %v1048
      %1097 = vmatprep.subr.mxu0 0.0
      %1098 = vmatpush1.msra.mxu0 %v1050
      %1099 = vmatprep.subr.mxu0 0.0
      %1100 = vmatpush1.msra.mxu0 %v1052
      %1101 = vmatprep.subr.mxu0 0.0
      %1102 = vmatpush1.msra.mxu0 %v1054
      %1103 = vmatprep.subr.mxu0 0.0
      %1104 = vmatpush1.msra.mxu0 %v1056
      %1105 = vmatprep.subr.mxu0 0.0
      %1106 = vmatpush1.msra.mxu0 %v1058
      %1107 = vmatprep.subr.mxu0 0.0
      %1108 = vmatpush1.msra.mxu0 0.0
      %1109 = vmatprep.subr.mxu0 0.0
      %1110 = vmatpush1.msra.mxu0 0.0
      %1111 = vmatprep.subr.mxu0 0.0
      %1112 = vmatpush1.msra.mxu0 0.0
      %1113 = vmatprep.subr.mxu0 0.0
      %1114 = vmatpush1.msra.mxu0 0.0
      %1115 = vmatprep.subr.mxu0 0.0
      %1116 = vmatpush1.msra.mxu0 0.0
      %1117 = vmatprep.subr.mxu0 0.0
      %1118 = vmatpush1.msra.mxu0 0.0
      %1119 = vmatprep.subr.mxu0 0.0
      %1120 = vmatpush1.msra.mxu0 0.0
      %1121 = vmatprep.subr.mxu0 0.0
      %1122 = vmatpush1.msra.mxu0 0.0
      %1123 = vmatprep.subr.mxu0 0.0
      %1124 = vmatpush1.msra.mxu0 0.0
      %1125 = vmatprep.subr.mxu0 0.0
      %1126 = vmatpush1.msra.mxu0 0.0
      %1127 = vmatprep.subr.mxu0 0.0
      %1128 = vmatpush1.msra.mxu0 0.0
      %1129 = vmatprep.subr.mxu0 0.0
      %1130 = vmatpush1.msra.mxu0 0.0
      %1131 = vmatprep.subr.mxu0 0.0
      %1132 = vmatpush1.msra.mxu0 0.0
      %1133 = vmatprep.subr.mxu0 0.0
      %1134 = vmatpush1.msra.mxu0 0.0
      %1135 = vmatprep.subr.mxu0 0.0
      %1136 = vmatpush1.msra.mxu0 0.0
      %1137 = vmatprep.subr.mxu0 0.0
      %1138 = vmatpush1.msra.mxu0 0.0
      %1139 = vmatprep.mubr.f32.mxu0 0.0
      %1140 = vmatmul.mubr.f32.gmra.mrb[0].mxu0 %v996
      %v1141 = vpop.f32.mrb[0].mxu0
      %v1142 = vadd.f32 0.0, %v1141
      %v1143 = vpop.f32.mrb[0].mxu0
      %1144 = vmatprep.mubr.f32.mxu0 0.0
      %1145 = vmatmul.mubr.f32.gmra.mrb[0].mxu0 %v998
      %v1146 = vpop.f32.mrb[0].mxu0
      %v1147 = vadd.f32 0.0, %v1146
      %v1148 = vpop.f32.mrb[0].mxu0
      %1149 = vmatprep.mubr.f32.mxu0 0.0
      %1150 = vmatmul.mubr.f32.gmra.mrb[0].mxu0 %v1000
      %v1151 = vpop.f32.mrb[0].mxu0
      %v1152 = vadd.f32 0.0, %v1151
      %v1153 = vpop.f32.mrb[0].mxu0
      %1154 = vmatprep.mubr.f32.mxu0 0.0
      %1155 = vmatmul.mubr.f32.gmra.mrb[0].mxu0 %v1002
      %v1156 = vpop.f32.mrb[0].mxu0
      %v1157 = vadd.f32 0.0, %v1156
      %v1158 = vpop.f32.mrb[0].mxu0
      %1159 = vmatprep.mubr.f32.mxu0 0.0
      %1160 = vmatmul.mubr.f32.gmra.mrb[0].mxu0 %v1004
      %v1161 = vpop.f32.mrb[0].mxu0
      %v1162 = vadd.f32 0.0, %v1161
      %v1163 = vpop.f32.mrb[0].mxu0
      %1164 = vmatprep.mubr.f32.mxu0 0.0
      %1165 = vmatmul.mubr.f32.gmra.mrb[0].mxu0 %v1006
      %v1166 = vpop.f32.mrb[0].mxu0
      %v1167 = vadd.f32 0.0, %v1166
      %v1168 = vpop.f32.mrb[0].mxu0
      %1169 = vmatprep.mubr.f32.mxu0 0.0
      %1170 = vmatmul.mubr.f32.gmra.mrb[0].mxu0 %v1008
      %v1171 = vpop.f32.mrb[0].mxu0
      %v1172 = vadd.f32 0.0, %v1171
      %v1173 = vpop.f32.mrb[0].mxu0
      %1174 = vmatprep.mubr.f32.mxu0 0.0
      %1175 = vmatmul.mubr.f32.gmra.mrb[0].mxu0 %v1010
      %v1176 = vpop.f32.mrb[0].mxu0
      %v1177 = vadd.f32 0.0, %v1176
      %v1178 = vpop.f32.mrb[0].mxu0
      %1179 = vdwg.mxu0
      %v1180 = vrcp.pop %v1012
      %v1181 = vmul.f32 1.0, %v1180
      %v1182 = vrcp.pop %v1014
      %v1183 = vmul.f32 1.0, %v1182
      %v1184 = vrcp.pop %v1016
      %v1185 = vmul.f32 1.0, %v1184
      %v1186 = vrcp.pop %v1018
      %v1187 = vmul.f32 1.0, %v1186
      %v1188 = vrcp.pop %v1020
      %v1189 = vmul.f32 1.0, %v1188
      %v1190 = vrcp.pop %v1022
      %v1191 = vmul.f32 1.0, %v1190
      %v1192 = vrcp.pop %v1024
      %v1193 = vmul.f32 1.0, %v1192
      %v1194 = vrcp.pop %v1026
      %v1195 = vmul.f32 1.0, %v1194
      %v1196 = vmul.f32 %v1142, %v1181
      %v1197 = vmul.f32 %v1147, %v1183
      %v1198 = vmul.f32 %v1152, %v1185
      %v1199 = vmul.f32 %v1157, %v1187
      %v1200 = vmul.f32 %v1162, %v1189
      %v1201 = vmul.f32 %v1167, %v1191
      %v1202 = vmul.f32 %v1172, %v1193
      %v1203 = vmul.f32 %v1177, %v1195
      %1204 = vset.pattern.permute.xlu0 3
      %1205 = vperm.xlu0 %1204, %v316
      %v1206 = vpop.permute.xlu0 %1205
      %1208 = vset.pattern.permute.xlu0 3
      %1209 = vperm.xlu0 %1208, %v317
      %v1210 = vpop.permute.xlu0 %1209
      %1212 = vset.pattern.permute.xlu0 3
      %1213 = vperm.xlu0 %1212, %v318
      %v1214 = vpop.permute.xlu0 %1213
      %1216 = vset.pattern.permute.xlu0 3
      %1217 = vperm.xlu0 %1216, %v319
      %v1218 = vpop.permute.xlu0 %1217
      %1220 = vset.pattern.permute.xlu0 3
      %1221 = vperm.xlu0 %1220, %v320
      %v1222 = vpop.permute.xlu0 %1221
      %1224 = vset.pattern.permute.xlu0 3
      %1225 = vperm.xlu0 %1224, %v321
      %v1226 = vpop.permute.xlu0 %1225
      %1228 = vset.pattern.permute.xlu0 3
      %1229 = vperm.xlu0 %1228, %v322
      %v1230 = vpop.permute.xlu0 %1229
      %1232 = vset.pattern.permute.xlu0 3
      %1233 = vperm.xlu0 %1232, %v323
      %v1234 = vpop.permute.xlu0 %1233
      %v1236 = vlaneseq
      %v1237 = vshrl.u32 %v1236, 7
      %v1238 = vsub.s32 3, %v1237
      %v1239 = vrot.slane %v324, %v1238
      %v1240 = vadd.f32 %v1206, %v1239
      %v1241 = vadd.f32 %v1210, %v1239
      %v1242 = vadd.f32 %v1214, %v1239
      %v1243 = vadd.f32 %v1218, %v1239
      %v1244 = vadd.f32 %v1222, %v1239
      %v1245 = vadd.f32 %v1226, %v1239
      %v1246 = vadd.f32 %v1230, %v1239
      %v1247 = vadd.f32 %v1234, %v1239
      %v1248 = vmul.f32 %v1240, 0.2
      %v1249 = vmul.f32 %v1241, 0.2
      %v1250 = vmul.f32 %v1242, 0.2
      %v1251 = vmul.f32 %v1243, 0.2
      %v1252 = vmul.f32 %v1244, 0.2
      %v1253 = vmul.f32 %v1245, 0.2
      %v1254 = vmul.f32 %v1246, 0.2
      %v1255 = vmul.f32 %v1247, 0.2
      %v1256 = vmax.f32 %v1240, %v1248
      %v1257 = vmax.f32 %v1241, %v1249
      %v1258 = vmax.f32 %v1242, %v1250
      %v1259 = vmax.f32 %v1243, %v1251
      %v1260 = vmax.f32 %v1244, %v1252
      %v1261 = vmax.f32 %v1245, %v1253
      %v1262 = vmax.f32 %v1246, %v1254
      %v1263 = vmax.f32 %v1247, %v1255
      %v1264 = vadd.f32 %v1256, %v276
      %v1265 = vadd.f32 %v1257, %v277
      %v1266 = vadd.f32 %v1258, %v278
      %v1267 = vadd.f32 %v1259, %v279
      %v1268 = vadd.f32 %v1260, %v280
      %v1269 = vadd.f32 %v1261, %v281
      %v1270 = vadd.f32 %v1262, %v282
      %v1271 = vadd.f32 %v1263, %v283
      %1272 = vmax.xlane.f32.xlu0 %v1264
      %v1273 = vpop.xlane.xlu0 %1272
      %1274 = vmax.xlane.f32.xlu0 %v1265
      %v1275 = vpop.xlane.xlu0 %1274
      %1276 = vmax.xlane.f32.xlu0 %v1266
      %v1277 = vpop.xlane.xlu0 %1276
      %1278 = vmax.xlane.f32.xlu0 %v1267
      %v1279 = vpop.xlane.xlu0 %1278
      %1280 = vmax.xlane.f32.xlu0 %v1268
      %v1281 = vpop.xlane.xlu0 %1280
      %1282 = vmax.xlane.f32.xlu0 %v1269
      %v1283 = vpop.xlane.xlu0 %1282
      %1284 = vmax.xlane.f32.xlu0 %v1270
      %v1285 = vpop.xlane.xlu0 %1284
      %1286 = vmax.xlane.f32.xlu0 %v1271
      %v1287 = vpop.xlane.xlu0 %1286
      %v1288 = vsub.f32 %v1264, %v1273
      %v1289 = vsub.f32 %v1265, %v1275
      %v1290 = vsub.f32 %v1266, %v1277
      %v1291 = vsub.f32 %v1267, %v1279
      %v1292 = vsub.f32 %v1268, %v1281
      %v1293 = vsub.f32 %v1269, %v1283
      %v1294 = vsub.f32 %v1270, %v1285
      %v1295 = vsub.f32 %v1271, %v1287
      %v1296 = vmul.f32 %v1288, 1.442695
      %v1297 = vpow.pop %v1296
      %v1298 = vmul.f32 %v1289, 1.442695
      %v1299 = vpow.pop %v1298
      %v1300 = vmul.f32 %v1290, 1.442695
      %v1301 = vpow.pop %v1300
      %v1302 = vmul.f32 %v1291, 1.442695
      %v1303 = vpow.pop %v1302
      %v1304 = vmul.f32 %v1292, 1.442695
      %v1305 = vpow.pop %v1304
      %v1306 = vmul.f32 %v1293, 1.442695
      %v1307 = vpow.pop %v1306
      %v1308 = vmul.f32 %v1294, 1.442695
      %v1309 = vpow.pop %v1308
      %v1310 = vmul.f32 %v1295, 1.442695
      %v1311 = vpow.pop %v1310
      %1312 = vadd.xlane.f32.xlu0 %v1297
      %v1313 = vpop.xlane.xlu0 %1312
      %1314 = vadd.xlane.f32.xlu0 %v1299
      %v1315 = vpop.xlane.xlu0 %1314
      %1316 = vadd.xlane.f32.xlu0 %v1301
      %v1317 = vpop.xlane.xlu0 %1316
      %1318 = vadd.xlane.f32.xlu0 %v1303
      %v1319 = vpop.xlane.xlu0 %1318
      %1320 = vadd.xlane.f32.xlu0 %v1305
      %v1321 = vpop.xlane.xlu0 %1320
      %1322 = vadd.xlane.f32.xlu0 %v1307
      %v1323 = vpop.xlane.xlu0 %1322
      %1324 = vadd.xlane.f32.xlu0 %v1309
      %v1325 = vpop.xlane.xlu0 %1324
      %1326 = vadd.xlane.f32.xlu0 %v1311
      %v1327 = vpop.xlane.xlu0 %1326
      %1328 = vrot.lane.b32.xlu0 %v300, 104
      %v1329 = vpop.permute.xlu0 %1328
      %1330 = vrot.lane.b32.xlu0 %v301, 104
      %v1331 = vpop.permute.xlu0 %1330
      %1332 = vrot.lane.b32.xlu0 %v302, 104
      %v1333 = vpop.permute.xlu0 %1332
      %1334 = vrot.lane.b32.xlu0 %v303, 104
      %v1335 = vpop.permute.xlu0 %1334
      %1336 = vrot.lane.b32.xlu0 %v304, 104
      %v1337 = vpop.permute.xlu0 %1336
      %1338 = vrot.lane.b32.xlu0 %v305, 104
      %v1339 = vpop.permute.xlu0 %1338
      %1340 = vrot.lane.b32.xlu0 %v306, 104
      %v1341 = vpop.permute.xlu0 %1340
      %1342 = vrot.lane.b32.xlu0 %v307, 104
      %v1343 = vpop.permute.xlu0 %1342
      %1344 = vrot.lane.b32.xlu0 %v308, 104
      %v1345 = vpop.permute.xlu0 %1344
      %1346 = vrot.lane.b32.xlu0 %v309, 104
      %v1347 = vpop.permute.xlu0 %1346
      %1348 = vrot.lane.b32.xlu0 %v310, 104
      %v1349 = vpop.permute.xlu0 %1348
      %1350 = vrot.lane.b32.xlu0 %v311, 104
      %v1351 = vpop.permute.xlu0 %1350
      %1352 = vrot.lane.b32.xlu0 %v312, 104
      %v1353 = vpop.permute.xlu0 %1352
      %1354 = vrot.lane.b32.xlu0 %v313, 104
      %v1355 = vpop.permute.xlu0 %1354
      %1356 = vrot.lane.b32.xlu0 %v314, 104
      %v1357 = vpop.permute.xlu0 %1356
      %1358 = vrot.lane.b32.xlu0 %v315, 104
      %v1359 = vpop.permute.xlu0 %1358
      %1376 = vmatprep.subr.mxu0 0.0
      %1377 = vmatpush1.msra.mxu0 %v1329
      %1378 = vmatprep.subr.mxu0 0.0
      %1379 = vmatpush1.msra.mxu0 %v1331
      %1380 = vmatprep.subr.mxu0 0.0
      %1381 = vmatpush1.msra.mxu0 %v1333
      %1382 = vmatprep.subr.mxu0 0.0
      %1383 = vmatpush1.msra.mxu0 %v1335
      %1384 = vmatprep.subr.mxu0 0.0
      %1385 = vmatpush1.msra.mxu0 %v1337
      %1386 = vmatprep.subr.mxu0 0.0
      %1387 = vmatpush1.msra.mxu0 %v1339
      %1388 = vmatprep.subr.mxu0 0.0
      %1389 = vmatpush1.msra.mxu0 %v1341
      %1390 = vmatprep.subr.mxu0 0.0
      %1391 = vmatpush1.msra.mxu0 %v1343
      %1392 = vmatprep.subr.mxu0 0.0
      %1393 = vmatpush1.msra.mxu0 %v1345
      %1394 = vmatprep.subr.mxu0 0.0
      %1395 = vmatpush1.msra.mxu0 %v1347
      %1396 = vmatprep.subr.mxu0 0.0
      %1397 = vmatpush1.msra.mxu0 %v1349
      %1398 = vmatprep.subr.mxu0 0.0
      %1399 = vmatpush1.msra.mxu0 %v1351
      %1400 = vmatprep.subr.mxu0 0.0
      %1401 = vmatpush1.msra.mxu0 %v1353
      %1402 = vmatprep.subr.mxu0 0.0
      %1403 = vmatpush1.msra.mxu0 %v1355
      %1404 = vmatprep.subr.mxu0 0.0
      %1405 = vmatpush1.msra.mxu0 %v1357
      %1406 = vmatprep.subr.mxu0 0.0
      %1407 = vmatpush1.msra.mxu0 %v1359
      %1408 = vmatprep.subr.mxu0 0.0
      %1409 = vmatpush1.msra.mxu0 0.0
      %1410 = vmatprep.subr.mxu0 0.0
      %1411 = vmatpush1.msra.mxu0 0.0
      %1412 = vmatprep.subr.mxu0 0.0
      %1413 = vmatpush1.msra.mxu0 0.0
      %1414 = vmatprep.subr.mxu0 0.0
      %1415 = vmatpush1.msra.mxu0 0.0
      %1416 = vmatprep.subr.mxu0 0.0
      %1417 = vmatpush1.msra.mxu0 0.0
      %1418 = vmatprep.subr.mxu0 0.0
      %1419 = vmatpush1.msra.mxu0 0.0
      %1420 = vmatprep.subr.mxu0 0.0
      %1421 = vmatpush1.msra.mxu0 0.0
      %1422 = vmatprep.subr.mxu0 0.0
      %1423 = vmatpush1.msra.mxu0 0.0
      %1424 = vmatprep.subr.mxu0 0.0
      %1425 = vmatpush1.msra.mxu0 0.0
      %1426 = vmatprep.subr.mxu0 0.0
      %1427 = vmatpush1.msra.mxu0 0.0
      %1428 = vmatprep.subr.mxu0 0.0
      %1429 = vmatpush1.msra.mxu0 0.0
      %1430 = vmatprep.subr.mxu0 0.0
      %1431 = vmatpush1.msra.mxu0 0.0
      %1432 = vmatprep.subr.mxu0 0.0
      %1433 = vmatpush1.msra.mxu0 0.0
      %1434 = vmatprep.subr.mxu0 0.0
      %1435 = vmatpush1.msra.mxu0 0.0
      %1436 = vmatprep.subr.mxu0 0.0
      %1437 = vmatpush1.msra.mxu0 0.0
      %1438 = vmatprep.subr.mxu0 0.0
      %1439 = vmatpush1.msra.mxu0 0.0
      %1440 = vmatprep.mubr.f32.mxu0 0.0
      %1441 = vmatmul.mubr.f32.gmra.mrb[0].mxu0 %v1297
      %v1442 = vpop.f32.mrb[0].mxu0
      %v1443 = vadd.f32 0.0, %v1442
      %v1444 = vpop.f32.mrb[0].mxu0
      %1445 = vmatprep.mubr.f32.mxu0 0.0
      %1446 = vmatmul.mubr.f32.gmra.mrb[0].mxu0 %v1299
      %v1447 = vpop.f32.mrb[0].mxu0
      %v1448 = vadd.f32 0.0, %v1447
      %v1449 = vpop.f32.mrb[0].mxu0
      %1450 = vmatprep.mubr.f32.mxu0 0.0
      %1451 = vmatmul.mubr.f32.gmra.mrb[0].mxu0 %v1301
      %v1452 = vpop.f32.mrb[0].mxu0
      %v1453 = vadd.f32 0.0, %v1452
      %v1454 = vpop.f32.mrb[0].mxu0
      %1455 = vmatprep.mubr.f32.mxu0 0.0
      %1456 = vmatmul.mubr.f32.gmra.mrb[0].mxu0 %v1303
      %v1457 = vpop.f32.mrb[0].mxu0
      %v1458 = vadd.f32 0.0, %v1457
      %v1459 = vpop.f32.mrb[0].mxu0
      %1460 = vmatprep.mubr.f32.mxu0 0.0
      %1461 = vmatmul.mubr.f32.gmra.mrb[0].mxu0 %v1305
      %v1462 = vpop.f32.mrb[0].mxu0
      %v1463 = vadd.f32 0.0, %v1462
      %v1464 = vpop.f32.mrb[0].mxu0
      %1465 = vmatprep.mubr.f32.mxu0 0.0
      %1466 = vmatmul.mubr.f32.gmra.mrb[0].mxu0 %v1307
      %v1467 = vpop.f32.mrb[0].mxu0
      %v1468 = vadd.f32 0.0, %v1467
      %v1469 = vpop.f32.mrb[0].mxu0
      %1470 = vmatprep.mubr.f32.mxu0 0.0
      %1471 = vmatmul.mubr.f32.gmra.mrb[0].mxu0 %v1309
      %v1472 = vpop.f32.mrb[0].mxu0
      %v1473 = vadd.f32 0.0, %v1472
      %v1474 = vpop.f32.mrb[0].mxu0
      %1475 = vmatprep.mubr.f32.mxu0 0.0
      %1476 = vmatmul.mubr.f32.gmra.mrb[0].mxu0 %v1311
      %v1477 = vpop.f32.mrb[0].mxu0
      %v1478 = vadd.f32 0.0, %v1477
      %v1479 = vpop.f32.mrb[0].mxu0
      %1480 = vdwg.mxu0
      %v1481 = vrcp.pop %v1313
      %v1482 = vmul.f32 1.0, %v1481
      %v1483 = vrcp.pop %v1315
      %v1484 = vmul.f32 1.0, %v1483
      %v1485 = vrcp.pop %v1317
      %v1486 = vmul.f32 1.0, %v1485
      %v1487 = vrcp.pop %v1319
      %v1488 = vmul.f32 1.0, %v1487
      %v1489 = vrcp.pop %v1321
      %v1490 = vmul.f32 1.0, %v1489
      %v1491 = vrcp.pop %v1323
      %v1492 = vmul.f32 1.0, %v1491
      %v1493 = vrcp.pop %v1325
      %v1494 = vmul.f32 1.0, %v1493
      %v1495 = vrcp.pop %v1327
      %v1496 = vmul.f32 1.0, %v1495
      %v1497 = vmul.f32 %v1443, %v1482
      %v1498 = vmul.f32 %v1448, %v1484
      %v1499 = vmul.f32 %v1453, %v1486
      %v1500 = vmul.f32 %v1458, %v1488
      %v1501 = vmul.f32 %v1463, %v1490
      %v1502 = vmul.f32 %v1468, %v1492
      %v1503 = vmul.f32 %v1473, %v1494
      %v1504 = vmul.f32 %v1478, %v1496
      %1505 = vset.pattern.permute.xlu0 4
      %1506 = vperm.xlu0 %1505, %v316
      %v1507 = vpop.permute.xlu0 %1506
      %1509 = vset.pattern.permute.xlu0 4
      %1510 = vperm.xlu0 %1509, %v317
      %v1511 = vpop.permute.xlu0 %1510
      %1513 = vset.pattern.permute.xlu0 4
      %1514 = vperm.xlu0 %1513, %v318
      %v1515 = vpop.permute.xlu0 %1514
      %1517 = vset.pattern.permute.xlu0 4
      %1518 = vperm.xlu0 %1517, %v319
      %v1519 = vpop.permute.xlu0 %1518
      %1521 = vset.pattern.permute.xlu0 4
      %1522 = vperm.xlu0 %1521, %v320
      %v1523 = vpop.permute.xlu0 %1522
      %1525 = vset.pattern.permute.xlu0 4
      %1526 = vperm.xlu0 %1525, %v321
      %v1527 = vpop.permute.xlu0 %1526
      %1529 = vset.pattern.permute.xlu0 4
      %1530 = vperm.xlu0 %1529, %v322
      %v1531 = vpop.permute.xlu0 %1530
      %1533 = vset.pattern.permute.xlu0 4
      %1534 = vperm.xlu0 %1533, %v323
      %v1535 = vpop.permute.xlu0 %1534
      %v1537 = vlaneseq
      %v1538 = vshrl.u32 %v1537, 7
      %v1539 = vsub.s32 4, %v1538
      %v1540 = vrot.slane %v324, %v1539
      %v1541 = vadd.f32 %v1507, %v1540
      %v1542 = vadd.f32 %v1511, %v1540
      %v1543 = vadd.f32 %v1515, %v1540
      %v1544 = vadd.f32 %v1519, %v1540
      %v1545 = vadd.f32 %v1523, %v1540
      %v1546 = vadd.f32 %v1527, %v1540
      %v1547 = vadd.f32 %v1531, %v1540
      %v1548 = vadd.f32 %v1535, %v1540
      %v1549 = vmul.f32 %v1541, 0.2
      %v1550 = vmul.f32 %v1542, 0.2
      %v1551 = vmul.f32 %v1543, 0.2
      %v1552 = vmul.f32 %v1544, 0.2
      %v1553 = vmul.f32 %v1545, 0.2
      %v1554 = vmul.f32 %v1546, 0.2
      %v1555 = vmul.f32 %v1547, 0.2
      %v1556 = vmul.f32 %v1548, 0.2
      %v1557 = vmax.f32 %v1541, %v1549
      %v1558 = vmax.f32 %v1542, %v1550
      %v1559 = vmax.f32 %v1543, %v1551
      %v1560 = vmax.f32 %v1544, %v1552
      %v1561 = vmax.f32 %v1545, %v1553
      %v1562 = vmax.f32 %v1546, %v1554
      %v1563 = vmax.f32 %v1547, %v1555
      %v1564 = vmax.f32 %v1548, %v1556
      %v1565 = vadd.f32 %v1557, %v276
      %v1566 = vadd.f32 %v1558, %v277
      %v1567 = vadd.f32 %v1559, %v278
      %v1568 = vadd.f32 %v1560, %v279
      %v1569 = vadd.f32 %v1561, %v280
      %v1570 = vadd.f32 %v1562, %v281
      %v1571 = vadd.f32 %v1563, %v282
      %v1572 = vadd.f32 %v1564, %v283
      %1573 = vmax.xlane.f32.xlu0 %v1565
      %v1574 = vpop.xlane.xlu0 %1573
      %1575 = vmax.xlane.f32.xlu0 %v1566
      %v1576 = vpop.xlane.xlu0 %1575
      %1577 = vmax.xlane.f32.xlu0 %v1567
      %v1578 = vpop.xlane.xlu0 %1577
      %1579 = vmax.xlane.f32.xlu0 %v1568
      %v1580 = vpop.xlane.xlu0 %1579
      %1581 = vmax.xlane.f32.xlu0 %v1569
      %v1582 = vpop.xlane.xlu0 %1581
      %1583 = vmax.xlane.f32.xlu0 %v1570
      %v1584 = vpop.xlane.xlu0 %1583
      %1585 = vmax.xlane.f32.xlu0 %v1571
      %v1586 = vpop.xlane.xlu0 %1585
      %1587 = vmax.xlane.f32.xlu0 %v1572
      %v1588 = vpop.xlane.xlu0 %1587
      %v1589 = vsub.f32 %v1565, %v1574
      %v1590 = vsub.f32 %v1566, %v1576
      %v1591 = vsub.f32 %v1567, %v1578
      %v1592 = vsub.f32 %v1568, %v1580
      %v1593 = vsub.f32 %v1569, %v1582
      %v1594 = vsub.f32 %v1570, %v1584
      %v1595 = vsub.f32 %v1571, %v1586
      %v1596 = vsub.f32 %v1572, %v1588
      %v1597 = vmul.f32 %v1589, 1.442695
      %v1598 = vpow.pop %v1597
      %v1599 = vmul.f32 %v1590, 1.442695
      %v1600 = vpow.pop %v1599
      %v1601 = vmul.f32 %v1591, 1.442695
      %v1602 = vpow.pop %v1601
      %v1603 = vmul.f32 %v1592, 1.442695
      %v1604 = vpow.pop %v1603
      %v1605 = vmul.f32 %v1593, 1.442695
      %v1606 = vpow.pop %v1605
      %v1607 = vmul.f32 %v1594, 1.442695
      %v1608 = vpow.pop %v1607
      %v1609 = vmul.f32 %v1595, 1.442695
      %v1610 = vpow.pop %v1609
      %v1611 = vmul.f32 %v1596, 1.442695
      %v1612 = vpow.pop %v1611
      %1613 = vadd.xlane.f32.xlu0 %v1598
      %v1614 = vpop.xlane.xlu0 %1613
      %1615 = vadd.xlane.f32.xlu0 %v1600
      %v1616 = vpop.xlane.xlu0 %1615
      %1617 = vadd.xlane.f32.xlu0 %v1602
      %v1618 = vpop.xlane.xlu0 %1617
      %1619 = vadd.xlane.f32.xlu0 %v1604
      %v1620 = vpop.xlane.xlu0 %1619
      %1621 = vadd.xlane.f32.xlu0 %v1606
      %v1622 = vpop.xlane.xlu0 %1621
      %1623 = vadd.xlane.f32.xlu0 %v1608
      %v1624 = vpop.xlane.xlu0 %1623
      %1625 = vadd.xlane.f32.xlu0 %v1610
      %v1626 = vpop.xlane.xlu0 %1625
      %1627 = vadd.xlane.f32.xlu0 %v1612
      %v1628 = vpop.xlane.xlu0 %1627
      %1629 = vrot.lane.b32.xlu0 %v300, 96
      %v1630 = vpop.permute.xlu0 %1629
      %1631 = vrot.lane.b32.xlu0 %v301, 96
      %v1632 = vpop.permute.xlu0 %1631
      %1633 = vrot.lane.b32.xlu0 %v302, 96
      %v1634 = vpop.permute.xlu0 %1633
      %1635 = vrot.lane.b32.xlu0 %v303, 96
      %v1636 = vpop.permute.xlu0 %1635
      %1637 = vrot.lane.b32.xlu0 %v304, 96
      %v1638 = vpop.permute.xlu0 %1637
      %1639 = vrot.lane.b32.xlu0 %v305, 96
      %v1640 = vpop.permute.xlu0 %1639
      %1641 = vrot.lane.b32.xlu0 %v306, 96
      %v1642 = vpop.permute.xlu0 %1641
      %1643 = vrot.lane.b32.xlu0 %v307, 96
      %v1644 = vpop.permute.xlu0 %1643
      %1645 = vrot.lane.b32.xlu0 %v308, 96
      %v1646 = vpop.permute.xlu0 %1645
      %1647 = vrot.lane.b32.xlu0 %v309, 96
      %v1648 = vpop.permute.xlu0 %1647
      %1649 = vrot.lane.b32.xlu0 %v310, 96
      %v1650 = vpop.permute.xlu0 %1649
      %1651 = vrot.lane.b32.xlu0 %v311, 96
      %v1652 = vpop.permute.xlu0 %1651
      %1653 = vrot.lane.b32.xlu0 %v312, 96
      %v1654 = vpop.permute.xlu0 %1653
      %1655 = vrot.lane.b32.xlu0 %v313, 96
      %v1656 = vpop.permute.xlu0 %1655
      %1657 = vrot.lane.b32.xlu0 %v314, 96
      %v1658 = vpop.permute.xlu0 %1657
      %1659 = vrot.lane.b32.xlu0 %v315, 96
      %v1660 = vpop.permute.xlu0 %1659
      %1677 = vmatprep.subr.mxu0 0.0
      %1678 = vmatpush1.msra.mxu0 %v1630
      %1679 = vmatprep.subr.mxu0 0.0
      %1680 = vmatpush1.msra.mxu0 %v1632
      %1681 = vmatprep.subr.mxu0 0.0
      %1682 = vmatpush1.msra.mxu0 %v1634
      %1683 = vmatprep.subr.mxu0 0.0
      %1684 = vmatpush1.msra.mxu0 %v1636
      %1685 = vmatprep.subr.mxu0 0.0
      %1686 = vmatpush1.msra.mxu0 %v1638
      %1687 = vmatprep.subr.mxu0 0.0
      %1688 = vmatpush1.msra.mxu0 %v1640
      %1689 = vmatprep.subr.mxu0 0.0
      %1690 = vmatpush1.msra.mxu0 %v1642
      %1691 = vmatprep.subr.mxu0 0.0
      %1692 = vmatpush1.msra.mxu0 %v1644
      %1693 = vmatprep.subr.mxu0 0.0
      %1694 = vmatpush1.msra.mxu0 %v1646
      %1695 = vmatprep.subr.mxu0 0.0
      %1696 = vmatpush1.msra.mxu0 %v1648
      %1697 = vmatprep.subr.mxu0 0.0
      %1698 = vmatpush1.msra.mxu0 %v1650
      %1699 = vmatprep.subr.mxu0 0.0
      %1700 = vmatpush1.msra.mxu0 %v1652
      %1701 = vmatprep.subr.mxu0 0.0
      %1702 = vmatpush1.msra.mxu0 %v1654
      %1703 = vmatprep.subr.mxu0 0.0
      %1704 = vmatpush1.msra.mxu0 %v1656
      %1705 = vmatprep.subr.mxu0 0.0
      %1706 = vmatpush1.msra.mxu0 %v1658
      %1707 = vmatprep.subr.mxu0 0.0
      %1708 = vmatpush1.msra.mxu0 %v1660
      %1709 = vmatprep.subr.mxu0 0.0
      %1710 = vmatpush1.msra.mxu0 0.0
      %1711 = vmatprep.subr.mxu0 0.0
      %1712 = vmatpush1.msra.mxu0 0.0
      %1713 = vmatprep.subr.mxu0 0.0
      %1714 = vmatpush1.msra.mxu0 0.0
      %1715 = vmatprep.subr.mxu0 0.0
      %1716 = vmatpush1.msra.mxu0 0.0
      %1717 = vmatprep.subr.mxu0 0.0
      %1718 = vmatpush1.msra.mxu0 0.0
      %1719 = vmatprep.subr.mxu0 0.0
      %1720 = vmatpush1.msra.mxu0 0.0
      %1721 = vmatprep.subr.mxu0 0.0
      %1722 = vmatpush1.msra.mxu0 0.0
      %1723 = vmatprep.subr.mxu0 0.0
      %1724 = vmatpush1.msra.mxu0 0.0
      %1725 = vmatprep.subr.mxu0 0.0
      %1726 = vmatpush1.msra.mxu0 0.0
      %1727 = vmatprep.subr.mxu0 0.0
      %1728 = vmatpush1.msra.mxu0 0.0
      %1729 = vmatprep.subr.mxu0 0.0
      %1730 = vmatpush1.msra.mxu0 0.0
      %1731 = vmatprep.subr.mxu0 0.0
      %1732 = vmatpush1.msra.mxu0 0.0
      %1733 = vmatprep.subr.mxu0 0.0
      %1734 = vmatpush1.msra.mxu0 0.0
      %1735 = vmatprep.subr.mxu0 0.0
      %1736 = vmatpush1.msra.mxu0 0.0
      %1737 = vmatprep.subr.mxu0 0.0
      %1738 = vmatpush1.msra.mxu0 0.0
      %1739 = vmatprep.subr.mxu0 0.0
      %1740 = vmatpush1.msra.mxu0 0.0
      %1741 = vmatprep.mubr.f32.mxu0 0.0
      %1742 = vmatmul.mubr.f32.gmra.mrb[0].mxu0 %v1598
      %v1743 = vpop.f32.mrb[0].mxu0
      %v1744 = vadd.f32 0.0, %v1743
      %v1745 = vpop.f32.mrb[0].mxu0
      %1746 = vmatprep.mubr.f32.mxu0 0.0
      %1747 = vmatmul.mubr.f32.gmra.mrb[0].mxu0 %v1600
      %v1748 = vpop.f32.mrb[0].mxu0
      %v1749 = vadd.f32 0.0, %v1748
      %v1750 = vpop.f32.mrb[0].mxu0
      %1751 = vmatprep.mubr.f32.mxu0 0.0
      %1752 = vmatmul.mubr.f32.gmra.mrb[0].mxu0 %v1602
      %v1753 = vpop.f32.mrb[0].mxu0
      %v1754 = vadd.f32 0.0, %v1753
      %v1755 = vpop.f32.mrb[0].mxu0
      %1756 = vmatprep.mubr.f32.mxu0 0.0
      %1757 = vmatmul.mubr.f32.gmra.mrb[0].mxu0 %v1604
      %v1758 = vpop.f32.mrb[0].mxu0
      %v1759 = vadd.f32 0.0, %v1758
      %v1760 = vpop.f32.mrb[0].mxu0
      %1761 = vmatprep.mubr.f32.mxu0 0.0
      %1762 = vmatmul.mubr.f32.gmra.mrb[0].mxu0 %v1606
      %v1763 = vpop.f32.mrb[0].mxu0
      %v1764 = vadd.f32 0.0, %v1763
      %v1765 = vpop.f32.mrb[0].mxu0
      %1766 = vmatprep.mubr.f32.mxu0 0.0
      %1767 = vmatmul.mubr.f32.gmra.mrb[0].mxu0 %v1608
      %v1768 = vpop.f32.mrb[0].mxu0
      %v1769 = vadd.f32 0.0, %v1768
      %v1770 = vpop.f32.mrb[0].mxu0
      %1771 = vmatprep.mubr.f32.mxu0 0.0
      %1772 = vmatmul.mubr.f32.gmra.mrb[0].mxu0 %v1610
      %v1773 = vpop.f32.mrb[0].mxu0
      %v1774 = vadd.f32 0.0, %v1773
      %v1775 = vpop.f32.mrb[0].mxu0
      %1776 = vmatprep.mubr.f32.mxu0 0.0
      %1777 = vmatmul.mubr.f32.gmra.mrb[0].mxu0 %v1612
      %v1778 = vpop.f32.mrb[0].mxu0
      %v1779 = vadd.f32 0.0, %v1778
      %v1780 = vpop.f32.mrb[0].mxu0
      %1781 = vdwg.mxu0
      %v1782 = vrcp.pop %v1614
      %v1783 = vmul.f32 1.0, %v1782
      %v1784 = vrcp.pop %v1616
      %v1785 = vmul.f32 1.0, %v1784
      %v1786 = vrcp.pop %v1618
      %v1787 = vmul.f32 1.0, %v1786
      %v1788 = vrcp.pop %v1620
      %v1789 = vmul.f32 1.0, %v1788
      %v1790 = vrcp.pop %v1622
      %v1791 = vmul.f32 1.0, %v1790
      %v1792 = vrcp.pop %v1624
      %v1793 = vmul.f32 1.0, %v1792
      %v1794 = vrcp.pop %v1626
      %v1795 = vmul.f32 1.0, %v1794
      %v1796 = vrcp.pop %v1628
      %v1797 = vmul.f32 1.0, %v1796
      %v1798 = vmul.f32 %v1744, %v1783
      %v1799 = vmul.f32 %v1749, %v1785
      %v1800 = vmul.f32 %v1754, %v1787
      %v1801 = vmul.f32 %v1759, %v1789
      %v1802 = vmul.f32 %v1764, %v1791
      %v1803 = vmul.f32 %v1769, %v1793
      %v1804 = vmul.f32 %v1774, %v1795
      %v1805 = vmul.f32 %v1779, %v1797
      %1806 = vset.pattern.permute.xlu0 5
      %1807 = vperm.xlu0 %1806, %v316
      %v1808 = vpop.permute.xlu0 %1807
      %1810 = vset.pattern.permute.xlu0 5
      %1811 = vperm.xlu0 %1810, %v317
      %v1812 = vpop.permute.xlu0 %1811
      %1814 = vset.pattern.permute.xlu0 5
      %1815 = vperm.xlu0 %1814, %v318
      %v1816 = vpop.permute.xlu0 %1815
      %1818 = vset.pattern.permute.xlu0 5
      %1819 = vperm.xlu0 %1818, %v319
      %v1820 = vpop.permute.xlu0 %1819
      %1822 = vset.pattern.permute.xlu0 5
      %1823 = vperm.xlu0 %1822, %v320
      %v1824 = vpop.permute.xlu0 %1823
      %1826 = vset.pattern.permute.xlu0 5
      %1827 = vperm.xlu0 %1826, %v321
      %v1828 = vpop.permute.xlu0 %1827
      %1830 = vset.pattern.permute.xlu0 5
      %1831 = vperm.xlu0 %1830, %v322
      %v1832 = vpop.permute.xlu0 %1831
      %1834 = vset.pattern.permute.xlu0 5
      %1835 = vperm.xlu0 %1834, %v323
      %v1836 = vpop.permute.xlu0 %1835
      %v1838 = vlaneseq
      %v1839 = vshrl.u32 %v1838, 7
      %v1840 = vsub.s32 5, %v1839
      %v1841 = vrot.slane %v324, %v1840
      %v1842 = vadd.f32 %v1808, %v1841
      %v1843 = vadd.f32 %v1812, %v1841
      %v1844 = vadd.f32 %v1816, %v1841
      %v1845 = vadd.f32 %v1820, %v1841
      %v1846 = vadd.f32 %v1824, %v1841
      %v1847 = vadd.f32 %v1828, %v1841
      %v1848 = vadd.f32 %v1832, %v1841
      %v1849 = vadd.f32 %v1836, %v1841
      %v1850 = vmul.f32 %v1842, 0.2
      %v1851 = vmul.f32 %v1843, 0.2
      %v1852 = vmul.f32 %v1844, 0.2
      %v1853 = vmul.f32 %v1845, 0.2
      %v1854 = vmul.f32 %v1846, 0.2
      %v1855 = vmul.f32 %v1847, 0.2
      %v1856 = vmul.f32 %v1848, 0.2
      %v1857 = vmul.f32 %v1849, 0.2
      %v1858 = vmax.f32 %v1842, %v1850
      %v1859 = vmax.f32 %v1843, %v1851
      %v1860 = vmax.f32 %v1844, %v1852
      %v1861 = vmax.f32 %v1845, %v1853
      %v1862 = vmax.f32 %v1846, %v1854
      %v1863 = vmax.f32 %v1847, %v1855
      %v1864 = vmax.f32 %v1848, %v1856
      %v1865 = vmax.f32 %v1849, %v1857
      %v1866 = vadd.f32 %v1858, %v276
      %v1867 = vadd.f32 %v1859, %v277
      %v1868 = vadd.f32 %v1860, %v278
      %v1869 = vadd.f32 %v1861, %v279
      %v1870 = vadd.f32 %v1862, %v280
      %v1871 = vadd.f32 %v1863, %v281
      %v1872 = vadd.f32 %v1864, %v282
      %v1873 = vadd.f32 %v1865, %v283
      %1874 = vmax.xlane.f32.xlu0 %v1866
      %v1875 = vpop.xlane.xlu0 %1874
      %1876 = vmax.xlane.f32.xlu0 %v1867
      %v1877 = vpop.xlane.xlu0 %1876
      %1878 = vmax.xlane.f32.xlu0 %v1868
      %v1879 = vpop.xlane.xlu0 %1878
      %1880 = vmax.xlane.f32.xlu0 %v1869
      %v1881 = vpop.xlane.xlu0 %1880
      %1882 = vmax.xlane.f32.xlu0 %v1870
      %v1883 = vpop.xlane.xlu0 %1882
      %1884 = vmax.xlane.f32.xlu0 %v1871
      %v1885 = vpop.xlane.xlu0 %1884
      %1886 = vmax.xlane.f32.xlu0 %v1872
      %v1887 = vpop.xlane.xlu0 %1886
      %1888 = vmax.xlane.f32.xlu0 %v1873
      %v1889 = vpop.xlane.xlu0 %1888
      %v1890 = vsub.f32 %v1866, %v1875
      %v1891 = vsub.f32 %v1867, %v1877
      %v1892 = vsub.f32 %v1868, %v1879
      %v1893 = vsub.f32 %v1869, %v1881
      %v1894 = vsub.f32 %v1870, %v1883
      %v1895 = vsub.f32 %v1871, %v1885
      %v1896 = vsub.f32 %v1872, %v1887
      %v1897 = vsub.f32 %v1873, %v1889
      %v1898 = vmul.f32 %v1890, 1.442695
      %v1899 = vpow.pop %v1898
      %v1900 = vmul.f32 %v1891, 1.442695
      %v1901 = vpow.pop %v1900
      %v1902 = vmul.f32 %v1892, 1.442695
      %v1903 = vpow.pop %v1902
      %v1904 = vmul.f32 %v1893, 1.442695
      %v1905 = vpow.pop %v1904
      %v1906 = vmul.f32 %v1894, 1.442695
      %v1907 = vpow.pop %v1906
      %v1908 = vmul.f32 %v1895, 1.442695
      %v1909 = vpow.pop %v1908
      %v1910 = vmul.f32 %v1896, 1.442695
      %v1911 = vpow.pop %v1910
      %v1912 = vmul.f32 %v1897, 1.442695
      %v1913 = vpow.pop %v1912
      %1914 = vadd.xlane.f32.xlu0 %v1899
      %v1915 = vpop.xlane.xlu0 %1914
      %1916 = vadd.xlane.f32.xlu0 %v1901
      %v1917 = vpop.xlane.xlu0 %1916
      %1918 = vadd.xlane.f32.xlu0 %v1903
      %v1919 = vpop.xlane.xlu0 %1918
      %1920 = vadd.xlane.f32.xlu0 %v1905
      %v1921 = vpop.xlane.xlu0 %1920
      %1922 = vadd.xlane.f32.xlu0 %v1907
      %v1923 = vpop.xlane.xlu0 %1922
      %1924 = vadd.xlane.f32.xlu0 %v1909
      %v1925 = vpop.xlane.xlu0 %1924
      %1926 = vadd.xlane.f32.xlu0 %v1911
      %v1927 = vpop.xlane.xlu0 %1926
      %1928 = vadd.xlane.f32.xlu0 %v1913
      %v1929 = vpop.xlane.xlu0 %1928
      %1930 = vrot.lane.b32.xlu0 %v300, 88
      %v1931 = vpop.permute.xlu0 %1930
      %1932 = vrot.lane.b32.xlu0 %v301, 88
      %v1933 = vpop.permute.xlu0 %1932
      %1934 = vrot.lane.b32.xlu0 %v302, 88
      %v1935 = vpop.permute.xlu0 %1934
      %1936 = vrot.lane.b32.xlu0 %v303, 88
      %v1937 = vpop.permute.xlu0 %1936
      %1938 = vrot.lane.b32.xlu0 %v304, 88
      %v1939 = vpop.permute.xlu0 %1938
      %1940 = vrot.lane.b32.xlu0 %v305, 88
      %v1941 = vpop.permute.xlu0 %1940
      %1942 = vrot.lane.b32.xlu0 %v306, 88
      %v1943 = vpop.permute.xlu0 %1942
      %1944 = vrot.lane.b32.xlu0 %v307, 88
      %v1945 = vpop.permute.xlu0 %1944
      %1946 = vrot.lane.b32.xlu0 %v308, 88
      %v1947 = vpop.permute.xlu0 %1946
      %1948 = vrot.lane.b32.xlu0 %v309, 88
      %v1949 = vpop.permute.xlu0 %1948
      %1950 = vrot.lane.b32.xlu0 %v310, 88
      %v1951 = vpop.permute.xlu0 %1950
      %1952 = vrot.lane.b32.xlu0 %v311, 88
      %v1953 = vpop.permute.xlu0 %1952
      %1954 = vrot.lane.b32.xlu0 %v312, 88
      %v1955 = vpop.permute.xlu0 %1954
      %1956 = vrot.lane.b32.xlu0 %v313, 88
      %v1957 = vpop.permute.xlu0 %1956
      %1958 = vrot.lane.b32.xlu0 %v314, 88
      %v1959 = vpop.permute.xlu0 %1958
      %1960 = vrot.lane.b32.xlu0 %v315, 88
      %v1961 = vpop.permute.xlu0 %1960
      %1978 = vmatprep.subr.mxu0 0.0
      %1979 = vmatpush1.msra.mxu0 %v1931
      %1980 = vmatprep.subr.mxu0 0.0
      %1981 = vmatpush1.msra.mxu0 %v1933
      %1982 = vmatprep.subr.mxu0 0.0
      %1983 = vmatpush1.msra.mxu0 %v1935
      %1984 = vmatprep.subr.mxu0 0.0
      %1985 = vmatpush1.msra.mxu0 %v1937
      %1986 = vmatprep.subr.mxu0 0.0
      %1987 = vmatpush1.msra.mxu0 %v1939
      %1988 = vmatprep.subr.mxu0 0.0
      %1989 = vmatpush1.msra.mxu0 %v1941
      %1990 = vmatprep.subr.mxu0 0.0
      %1991 = vmatpush1.msra.mxu0 %v1943
      %1992 = vmatprep.subr.mxu0 0.0
      %1993 = vmatpush1.msra.mxu0 %v1945
      %1994 = vmatprep.subr.mxu0 0.0
      %1995 = vmatpush1.msra.mxu0 %v1947
      %1996 = vmatprep.subr.mxu0 0.0
      %1997 = vmatpush1.msra.mxu0 %v1949
      %1998 = vmatprep.subr.mxu0 0.0
      %1999 = vmatpush1.msra.mxu0 %v1951
      %2000 = vmatprep.subr.mxu0 0.0
      %2001 = vmatpush1.msra.mxu0 %v1953
      %2002 = vmatprep.subr.mxu0 0.0
      %2003 = vmatpush1.msra.mxu0 %v1955
      %2004 = vmatprep.subr.mxu0 0.0
      %2005 = vmatpush1.msra.mxu0 %v1957
      %2006 = vmatprep.subr.mxu0 0.0
      %2007 = vmatpush1.msra.mxu0 %v1959
      %2008 = vmatprep.subr.mxu0 0.0
      %2009 = vmatpush1.msra.mxu0 %v1961
      %2010 = vmatprep.subr.mxu0 0.0
      %2011 = vmatpush1.msra.mxu0 0.0
      %2012 = vmatprep.subr.mxu0 0.0
      %2013 = vmatpush1.msra.mxu0 0.0
      %2014 = vmatprep.subr.mxu0 0.0
      %2015 = vmatpush1.msra.mxu0 0.0
      %2016 = vmatprep.subr.mxu0 0.0
      %2017 = vmatpush1.msra.mxu0 0.0
      %2018 = vmatprep.subr.mxu0 0.0
      %2019 = vmatpush1.msra.mxu0 0.0
      %2020 = vmatprep.subr.mxu0 0.0
      %2021 = vmatpush1.msra.mxu0 0.0
      %2022 = vmatprep.subr.mxu0 0.0
      %2023 = vmatpush1.msra.mxu0 0.0
      %2024 = vmatprep.subr.mxu0 0.0
      %2025 = vmatpush1.msra.mxu0 0.0
      %2026 = vmatprep.subr.mxu0 0.0
      %2027 = vmatpush1.msra.mxu0 0.0
      %2028 = vmatprep.subr.mxu0 0.0
      %2029 = vmatpush1.msra.mxu0 0.0
      %2030 = vmatprep.subr.mxu0 0.0
      %2031 = vmatpush1.msra.mxu0 0.0
      %2032 = vmatprep.subr.mxu0 0.0
      %2033 = vmatpush1.msra.mxu0 0.0
      %2034 = vmatprep.subr.mxu0 0.0
      %2035 = vmatpush1.msra.mxu0 0.0
      %2036 = vmatprep.subr.mxu0 0.0
      %2037 = vmatpush1.msra.mxu0 0.0
      %2038 = vmatprep.subr.mxu0 0.0
      %2039 = vmatpush1.msra.mxu0 0.0
      %2040 = vmatprep.subr.mxu0 0.0
      %2041 = vmatpush1.msra.mxu0 0.0
      %2042 = vmatprep.mubr.f32.mxu0 0.0
      %2043 = vmatmul.mubr.f32.gmra.mrb[0].mxu0 %v1899
      %v2044 = vpop.f32.mrb[0].mxu0
      %v2045 = vadd.f32 0.0, %v2044
      %v2046 = vpop.f32.mrb[0].mxu0
      %2047 = vmatprep.mubr.f32.mxu0 0.0
      %2048 = vmatmul.mubr.f32.gmra.mrb[0].mxu0 %v1901
      %v2049 = vpop.f32.mrb[0].mxu0
      %v2050 = vadd.f32 0.0, %v2049
      %v2051 = vpop.f32.mrb[0].mxu0
      %2052 = vmatprep.mubr.f32.mxu0 0.0
      %2053 = vmatmul.mubr.f32.gmra.mrb[0].mxu0 %v1903
      %v2054 = vpop.f32.mrb[0].mxu0
      %v2055 = vadd.f32 0.0, %v2054
      %v2056 = vpop.f32.mrb[0].mxu0
      %2057 = vmatprep.mubr.f32.mxu0 0.0
      %2058 = vmatmul.mubr.f32.gmra.mrb[0].mxu0 %v1905
      %v2059 = vpop.f32.mrb[0].mxu0
      %v2060 = vadd.f32 0.0, %v2059
      %v2061 = vpop.f32.mrb[0].mxu0
      %2062 = vmatprep.mubr.f32.mxu0 0.0
      %2063 = vmatmul.mubr.f32.gmra.mrb[0].mxu0 %v1907
      %v2064 = vpop.f32.mrb[0].mxu0
      %v2065 = vadd.f32 0.0, %v2064
      %v2066 = vpop.f32.mrb[0].mxu0
      %2067 = vmatprep.mubr.f32.mxu0 0.0
      %2068 = vmatmul.mubr.f32.gmra.mrb[0].mxu0 %v1909
      %v2069 = vpop.f32.mrb[0].mxu0
      %v2070 = vadd.f32 0.0, %v2069
      %v2071 = vpop.f32.mrb[0].mxu0
      %2072 = vmatprep.mubr.f32.mxu0 0.0
      %2073 = vmatmul.mubr.f32.gmra.mrb[0].mxu0 %v1911
      %v2074 = vpop.f32.mrb[0].mxu0
      %v2075 = vadd.f32 0.0, %v2074
      %v2076 = vpop.f32.mrb[0].mxu0
      %2077 = vmatprep.mubr.f32.mxu0 0.0
      %2078 = vmatmul.mubr.f32.gmra.mrb[0].mxu0 %v1913
      %v2079 = vpop.f32.mrb[0].mxu0
      %v2080 = vadd.f32 0.0, %v2079
      %v2081 = vpop.f32.mrb[0].mxu0
      %2082 = vdwg.mxu0
      %v2083 = vrcp.pop %v1915
      %v2084 = vmul.f32 1.0, %v2083
      %v2085 = vrcp.pop %v1917
      %v2086 = vmul.f32 1.0, %v2085
      %v2087 = vrcp.pop %v1919
      %v2088 = vmul.f32 1.0, %v2087
      %v2089 = vrcp.pop %v1921
      %v2090 = vmul.f32 1.0, %v2089
      %v2091 = vrcp.pop %v1923
      %v2092 = vmul.f32 1.0, %v2091
      %v2093 = vrcp.pop %v1925
      %v2094 = vmul.f32 1.0, %v2093
      %v2095 = vrcp.pop %v1927
      %v2096 = vmul.f32 1.0, %v2095
      %v2097 = vrcp.pop %v1929
      %v2098 = vmul.f32 1.0, %v2097
      %v2099 = vmul.f32 %v2045, %v2084
      %v2100 = vmul.f32 %v2050, %v2086
      %v2101 = vmul.f32 %v2055, %v2088
      %v2102 = vmul.f32 %v2060, %v2090
      %v2103 = vmul.f32 %v2065, %v2092
      %v2104 = vmul.f32 %v2070, %v2094
      %v2105 = vmul.f32 %v2075, %v2096
      %v2106 = vmul.f32 %v2080, %v2098
      %2107 = vset.pattern.permute.xlu0 6
      %2108 = vperm.xlu0 %2107, %v316
      %v2109 = vpop.permute.xlu0 %2108
      %2111 = vset.pattern.permute.xlu0 6
      %2112 = vperm.xlu0 %2111, %v317
      %v2113 = vpop.permute.xlu0 %2112
      %2115 = vset.pattern.permute.xlu0 6
      %2116 = vperm.xlu0 %2115, %v318
      %v2117 = vpop.permute.xlu0 %2116
      %2119 = vset.pattern.permute.xlu0 6
      %2120 = vperm.xlu0 %2119, %v319
      %v2121 = vpop.permute.xlu0 %2120
      %2123 = vset.pattern.permute.xlu0 6
      %2124 = vperm.xlu0 %2123, %v320
      %v2125 = vpop.permute.xlu0 %2124
      %2127 = vset.pattern.permute.xlu0 6
      %2128 = vperm.xlu0 %2127, %v321
      %v2129 = vpop.permute.xlu0 %2128
      %2131 = vset.pattern.permute.xlu0 6
      %2132 = vperm.xlu0 %2131, %v322
      %v2133 = vpop.permute.xlu0 %2132
      %2135 = vset.pattern.permute.xlu0 6
      %2136 = vperm.xlu0 %2135, %v323
      %v2137 = vpop.permute.xlu0 %2136
      %v2139 = vlaneseq
      %v2140 = vshrl.u32 %v2139, 7
      %v2141 = vsub.s32 6, %v2140
      %v2142 = vrot.slane %v324, %v2141
      %v2143 = vadd.f32 %v2109, %v2142
      %v2144 = vadd.f32 %v2113, %v2142
      %v2145 = vadd.f32 %v2117, %v2142
      %v2146 = vadd.f32 %v2121, %v2142
      %v2147 = vadd.f32 %v2125, %v2142
      %v2148 = vadd.f32 %v2129, %v2142
      %v2149 = vadd.f32 %v2133, %v2142
      %v2150 = vadd.f32 %v2137, %v2142
      %v2151 = vmul.f32 %v2143, 0.2
      %v2152 = vmul.f32 %v2144, 0.2
      %v2153 = vmul.f32 %v2145, 0.2
      %v2154 = vmul.f32 %v2146, 0.2
      %v2155 = vmul.f32 %v2147, 0.2
      %v2156 = vmul.f32 %v2148, 0.2
      %v2157 = vmul.f32 %v2149, 0.2
      %v2158 = vmul.f32 %v2150, 0.2
      %v2159 = vmax.f32 %v2143, %v2151
      %v2160 = vmax.f32 %v2144, %v2152
      %v2161 = vmax.f32 %v2145, %v2153
      %v2162 = vmax.f32 %v2146, %v2154
      %v2163 = vmax.f32 %v2147, %v2155
      %v2164 = vmax.f32 %v2148, %v2156
      %v2165 = vmax.f32 %v2149, %v2157
      %v2166 = vmax.f32 %v2150, %v2158
      %v2167 = vadd.f32 %v2159, %v276
      %v2168 = vadd.f32 %v2160, %v277
      %v2169 = vadd.f32 %v2161, %v278
      %v2170 = vadd.f32 %v2162, %v279
      %v2171 = vadd.f32 %v2163, %v280
      %v2172 = vadd.f32 %v2164, %v281
      %v2173 = vadd.f32 %v2165, %v282
      %v2174 = vadd.f32 %v2166, %v283
      %2175 = vmax.xlane.f32.xlu0 %v2167
      %v2176 = vpop.xlane.xlu0 %2175
      %2177 = vmax.xlane.f32.xlu0 %v2168
      %v2178 = vpop.xlane.xlu0 %2177
      %2179 = vmax.xlane.f32.xlu0 %v2169
      %v2180 = vpop.xlane.xlu0 %2179
      %2181 = vmax.xlane.f32.xlu0 %v2170
      %v2182 = vpop.xlane.xlu0 %2181
      %2183 = vmax.xlane.f32.xlu0 %v2171
      %v2184 = vpop.xlane.xlu0 %2183
      %2185 = vmax.xlane.f32.xlu0 %v2172
      %v2186 = vpop.xlane.xlu0 %2185
      %2187 = vmax.xlane.f32.xlu0 %v2173
      %v2188 = vpop.xlane.xlu0 %2187
      %2189 = vmax.xlane.f32.xlu0 %v2174
      %v2190 = vpop.xlane.xlu0 %2189
      %v2191 = vsub.f32 %v2167, %v2176
      %v2192 = vsub.f32 %v2168, %v2178
      %v2193 = vsub.f32 %v2169, %v2180
      %v2194 = vsub.f32 %v2170, %v2182
      %v2195 = vsub.f32 %v2171, %v2184
      %v2196 = vsub.f32 %v2172, %v2186
      %v2197 = vsub.f32 %v2173, %v2188
      %v2198 = vsub.f32 %v2174, %v2190
      %v2199 = vmul.f32 %v2191, 1.442695
      %v2200 = vpow.pop %v2199
      %v2201 = vmul.f32 %v2192, 1.442695
      %v2202 = vpow.pop %v2201
      %v2203 = vmul.f32 %v2193, 1.442695
      %v2204 = vpow.pop %v2203
      %v2205 = vmul.f32 %v2194, 1.442695
      %v2206 = vpow.pop %v2205
      %v2207 = vmul.f32 %v2195, 1.442695
      %v2208 = vpow.pop %v2207
      %v2209 = vmul.f32 %v2196, 1.442695
      %v2210 = vpow.pop %v2209
      %v2211 = vmul.f32 %v2197, 1.442695
      %v2212 = vpow.pop %v2211
      %v2213 = vmul.f32 %v2198, 1.442695
      %v2214 = vpow.pop %v2213
      %2215 = vadd.xlane.f32.xlu0 %v2200
      %v2216 = vpop.xlane.xlu0 %2215
      %2217 = vadd.xlane.f32.xlu0 %v2202
      %v2218 = vpop.xlane.xlu0 %2217
      %2219 = vadd.xlane.f32.xlu0 %v2204
      %v2220 = vpop.xlane.xlu0 %2219
      %2221 = vadd.xlane.f32.xlu0 %v2206
      %v2222 = vpop.xlane.xlu0 %2221
      %2223 = vadd.xlane.f32.xlu0 %v2208
      %v2224 = vpop.xlane.xlu0 %2223
      %2225 = vadd.xlane.f32.xlu0 %v2210
      %v2226 = vpop.xlane.xlu0 %2225
      %2227 = vadd.xlane.f32.xlu0 %v2212
      %v2228 = vpop.xlane.xlu0 %2227
      %2229 = vadd.xlane.f32.xlu0 %v2214
      %v2230 = vpop.xlane.xlu0 %2229
      %2231 = vrot.lane.b32.xlu0 %v300, 80
      %v2232 = vpop.permute.xlu0 %2231
      %2233 = vrot.lane.b32.xlu0 %v301, 80
      %v2234 = vpop.permute.xlu0 %2233
      %2235 = vrot.lane.b32.xlu0 %v302, 80
      %v2236 = vpop.permute.xlu0 %2235
      %2237 = vrot.lane.b32.xlu0 %v303, 80
      %v2238 = vpop.permute.xlu0 %2237
      %2239 = vrot.lane.b32.xlu0 %v304, 80
      %v2240 = vpop.permute.xlu0 %2239
      %2241 = vrot.lane.b32.xlu0 %v305, 80
      %v2242 = vpop.permute.xlu0 %2241
      %2243 = vrot.lane.b32.xlu0 %v306, 80
      %v2244 = vpop.permute.xlu0 %2243
      %2245 = vrot.lane.b32.xlu0 %v307, 80
      %v2246 = vpop.permute.xlu0 %2245
      %2247 = vrot.lane.b32.xlu0 %v308, 80
      %v2248 = vpop.permute.xlu0 %2247
      %2249 = vrot.lane.b32.xlu0 %v309, 80
      %v2250 = vpop.permute.xlu0 %2249
      %2251 = vrot.lane.b32.xlu0 %v310, 80
      %v2252 = vpop.permute.xlu0 %2251
      %2253 = vrot.lane.b32.xlu0 %v311, 80
      %v2254 = vpop.permute.xlu0 %2253
      %2255 = vrot.lane.b32.xlu0 %v312, 80
      %v2256 = vpop.permute.xlu0 %2255
      %2257 = vrot.lane.b32.xlu0 %v313, 80
      %v2258 = vpop.permute.xlu0 %2257
      %2259 = vrot.lane.b32.xlu0 %v314, 80
      %v2260 = vpop.permute.xlu0 %2259
      %2261 = vrot.lane.b32.xlu0 %v315, 80
      %v2262 = vpop.permute.xlu0 %2261
      %2279 = vmatprep.subr.mxu0 0.0
      %2280 = vmatpush1.msra.mxu0 %v2232
      %2281 = vmatprep.subr.mxu0 0.0
      %2282 = vmatpush1.msra.mxu0 %v2234
      %2283 = vmatprep.subr.mxu0 0.0
      %2284 = vmatpush1.msra.mxu0 %v2236
      %2285 = vmatprep.subr.mxu0 0.0
      %2286 = vmatpush1.msra.mxu0 %v2238
      %2287 = vmatprep.subr.mxu0 0.0
      %2288 = vmatpush1.msra.mxu0 %v2240
      %2289 = vmatprep.subr.mxu0 0.0
      %2290 = vmatpush1.msra.mxu0 %v2242
      %2291 = vmatprep.subr.mxu0 0.0
      %2292 = vmatpush1.msra.mxu0 %v2244
      %2293 = vmatprep.subr.mxu0 0.0
      %2294 = vmatpush1.msra.mxu0 %v2246
      %2295 = vmatprep.subr.mxu0 0.0
      %2296 = vmatpush1.msra.mxu0 %v2248
      %2297 = vmatprep.subr.mxu0 0.0
      %2298 = vmatpush1.msra.mxu0 %v2250
      %2299 = vmatprep.subr.mxu0 0.0
      %2300 = vmatpush1.msra.mxu0 %v2252
      %2301 = vmatprep.subr.mxu0 0.0
      %2302 = vmatpush1.msra.mxu0 %v2254
      %2303 = vmatprep.subr.mxu0 0.0
      %2304 = vmatpush1.msra.mxu0 %v2256
      %2305 = vmatprep.subr.mxu0 0.0
      %2306 = vmatpush1.msra.mxu0 %v2258
      %2307 = vmatprep.subr.mxu0 0.0
      %2308 = vmatpush1.msra.mxu0 %v2260
      %2309 = vmatprep.subr.mxu0 0.0
      %2310 = vmatpush1.msra.mxu0 %v2262
      %2311 = vmatprep.subr.mxu0 0.0
      %2312 = vmatpush1.msra.mxu0 0.0
      %2313 = vmatprep.subr.mxu0 0.0
      %2314 = vmatpush1.msra.mxu0 0.0
      %2315 = vmatprep.subr.mxu0 0.0
      %2316 = vmatpush1.msra.mxu0 0.0
      %2317 = vmatprep.subr.mxu0 0.0
      %2318 = vmatpush1.msra.mxu0 0.0
      %2319 = vmatprep.subr.mxu0 0.0
      %2320 = vmatpush1.msra.mxu0 0.0
      %2321 = vmatprep.subr.mxu0 0.0
      %2322 = vmatpush1.msra.mxu0 0.0
      %2323 = vmatprep.subr.mxu0 0.0
      %2324 = vmatpush1.msra.mxu0 0.0
      %2325 = vmatprep.subr.mxu0 0.0
      %2326 = vmatpush1.msra.mxu0 0.0
      %2327 = vmatprep.subr.mxu0 0.0
      %2328 = vmatpush1.msra.mxu0 0.0
      %2329 = vmatprep.subr.mxu0 0.0
      %2330 = vmatpush1.msra.mxu0 0.0
      %2331 = vmatprep.subr.mxu0 0.0
      %2332 = vmatpush1.msra.mxu0 0.0
      %2333 = vmatprep.subr.mxu0 0.0
      %2334 = vmatpush1.msra.mxu0 0.0
      %2335 = vmatprep.subr.mxu0 0.0
      %2336 = vmatpush1.msra.mxu0 0.0
      %2337 = vmatprep.subr.mxu0 0.0
      %2338 = vmatpush1.msra.mxu0 0.0
      %2339 = vmatprep.subr.mxu0 0.0
      %2340 = vmatpush1.msra.mxu0 0.0
      %2341 = vmatprep.subr.mxu0 0.0
      %2342 = vmatpush1.msra.mxu0 0.0
      %2343 = vmatprep.mubr.f32.mxu0 0.0
      %2344 = vmatmul.mubr.f32.gmra.mrb[0].mxu0 %v2200
      %v2345 = vpop.f32.mrb[0].mxu0
      %v2346 = vadd.f32 0.0, %v2345
      %v2347 = vpop.f32.mrb[0].mxu0
      %2348 = vmatprep.mubr.f32.mxu0 0.0
      %2349 = vmatmul.mubr.f32.gmra.mrb[0].mxu0 %v2202
      %v2350 = vpop.f32.mrb[0].mxu0
      %v2351 = vadd.f32 0.0, %v2350
      %v2352 = vpop.f32.mrb[0].mxu0
      %2353 = vmatprep.mubr.f32.mxu0 0.0
      %2354 = vmatmul.mubr.f32.gmra.mrb[0].mxu0 %v2204
      %v2355 = vpop.f32.mrb[0].mxu0
      %v2356 = vadd.f32 0.0, %v2355
      %v2357 = vpop.f32.mrb[0].mxu0
      %2358 = vmatprep.mubr.f32.mxu0 0.0
      %2359 = vmatmul.mubr.f32.gmra.mrb[0].mxu0 %v2206
      %v2360 = vpop.f32.mrb[0].mxu0
      %v2361 = vadd.f32 0.0, %v2360
      %v2362 = vpop.f32.mrb[0].mxu0
      %2363 = vmatprep.mubr.f32.mxu0 0.0
      %2364 = vmatmul.mubr.f32.gmra.mrb[0].mxu0 %v2208
      %v2365 = vpop.f32.mrb[0].mxu0
      %v2366 = vadd.f32 0.0, %v2365
      %v2367 = vpop.f32.mrb[0].mxu0
      %2368 = vmatprep.mubr.f32.mxu0 0.0
      %2369 = vmatmul.mubr.f32.gmra.mrb[0].mxu0 %v2210
      %v2370 = vpop.f32.mrb[0].mxu0
      %v2371 = vadd.f32 0.0, %v2370
      %v2372 = vpop.f32.mrb[0].mxu0
      %2373 = vmatprep.mubr.f32.mxu0 0.0
      %2374 = vmatmul.mubr.f32.gmra.mrb[0].mxu0 %v2212
      %v2375 = vpop.f32.mrb[0].mxu0
      %v2376 = vadd.f32 0.0, %v2375
      %v2377 = vpop.f32.mrb[0].mxu0
      %2378 = vmatprep.mubr.f32.mxu0 0.0
      %2379 = vmatmul.mubr.f32.gmra.mrb[0].mxu0 %v2214
      %v2380 = vpop.f32.mrb[0].mxu0
      %v2381 = vadd.f32 0.0, %v2380
      %v2382 = vpop.f32.mrb[0].mxu0
      %2383 = vdwg.mxu0
      %v2384 = vrcp.pop %v2216
      %v2385 = vmul.f32 1.0, %v2384
      %v2386 = vrcp.pop %v2218
      %v2387 = vmul.f32 1.0, %v2386
      %v2388 = vrcp.pop %v2220
      %v2389 = vmul.f32 1.0, %v2388
      %v2390 = vrcp.pop %v2222
      %v2391 = vmul.f32 1.0, %v2390
      %v2392 = vrcp.pop %v2224
      %v2393 = vmul.f32 1.0, %v2392
      %v2394 = vrcp.pop %v2226
      %v2395 = vmul.f32 1.0, %v2394
      %v2396 = vrcp.pop %v2228
      %v2397 = vmul.f32 1.0, %v2396
      %v2398 = vrcp.pop %v2230
      %v2399 = vmul.f32 1.0, %v2398
      %v2400 = vmul.f32 %v2346, %v2385
      %v2401 = vmul.f32 %v2351, %v2387
      %v2402 = vmul.f32 %v2356, %v2389
      %v2403 = vmul.f32 %v2361, %v2391
      %v2404 = vmul.f32 %v2366, %v2393
      %v2405 = vmul.f32 %v2371, %v2395
      %v2406 = vmul.f32 %v2376, %v2397
      %v2407 = vmul.f32 %v2381, %v2399
      %2408 = vset.pattern.permute.xlu0 7
      %2409 = vperm.xlu0 %2408, %v316
      %v2410 = vpop.permute.xlu0 %2409
      %2412 = vset.pattern.permute.xlu0 7
      %2413 = vperm.xlu0 %2412, %v317
      %v2414 = vpop.permute.xlu0 %2413
      %2416 = vset.pattern.permute.xlu0 7
      %2417 = vperm.xlu0 %2416, %v318
      %v2418 = vpop.permute.xlu0 %2417
      %2420 = vset.pattern.permute.xlu0 7
      %2421 = vperm.xlu0 %2420, %v319
      %v2422 = vpop.permute.xlu0 %2421
      %2424 = vset.pattern.permute.xlu0 7
      %2425 = vperm.xlu0 %2424, %v320
      %v2426 = vpop.permute.xlu0 %2425
      %2428 = vset.pattern.permute.xlu0 7
      %2429 = vperm.xlu0 %2428, %v321
      %v2430 = vpop.permute.xlu0 %2429
      %2432 = vset.pattern.permute.xlu0 7
      %2433 = vperm.xlu0 %2432, %v322
      %v2434 = vpop.permute.xlu0 %2433
      %2436 = vset.pattern.permute.xlu0 7
      %2437 = vperm.xlu0 %2436, %v323
      %v2438 = vpop.permute.xlu0 %2437
      %v2440 = vlaneseq
      %v2441 = vshrl.u32 %v2440, 7
      %v2442 = vsub.s32 7, %v2441
      %v2443 = vrot.slane %v324, %v2442
      %v2444 = vadd.f32 %v2410, %v2443
      %v2445 = vadd.f32 %v2414, %v2443
      %v2446 = vadd.f32 %v2418, %v2443
      %v2447 = vadd.f32 %v2422, %v2443
      %v2448 = vadd.f32 %v2426, %v2443
      %v2449 = vadd.f32 %v2430, %v2443
      %v2450 = vadd.f32 %v2434, %v2443
      %v2451 = vadd.f32 %v2438, %v2443
      %v2452 = vmul.f32 %v2444, 0.2
      %v2453 = vmul.f32 %v2445, 0.2
      %v2454 = vmul.f32 %v2446, 0.2
      %v2455 = vmul.f32 %v2447, 0.2
      %v2456 = vmul.f32 %v2448, 0.2
      %v2457 = vmul.f32 %v2449, 0.2
      %v2458 = vmul.f32 %v2450, 0.2
      %v2459 = vmul.f32 %v2451, 0.2
      %v2460 = vmax.f32 %v2444, %v2452
      %v2461 = vmax.f32 %v2445, %v2453
      %v2462 = vmax.f32 %v2446, %v2454
      %v2463 = vmax.f32 %v2447, %v2455
      %v2464 = vmax.f32 %v2448, %v2456
      %v2465 = vmax.f32 %v2449, %v2457
      %v2466 = vmax.f32 %v2450, %v2458
      %v2467 = vmax.f32 %v2451, %v2459
      %v2468 = vadd.f32 %v2460, %v276
      %v2469 = vadd.f32 %v2461, %v277
      %v2470 = vadd.f32 %v2462, %v278
      %v2471 = vadd.f32 %v2463, %v279
      %v2472 = vadd.f32 %v2464, %v280
      %v2473 = vadd.f32 %v2465, %v281
      %v2474 = vadd.f32 %v2466, %v282
      %v2475 = vadd.f32 %v2467, %v283
      %2476 = vmax.xlane.f32.xlu0 %v2468
      %v2477 = vpop.xlane.xlu0 %2476
      %2478 = vmax.xlane.f32.xlu0 %v2469
      %v2479 = vpop.xlane.xlu0 %2478
      %2480 = vmax.xlane.f32.xlu0 %v2470
      %v2481 = vpop.xlane.xlu0 %2480
      %2482 = vmax.xlane.f32.xlu0 %v2471
      %v2483 = vpop.xlane.xlu0 %2482
      %2484 = vmax.xlane.f32.xlu0 %v2472
      %v2485 = vpop.xlane.xlu0 %2484
      %2486 = vmax.xlane.f32.xlu0 %v2473
      %v2487 = vpop.xlane.xlu0 %2486
      %2488 = vmax.xlane.f32.xlu0 %v2474
      %v2489 = vpop.xlane.xlu0 %2488
      %2490 = vmax.xlane.f32.xlu0 %v2475
      %v2491 = vpop.xlane.xlu0 %2490
      %v2492 = vsub.f32 %v2468, %v2477
      %v2493 = vsub.f32 %v2469, %v2479
      %v2494 = vsub.f32 %v2470, %v2481
      %v2495 = vsub.f32 %v2471, %v2483
      %v2496 = vsub.f32 %v2472, %v2485
      %v2497 = vsub.f32 %v2473, %v2487
      %v2498 = vsub.f32 %v2474, %v2489
      %v2499 = vsub.f32 %v2475, %v2491
      %v2500 = vmul.f32 %v2492, 1.442695
      %v2501 = vpow.pop %v2500
      %v2502 = vmul.f32 %v2493, 1.442695
      %v2503 = vpow.pop %v2502
      %v2504 = vmul.f32 %v2494, 1.442695
      %v2505 = vpow.pop %v2504
      %v2506 = vmul.f32 %v2495, 1.442695
      %v2507 = vpow.pop %v2506
      %v2508 = vmul.f32 %v2496, 1.442695
      %v2509 = vpow.pop %v2508
      %v2510 = vmul.f32 %v2497, 1.442695
      %v2511 = vpow.pop %v2510
      %v2512 = vmul.f32 %v2498, 1.442695
      %v2513 = vpow.pop %v2512
      %v2514 = vmul.f32 %v2499, 1.442695
      %v2515 = vpow.pop %v2514
      %2516 = vadd.xlane.f32.xlu0 %v2501
      %v2517 = vpop.xlane.xlu0 %2516
      %2518 = vadd.xlane.f32.xlu0 %v2503
      %v2519 = vpop.xlane.xlu0 %2518
      %2520 = vadd.xlane.f32.xlu0 %v2505
      %v2521 = vpop.xlane.xlu0 %2520
      %2522 = vadd.xlane.f32.xlu0 %v2507
      %v2523 = vpop.xlane.xlu0 %2522
      %2524 = vadd.xlane.f32.xlu0 %v2509
      %v2525 = vpop.xlane.xlu0 %2524
      %2526 = vadd.xlane.f32.xlu0 %v2511
      %v2527 = vpop.xlane.xlu0 %2526
      %2528 = vadd.xlane.f32.xlu0 %v2513
      %v2529 = vpop.xlane.xlu0 %2528
      %2530 = vadd.xlane.f32.xlu0 %v2515
      %v2531 = vpop.xlane.xlu0 %2530
      %2532 = vrot.lane.b32.xlu0 %v300, 72
      %v2533 = vpop.permute.xlu0 %2532
      %2534 = vrot.lane.b32.xlu0 %v301, 72
      %v2535 = vpop.permute.xlu0 %2534
      %2536 = vrot.lane.b32.xlu0 %v302, 72
      %v2537 = vpop.permute.xlu0 %2536
      %2538 = vrot.lane.b32.xlu0 %v303, 72
      %v2539 = vpop.permute.xlu0 %2538
      %2540 = vrot.lane.b32.xlu0 %v304, 72
      %v2541 = vpop.permute.xlu0 %2540
      %2542 = vrot.lane.b32.xlu0 %v305, 72
      %v2543 = vpop.permute.xlu0 %2542
      %2544 = vrot.lane.b32.xlu0 %v306, 72
      %v2545 = vpop.permute.xlu0 %2544
      %2546 = vrot.lane.b32.xlu0 %v307, 72
      %v2547 = vpop.permute.xlu0 %2546
      %2548 = vrot.lane.b32.xlu0 %v308, 72
      %v2549 = vpop.permute.xlu0 %2548
      %2550 = vrot.lane.b32.xlu0 %v309, 72
      %v2551 = vpop.permute.xlu0 %2550
      %2552 = vrot.lane.b32.xlu0 %v310, 72
      %v2553 = vpop.permute.xlu0 %2552
      %2554 = vrot.lane.b32.xlu0 %v311, 72
      %v2555 = vpop.permute.xlu0 %2554
      %2556 = vrot.lane.b32.xlu0 %v312, 72
      %v2557 = vpop.permute.xlu0 %2556
      %2558 = vrot.lane.b32.xlu0 %v313, 72
      %v2559 = vpop.permute.xlu0 %2558
      %2560 = vrot.lane.b32.xlu0 %v314, 72
      %v2561 = vpop.permute.xlu0 %2560
      %2562 = vrot.lane.b32.xlu0 %v315, 72
      %v2563 = vpop.permute.xlu0 %2562
      %2580 = vmatprep.subr.mxu0 0.0
      %2581 = vmatpush1.msra.mxu0 %v2533
      %2582 = vmatprep.subr.mxu0 0.0
      %2583 = vmatpush1.msra.mxu0 %v2535
      %2584 = vmatprep.subr.mxu0 0.0
      %2585 = vmatpush1.msra.mxu0 %v2537
      %2586 = vmatprep.subr.mxu0 0.0
      %2587 = vmatpush1.msra.mxu0 %v2539
      %2588 = vmatprep.subr.mxu0 0.0
      %2589 = vmatpush1.msra.mxu0 %v2541
      %2590 = vmatprep.subr.mxu0 0.0
      %2591 = vmatpush1.msra.mxu0 %v2543
      %2592 = vmatprep.subr.mxu0 0.0
      %2593 = vmatpush1.msra.mxu0 %v2545
      %2594 = vmatprep.subr.mxu0 0.0
      %2595 = vmatpush1.msra.mxu0 %v2547
      %2596 = vmatprep.subr.mxu0 0.0
      %2597 = vmatpush1.msra.mxu0 %v2549
      %2598 = vmatprep.subr.mxu0 0.0
      %2599 = vmatpush1.msra.mxu0 %v2551
      %2600 = vmatprep.subr.mxu0 0.0
      %2601 = vmatpush1.msra.mxu0 %v2553
      %2602 = vmatprep.subr.mxu0 0.0
      %2603 = vmatpush1.msra.mxu0 %v2555
      %2604 = vmatprep.subr.mxu0 0.0
      %2605 = vmatpush1.msra.mxu0 %v2557
      %2606 = vmatprep.subr.mxu0 0.0
      %2607 = vmatpush1.msra.mxu0 %v2559
      %2608 = vmatprep.subr.mxu0 0.0
      %2609 = vmatpush1.msra.mxu0 %v2561
      %2610 = vmatprep.subr.mxu0 0.0
      %2611 = vmatpush1.msra.mxu0 %v2563
      %2612 = vmatprep.subr.mxu0 0.0
      %2613 = vmatpush1.msra.mxu0 0.0
      %2614 = vmatprep.subr.mxu0 0.0
      %2615 = vmatpush1.msra.mxu0 0.0
      %2616 = vmatprep.subr.mxu0 0.0
      %2617 = vmatpush1.msra.mxu0 0.0
      %2618 = vmatprep.subr.mxu0 0.0
      %2619 = vmatpush1.msra.mxu0 0.0
      %2620 = vmatprep.subr.mxu0 0.0
      %2621 = vmatpush1.msra.mxu0 0.0
      %2622 = vmatprep.subr.mxu0 0.0
      %2623 = vmatpush1.msra.mxu0 0.0
      %2624 = vmatprep.subr.mxu0 0.0
      %2625 = vmatpush1.msra.mxu0 0.0
      %2626 = vmatprep.subr.mxu0 0.0
      %2627 = vmatpush1.msra.mxu0 0.0
      %2628 = vmatprep.subr.mxu0 0.0
      %2629 = vmatpush1.msra.mxu0 0.0
      %2630 = vmatprep.subr.mxu0 0.0
      %2631 = vmatpush1.msra.mxu0 0.0
      %2632 = vmatprep.subr.mxu0 0.0
      %2633 = vmatpush1.msra.mxu0 0.0
      %2634 = vmatprep.subr.mxu0 0.0
      %2635 = vmatpush1.msra.mxu0 0.0
      %2636 = vmatprep.subr.mxu0 0.0
      %2637 = vmatpush1.msra.mxu0 0.0
      %2638 = vmatprep.subr.mxu0 0.0
      %2639 = vmatpush1.msra.mxu0 0.0
      %2640 = vmatprep.subr.mxu0 0.0
      %2641 = vmatpush1.msra.mxu0 0.0
      %2642 = vmatprep.subr.mxu0 0.0
      %2643 = vmatpush1.msra.mxu0 0.0
      %2644 = vmatprep.mubr.f32.mxu0 0.0
      %2645 = vmatmul.mubr.f32.gmra.mrb[0].mxu0 %v2501
      %v2646 = vpop.f32.mrb[0].mxu0
      %v2647 = vadd.f32 0.0, %v2646
      %v2648 = vpop.f32.mrb[0].mxu0
      %2649 = vmatprep.mubr.f32.mxu0 0.0
      %2650 = vmatmul.mubr.f32.gmra.mrb[0].mxu0 %v2503
      %v2651 = vpop.f32.mrb[0].mxu0
      %v2652 = vadd.f32 0.0, %v2651
      %v2653 = vpop.f32.mrb[0].mxu0
      %2654 = vmatprep.mubr.f32.mxu0 0.0
      %2655 = vmatmul.mubr.f32.gmra.mrb[0].mxu0 %v2505
      %v2656 = vpop.f32.mrb[0].mxu0
      %v2657 = vadd.f32 0.0, %v2656
      %v2658 = vpop.f32.mrb[0].mxu0
      %2659 = vmatprep.mubr.f32.mxu0 0.0
      %2660 = vmatmul.mubr.f32.gmra.mrb[0].mxu0 %v2507
      %v2661 = vpop.f32.mrb[0].mxu0
      %v2662 = vadd.f32 0.0, %v2661
      %v2663 = vpop.f32.mrb[0].mxu0
      %2664 = vmatprep.mubr.f32.mxu0 0.0
      %2665 = vmatmul.mubr.f32.gmra.mrb[0].mxu0 %v2509
      %v2666 = vpop.f32.mrb[0].mxu0
      %v2667 = vadd.f32 0.0, %v2666
      %v2668 = vpop.f32.mrb[0].mxu0
      %2669 = vmatprep.mubr.f32.mxu0 0.0
      %2670 = vmatmul.mubr.f32.gmra.mrb[0].mxu0 %v2511
      %v2671 = vpop.f32.mrb[0].mxu0
      %v2672 = vadd.f32 0.0, %v2671
      %v2673 = vpop.f32.mrb[0].mxu0
      %2674 = vmatprep.mubr.f32.mxu0 0.0
      %2675 = vmatmul.mubr.f32.gmra.mrb[0].mxu0 %v2513
      %v2676 = vpop.f32.mrb[0].mxu0
      %v2677 = vadd.f32 0.0, %v2676
      %v2678 = vpop.f32.mrb[0].mxu0
      %2679 = vmatprep.mubr.f32.mxu0 0.0
      %2680 = vmatmul.mubr.f32.gmra.mrb[0].mxu0 %v2515
      %v2681 = vpop.f32.mrb[0].mxu0
      %v2682 = vadd.f32 0.0, %v2681
      %v2683 = vpop.f32.mrb[0].mxu0
      %2684 = vdwg.mxu0
      %v2685 = vrcp.pop %v2517
      %v2686 = vmul.f32 1.0, %v2685
      %v2687 = vrcp.pop %v2519
      %v2688 = vmul.f32 1.0, %v2687
      %v2689 = vrcp.pop %v2521
      %v2690 = vmul.f32 1.0, %v2689
      %v2691 = vrcp.pop %v2523
      %v2692 = vmul.f32 1.0, %v2691
      %v2693 = vrcp.pop %v2525
      %v2694 = vmul.f32 1.0, %v2693
      %v2695 = vrcp.pop %v2527
      %v2696 = vmul.f32 1.0, %v2695
      %v2697 = vrcp.pop %v2529
      %v2698 = vmul.f32 1.0, %v2697
      %v2699 = vrcp.pop %v2531
      %v2700 = vmul.f32 1.0, %v2699
      %v2701 = vmul.f32 %v2647, %v2686
      %v2702 = vmul.f32 %v2652, %v2688
      %v2703 = vmul.f32 %v2657, %v2690
      %v2704 = vmul.f32 %v2662, %v2692
      %v2705 = vmul.f32 %v2667, %v2694
      %v2706 = vmul.f32 %v2672, %v2696
      %v2707 = vmul.f32 %v2677, %v2698
      %v2708 = vmul.f32 %v2682, %v2700
      %2717 = vrot.lane.b32.xlu0 %v895, 8
      %v2718 = vpop.permute.xlu0 %2717
      %2719 = vrot.lane.b32.xlu0 %v896, 8
      %v2720 = vpop.permute.xlu0 %2719
      %2721 = vrot.lane.b32.xlu0 %v897, 8
      %v2722 = vpop.permute.xlu0 %2721
      %2723 = vrot.lane.b32.xlu0 %v898, 8
      %v2724 = vpop.permute.xlu0 %2723
      %2725 = vrot.lane.b32.xlu0 %v899, 8
      %v2726 = vpop.permute.xlu0 %2725
      %2727 = vrot.lane.b32.xlu0 %v900, 8
      %v2728 = vpop.permute.xlu0 %2727
      %2729 = vrot.lane.b32.xlu0 %v901, 8
      %v2730 = vpop.permute.xlu0 %2729
      %2731 = vrot.lane.b32.xlu0 %v902, 8
      %v2732 = vpop.permute.xlu0 %2731
      %2749 = vrot.lane.b32.xlu0 %v1196, 16
      %v2750 = vpop.permute.xlu0 %2749
      %2751 = vrot.lane.b32.xlu0 %v1197, 16
      %v2752 = vpop.permute.xlu0 %2751
      %2753 = vrot.lane.b32.xlu0 %v1198, 16
      %v2754 = vpop.permute.xlu0 %2753
      %2755 = vrot.lane.b32.xlu0 %v1199, 16
      %v2756 = vpop.permute.xlu0 %2755
      %2757 = vrot.lane.b32.xlu0 %v1200, 16
      %v2758 = vpop.permute.xlu0 %2757
      %2759 = vrot.lane.b32.xlu0 %v1201, 16
      %v2760 = vpop.permute.xlu0 %2759
      %2761 = vrot.lane.b32.xlu0 %v1202, 16
      %v2762 = vpop.permute.xlu0 %2761
      %2763 = vrot.lane.b32.xlu0 %v1203, 16
      %v2764 = vpop.permute.xlu0 %2763
      %2781 = vrot.lane.b32.xlu0 %v1497, 24
      %v2782 = vpop.permute.xlu0 %2781
      %2783 = vrot.lane.b32.xlu0 %v1498, 24
      %v2784 = vpop.permute.xlu0 %2783
      %2785 = vrot.lane.b32.xlu0 %v1499, 24
      %v2786 = vpop.permute.xlu0 %2785
      %2787 = vrot.lane.b32.xlu0 %v1500, 24
      %v2788 = vpop.permute.xlu0 %2787
      %2789 = vrot.lane.b32.xlu0 %v1501, 24
      %v2790 = vpop.permute.xlu0 %2789
      %2791 = vrot.lane.b32.xlu0 %v1502, 24
      %v2792 = vpop.permute.xlu0 %2791
      %2793 = vrot.lane.b32.xlu0 %v1503, 24
      %v2794 = vpop.permute.xlu0 %2793
      %2795 = vrot.lane.b32.xlu0 %v1504, 24
      %v2796 = vpop.permute.xlu0 %2795
      %2813 = vrot.lane.b32.xlu0 %v1798, 32
      %v2814 = vpop.permute.xlu0 %2813
      %2815 = vrot.lane.b32.xlu0 %v1799, 32
      %v2816 = vpop.permute.xlu0 %2815
      %2817 = vrot.lane.b32.xlu0 %v1800, 32
      %v2818 = vpop.permute.xlu0 %2817
      %2819 = vrot.lane.b32.xlu0 %v1801, 32
      %v2820 = vpop.permute.xlu0 %2819
      %2821 = vrot.lane.b32.xlu0 %v1802, 32
      %v2822 = vpop.permute.xlu0 %2821
      %2823 = vrot.lane.b32.xlu0 %v1803, 32
      %v2824 = vpop.permute.xlu0 %2823
      %2825 = vrot.lane.b32.xlu0 %v1804, 32
      %v2826 = vpop.permute.xlu0 %2825
      %2827 = vrot.lane.b32.xlu0 %v1805, 32
      %v2828 = vpop.permute.xlu0 %2827
      %2845 = vrot.lane.b32.xlu0 %v2099, 40
      %v2846 = vpop.permute.xlu0 %2845
      %2847 = vrot.lane.b32.xlu0 %v2100, 40
      %v2848 = vpop.permute.xlu0 %2847
      %2849 = vrot.lane.b32.xlu0 %v2101, 40
      %v2850 = vpop.permute.xlu0 %2849
      %2851 = vrot.lane.b32.xlu0 %v2102, 40
      %v2852 = vpop.permute.xlu0 %2851
      %2853 = vrot.lane.b32.xlu0 %v2103, 40
      %v2854 = vpop.permute.xlu0 %2853
      %2855 = vrot.lane.b32.xlu0 %v2104, 40
      %v2856 = vpop.permute.xlu0 %2855
      %2857 = vrot.lane.b32.xlu0 %v2105, 40
      %v2858 = vpop.permute.xlu0 %2857
      %2859 = vrot.lane.b32.xlu0 %v2106, 40
      %v2860 = vpop.permute.xlu0 %2859
      %2877 = vrot.lane.b32.xlu0 %v2400, 48
      %v2878 = vpop.permute.xlu0 %2877
      %2879 = vrot.lane.b32.xlu0 %v2401, 48
      %v2880 = vpop.permute.xlu0 %2879
      %2881 = vrot.lane.b32.xlu0 %v2402, 48
      %v2882 = vpop.permute.xlu0 %2881
      %2883 = vrot.lane.b32.xlu0 %v2403, 48
      %v2884 = vpop.permute.xlu0 %2883
      %2885 = vrot.lane.b32.xlu0 %v2404, 48
      %v2886 = vpop.permute.xlu0 %2885
      %2887 = vrot.lane.b32.xlu0 %v2405, 48
      %v2888 = vpop.permute.xlu0 %2887
      %2889 = vrot.lane.b32.xlu0 %v2406, 48
      %v2890 = vpop.permute.xlu0 %2889
      %2891 = vrot.lane.b32.xlu0 %v2407, 48
      %v2892 = vpop.permute.xlu0 %2891
      %2909 = vrot.lane.b32.xlu0 %v2701, 56
      %v2910 = vpop.permute.xlu0 %2909
      %2911 = vrot.lane.b32.xlu0 %v2702, 56
      %v2912 = vpop.permute.xlu0 %2911
      %2913 = vrot.lane.b32.xlu0 %v2703, 56
      %v2914 = vpop.permute.xlu0 %2913
      %2915 = vrot.lane.b32.xlu0 %v2704, 56
      %v2916 = vpop.permute.xlu0 %2915
      %2917 = vrot.lane.b32.xlu0 %v2705, 56
      %v2918 = vpop.permute.xlu0 %2917
      %2919 = vrot.lane.b32.xlu0 %v2706, 56
      %v2920 = vpop.permute.xlu0 %2919
      %2921 = vrot.lane.b32.xlu0 %v2707, 56
      %v2922 = vpop.permute.xlu0 %2921
      %2923 = vrot.lane.b32.xlu0 %v2708, 56
      %v2924 = vpop.permute.xlu0 %2923
      %vm2933 = vcmask 64512
      %v2934 = vsel %vm2933, %v578, %v2718
      %v2935 = vsel %vm2933, %v579, %v2720
      %v2936 = vsel %vm2933, %v580, %v2722
      %v2937 = vsel %vm2933, %v581, %v2724
      %v2938 = vsel %vm2933, %v582, %v2726
      %v2939 = vsel %vm2933, %v583, %v2728
      %v2940 = vsel %vm2933, %v584, %v2730
      %v2941 = vsel %vm2933, %v585, %v2732
      %vm2942 = vcmask 130048
      %v2943 = vsel %vm2942, %v2934, %v2750
      %v2944 = vsel %vm2942, %v2935, %v2752
      %v2945 = vsel %vm2942, %v2936, %v2754
      %v2946 = vsel %vm2942, %v2937, %v2756
      %v2947 = vsel %vm2942, %v2938, %v2758
      %v2948 = vsel %vm2942, %v2939, %v2760
      %v2949 = vsel %vm2942, %v2940, %v2762
      %v2950 = vsel %vm2942, %v2941, %v2764
      %vm2951 = vcmask 195584
      %v2952 = vsel %vm2951, %v2943, %v2782
      %v2953 = vsel %vm2951, %v2944, %v2784
      %v2954 = vsel %vm2951, %v2945, %v2786
      %v2955 = vsel %vm2951, %v2946, %v2788
      %v2956 = vsel %vm2951, %v2947, %v2790
      %v2957 = vsel %vm2951, %v2948, %v2792
      %v2958 = vsel %vm2951, %v2949, %v2794
      %v2959 = vsel %vm2951, %v2950, %v2796
      %vm2960 = vcmask 261120
      %v2961 = vsel %vm2960, %v2952, %v2814
      %v2962 = vsel %vm2960, %v2953, %v2816
      %v2963 = vsel %vm2960, %v2954, %v2818
      %v2964 = vsel %vm2960, %v2955, %v2820
      %v2965 = vsel %vm2960, %v2956, %v2822
      %v2966 = vsel %vm2960, %v2957, %v2824
      %v2967 = vsel %vm2960, %v2958, %v2826
      %v2968 = vsel %vm2960, %v2959, %v2828
      %vm2969 = vcmask 326656
      %v2970 = vsel %vm2969, %v2961, %v2846
      %v2971 = vsel %vm2969, %v2962, %v2848
      %v2972 = vsel %vm2969, %v2963, %v2850
      %v2973 = vsel %vm2969, %v2964, %v2852
      %v2974 = vsel %vm2969, %v2965, %v2854
      %v2975 = vsel %vm2969, %v2966, %v2856
      %v2976 = vsel %vm2969, %v2967, %v2858
      %v2977 = vsel %vm2969, %v2968, %v2860
      %vm2978 = vcmask 392192
      %v2979 = vsel %vm2978, %v2970, %v2878
      %v2980 = vsel %vm2978, %v2971, %v2880
      %v2981 = vsel %vm2978, %v2972, %v2882
      %v2982 = vsel %vm2978, %v2973, %v2884
      %v2983 = vsel %vm2978, %v2974, %v2886
      %v2984 = vsel %vm2978, %v2975, %v2888
      %v2985 = vsel %vm2978, %v2976, %v2890
      %v2986 = vsel %vm2978, %v2977, %v2892
      %vm2987 = vcmask 457728
      %v2988 = vsel %vm2987, %v2979, %v2910
      %v2989 = vsel %vm2987, %v2980, %v2912
      %v2990 = vsel %vm2987, %v2981, %v2914
      %v2991 = vsel %vm2987, %v2982, %v2916
      %v2992 = vsel %vm2987, %v2983, %v2918
      %v2993 = vsel %vm2987, %v2984, %v2920
      %v2994 = vsel %vm2987, %v2985, %v2922
      %v2995 = vsel %vm2987, %v2986, %v2924
      %v2996 = vld [vmem:[%s4] sm:$0x1]
      %v2998 = vlaneseq
      %v2999 = vshrl.u32 %v2998, 7
      %v3000 = vsub.s32 0, %v2999
      %v3001 = vrot.slane %v2996, %v3000
      %v3003 = vadd.f32 %v2988, %v3001
      %v3004 = vadd.f32 %v2989, %v3001
      %v3005 = vadd.f32 %v2990, %v3001
      %v3006 = vadd.f32 %v2991, %v3001
      %v3007 = vadd.f32 %v2992, %v3001
      %v3008 = vadd.f32 %v2993, %v3001
      %v3009 = vadd.f32 %v2994, %v3001
      %v3010 = vadd.f32 %v2995, %v3001
      %vm3011 = vcmp.gt.f32.partialorder %v3003, 0.0
      %vm3012 = vcmp.gt.f32.partialorder %v3004, 0.0
      %vm3013 = vcmp.gt.f32.partialorder %v3005, 0.0
      %vm3014 = vcmp.gt.f32.partialorder %v3006, 0.0
      %vm3015 = vcmp.gt.f32.partialorder %v3007, 0.0
      %vm3016 = vcmp.gt.f32.partialorder %v3008, 0.0
      %vm3017 = vcmp.gt.f32.partialorder %v3009, 0.0
      %vm3018 = vcmp.gt.f32.partialorder %v3010, 0.0
      %v3019 = vmin.f32 %v3003, 0.0
      %v3020 = vmin.f32 %v3004, 0.0
      %v3021 = vmin.f32 %v3005, 0.0
      %v3022 = vmin.f32 %v3006, 0.0
      %v3023 = vmin.f32 %v3007, 0.0
      %v3024 = vmin.f32 %v3008, 0.0
      %v3025 = vmin.f32 %v3009, 0.0
      %v3026 = vmin.f32 %v3010, 0.0
      %v3027 = vmul.f32 %v3019, 1.442695
      %v3028 = vpow.pop %v3027
      %v3029 = vmul.f32 %v3020, 1.442695
      %v3030 = vpow.pop %v3029
      %v3031 = vmul.f32 %v3021, 1.442695
      %v3032 = vpow.pop %v3031
      %v3033 = vmul.f32 %v3022, 1.442695
      %v3034 = vpow.pop %v3033
      %v3035 = vmul.f32 %v3023, 1.442695
      %v3036 = vpow.pop %v3035
      %v3037 = vmul.f32 %v3024, 1.442695
      %v3038 = vpow.pop %v3037
      %v3039 = vmul.f32 %v3025, 1.442695
      %v3040 = vpow.pop %v3039
      %v3041 = vmul.f32 %v3026, 1.442695
      %v3042 = vpow.pop %v3041
      %v3043 = vsub.f32 %v3028, 1.0
      %v3044 = vsub.f32 %v3030, 1.0
      %v3045 = vsub.f32 %v3032, 1.0
      %v3046 = vsub.f32 %v3034, 1.0
      %v3047 = vsub.f32 %v3036, 1.0
      %v3048 = vsub.f32 %v3038, 1.0
      %v3049 = vsub.f32 %v3040, 1.0
      %v3050 = vsub.f32 %v3042, 1.0
      %v3051 = vsel %vm3011, %v3003, %v3043
      %v3052 = vsel %vm3012, %v3004, %v3044
      %v3053 = vsel %vm3013, %v3005, %v3045
      %v3054 = vsel %vm3014, %v3006, %v3046
      %v3055 = vsel %vm3015, %v3007, %v3047
      %v3056 = vsel %vm3016, %v3008, %v3048
      %v3057 = vsel %vm3017, %v3009, %v3049
      %v3058 = vsel %vm3018, %v3010, %v3050
      %vm3059 = vcmask 523264
      %3060 = vst.msk [vmem:[%s248] sm:$0xff] %vm3059, %v3051
      %3061 = vst.msk [vmem:[%s248 + $0x8] sm:$0xff] %vm3059, %v3052
      %3062 = vst.msk [vmem:[%s248 + $0x10] sm:$0xff] %vm3059, %v3053
      %3063 = vst.msk [vmem:[%s248 + $0x18] sm:$0xff] %vm3059, %v3054
      %3064 = vst.msk [vmem:[%s248 + $0x20] sm:$0xff] %vm3059, %v3055
      %3065 = vst.msk [vmem:[%s248 + $0x28] sm:$0xff] %vm3059, %v3056
      %3066 = vst.msk [vmem:[%s248 + $0x30] sm:$0xff] %vm3059, %v3057
      %3067 = vst.msk [vmem:[%s248 + $0x38] sm:$0xff] %vm3059, %v3058
      %s3068 = smul.u32 8, %s16
      %p3069 = scmp.lt.s32.totalorder %s3068, 15
      %s3070 = scalar_select %p3069, %s3068, 15
      %s3071 = smul.addr %s3070, 8
      %s3072 = scalar_lea.vmem %s5, %s3071
      // Predicated region
      $region41: #{gat_forward.6} parent=39 // pred_check
        %p3073 = pneg %p149
      $region42: #{gat_forward.6} parent=39 // pred_check_branch
        %3075 = sbr.rel (%p3073) target = $region44
      $region43: #{gat_forward.6} parent=39 // pred_region
        %s3076 = smul.u32 8, %s16
      $region44: #{gat_forward.6} parent=39 // pred_fallthru
        _
    $region40: #{gat_forward.6} parent=5 // pred_fallthru
      _
    %p3077 = scmp.le.s32.totalorder 2, %s11
    // Predicated region
    $region45: #{gat_forward.6} parent=5 // pred_check
      %p3078 = pneg %p3077
    $region46: #{gat_forward.6} parent=5 // pred_check_branch
      %3080 = sbr.rel (%p3078) target = $region48
    $region47: #{gat_forward.6} parent=5 // pred_region
      %s3081 = ssub.s32 %s11, 2
      // Predicated region
      $region49: #{gat_forward.6} parent=47 // pred_check
        %p3082 = pneg %p155
      $region50: #{gat_forward.6} parent=47 // pred_check_branch
        %3084 = sbr.rel (%p3082) target = $region52
      $region51: #{gat_forward.6} parent=47 // pred_region
        %s3085 = smul.u32 8, %s17
        %p3086 = scmp.lt.s32.totalorder %s3085, 15
        %s3087 = scalar_select %p3086, %s3085, 15
        %s3088 = smul.addr %s3087, 8
        %s3089 = scalar_lea.vmem %s5, %s3088
      $region52: #{gat_forward.6} parent=47 // pred_fallthru
        _
    $region48: #{gat_forward.6} parent=5 // pred_fallthru
      _
  $region6: #{gat_forward.6} parent=0 // loop_footer
    %s15 = sadd.s32 1, %s11
  $region7: #{gat_forward.6} parent=0 // loop_footer_branch
    %10 = sbr.rel target = $region3
  $region8: #{gat_forward.6} parent=0 // loop_exit
    _

// kernel: gat_forward.9
$region0: #{gat_forward.9}
  #allocation0 [shape = 'u32[]', space=smem, size = 0x4, offset = 0x4, fixed_abs, tag = 'smem constant byte address 0x4 - core index']
  #allocation1 [shape = 'u32[144,128]{1,0:T(1,128)}', space=vmem, size = 0x12000, scoped, tag = 'internal scratch']
  %s0 = inlined_call_operand.vmem [shape: f32[2,128], index: 0, kind: input, shape index: {}]
  %s1 = inlined_call_operand.vmem [shape: f32[128,8], index: 1, kind: input, shape index: {}]
  %s2 = inlined_call_operand.vmem [shape: f32[8,3], index: 2, kind: input, shape index: {}]
  %s3 = inlined_call_operand.vmem [shape: f32[1,3], index: 3, kind: input, shape index: {}]
  %s4 = inlined_call_operand.hbm [shape: f32[2,3], index: 4, kind: output, shape index: {}]
  %s5 = sld [smem:[#allocation0]]
  $region26: #{gat_forward.9} parent=0
    _
  %s7 = ssub.s32 1, %s5
  %s8 = scalar_select 0, %s7, %s5
  $region1: #{gat_forward.9} parent=0
    #allocation2 [shape = 'u8[1024]{0}', space=vmem, size = 0x400, scoped, tag = 'output window, operand 0, single buffered']
    #allocation3 [shape = 's32[1]{0}', space=sflag, size = 0x4, scoped, tag = 'scoped memory for gat_forward.9']
    %9 = vsyncpa [#allocation3], 0
    // Predicated region
    $region2: #{gat_forward.9} parent=1 // pred_check
      _
    $region3: #{gat_forward.9} parent=1 // pred_check_branch
      %11 = sbr.rel (0) target = $region5
    $region4: #{gat_forward.9} parent=1 // pred_region
      _
    $region5: #{gat_forward.9} parent=1 // pred_fallthru
      _
    // Predicated region
    $region6: #{gat_forward.9} parent=1 // pred_check
      _
    $region7: #{gat_forward.9} parent=1 // pred_check_branch
      %13 = sbr.rel (0) target = $region9
    $region8: #{gat_forward.9} parent=1 // pred_region
      _
    $region9: #{gat_forward.9} parent=1 // pred_fallthru
      _
    // Predicated region
    $region10: #{gat_forward.9} parent=1 // pred_check
      _
    $region11: #{gat_forward.9} parent=1 // pred_check_branch
      %15 = sbr.rel (0) target = $region13
    $region12: #{gat_forward.9} parent=1 // pred_region
      _
    $region13: #{gat_forward.9} parent=1 // pred_fallthru
      _
    // Predicated region
    $region14: #{gat_forward.9} parent=1 // pred_check
      _
    $region15: #{gat_forward.9} parent=1 // pred_check_branch
      %17 = sbr.rel (0) target = $region17
    $region16: #{gat_forward.9} parent=1 // pred_region
      _
    $region17: #{gat_forward.9} parent=1 // pred_fallthru
      _
    %v18 = vld [vmem:[%s0] sm:$0x3]
    %v19 = vld [vmem:[%s1] sm:$0xff]
    %v20 = vld [vmem:[%s1 + $0x8] sm:$0xff]
    %v21 = vld [vmem:[%s1 + $0x10] sm:$0xff]
    %v22 = vld [vmem:[%s1 + $0x18] sm:$0xff]
    %v23 = vld [vmem:[%s1 + $0x20] sm:$0xff]
    %v24 = vld [vmem:[%s1 + $0x28] sm:$0xff]
    %v25 = vld [vmem:[%s1 + $0x30] sm:$0xff]
    %v26 = vld [vmem:[%s1 + $0x38] sm:$0xff]
    %v27 = vld [vmem:[%s1 + $0x40] sm:$0xff]
    %v28 = vld [vmem:[%s1 + $0x48] sm:$0xff]
    %v29 = vld [vmem:[%s1 + $0x50] sm:$0xff]
    %v30 = vld [vmem:[%s1 + $0x58] sm:$0xff]
    %v31 = vld [vmem:[%s1 + $0x60] sm:$0xff]
    %v32 = vld [vmem:[%s1 + $0x68] sm:$0xff]
    %v33 = vld [vmem:[%s1 + $0x70] sm:$0xff]
    %v34 = vld [vmem:[%s1 + $0x78] sm:$0xff]
    %35 = vmatprep.subr.mxu0 0.0
    %36 = vmatpush1.msra.mxu0 %v19
    %37 = vmatprep.subr.mxu0 0.0
    %38 = vmatpush1.msra.mxu0 %v20
    %39 = vmatprep.subr.mxu0 0.0
    %40 = vmatpush1.msra.mxu0 %v21
    %41 = vmatprep.subr.mxu0 0.0
    %42 = vmatpush1.msra.mxu0 %v22
    %43 = vmatprep.subr.mxu0 0.0
    %44 = vmatpush1.msra.mxu0 %v23
    %45 = vmatprep.subr.mxu0 0.0
    %46 = vmatpush1.msra.mxu0 %v24
    %47 = vmatprep.subr.mxu0 0.0
    %48 = vmatpush1.msra.mxu0 %v25
    %49 = vmatprep.subr.mxu0 0.0
    %50 = vmatpush1.msra.mxu0 %v26
    %51 = vmatprep.subr.mxu0 0.0
    %52 = vmatpush1.msra.mxu0 %v27
    %53 = vmatprep.subr.mxu0 0.0
    %54 = vmatpush1.msra.mxu0 %v28
    %55 = vmatprep.subr.mxu0 0.0
    %56 = vmatpush1.msra.mxu0 %v29
    %57 = vmatprep.subr.mxu0 0.0
    %58 = vmatpush1.msra.mxu0 %v30
    %59 = vmatprep.subr.mxu0 0.0
    %60 = vmatpush1.msra.mxu0 %v31
    %61 = vmatprep.subr.mxu0 0.0
    %62 = vmatpush1.msra.mxu0 %v32
    %63 = vmatprep.subr.mxu0 0.0
    %64 = vmatpush1.msra.mxu0 %v33
    %65 = vmatprep.subr.mxu0 0.0
    %66 = vmatpush1.msra.mxu0 %v34
    %67 = vmatprep.subr.mxu0 0.0
    %68 = vmatpush1.msra.mxu0 0.0
    %69 = vmatprep.subr.mxu0 0.0
    %70 = vmatpush1.msra.mxu0 0.0
    %71 = vmatprep.subr.mxu0 0.0
    %72 = vmatpush1.msra.mxu0 0.0
    %73 = vmatprep.subr.mxu0 0.0
    %74 = vmatpush1.msra.mxu0 0.0
    %75 = vmatprep.subr.mxu0 0.0
    %76 = vmatpush1.msra.mxu0 0.0
    %77 = vmatprep.subr.mxu0 0.0
    %78 = vmatpush1.msra.mxu0 0.0
    %79 = vmatprep.subr.mxu0 0.0
    %80 = vmatpush1.msra.mxu0 0.0
    %81 = vmatprep.subr.mxu0 0.0
    %82 = vmatpush1.msra.mxu0 0.0
    %83 = vmatprep.subr.mxu0 0.0
    %84 = vmatpush1.msra.mxu0 0.0
    %85 = vmatprep.subr.mxu0 0.0
    %86 = vmatpush1.msra.mxu0 0.0
    %87 = vmatprep.subr.mxu0 0.0
    %88 = vmatpush1.msra.mxu0 0.0
    %89 = vmatprep.subr.mxu0 0.0
    %90 = vmatpush1.msra.mxu0 0.0
    %91 = vmatprep.subr.mxu0 0.0
    %92 = vmatpush1.msra.mxu0 0.0
    %93 = vmatprep.subr.mxu0 0.0
    %94 = vmatpush1.msra.mxu0 0.0
    %95 = vmatprep.subr.mxu0 0.0
    %96 = vmatpush1.msra.mxu0 0.0
    %97 = vmatprep.subr.mxu0 0.0
    %98 = vmatpush1.msra.mxu0 0.0
    %99 = vmatprep.mubr.f32.mxu0 0.0
    %100 = vmatmul.mubr.f32.gmra.mrb[0].mxu0 %v18
    %v101 = vpop.f32.mrb[0].mxu0
    %v102 = vadd.f32 0.0, %v101
    %v103 = vpop.f32.mrb[0].mxu0
    %104 = vdwg.mxu0
    %v105 = vld [vmem:[%s2] sm:$0xff]
    %v106 = vld [vmem:[%s3] sm:$0x1]
    %v108 = vlaneseq
    %v109 = vshrl.u32 %v108, 7
    %v110 = vsub.s32 0, %v109
    %v111 = vrot.slane %v106, %v110
    %vm113 = vcmask 64512
    %v115 = vsel %vm113, %v102, 0
    %117 = vmatprep.subr.mxu0 0.0
    %118 = vmatpush1.msra.mxu0 %v105
    %119 = vmatprep.subr.mxu0 0.0
    %120 = vmatpush1.msra.mxu0 0.0
    %121 = vmatprep.subr.mxu0 0.0
    %122 = vmatpush1.msra.mxu0 0.0
    %123 = vmatprep.subr.mxu0 0.0
    %124 = vmatpush1.msra.mxu0 0.0
    %125 = vmatprep.subr.mxu0 0.0
    %126 = vmatpush1.msra.mxu0 0.0
    %127 = vmatprep.subr.mxu0 0.0
    %128 = vmatpush1.msra.mxu0 0.0
    %129 = vmatprep.subr.mxu0 0.0
    %130 = vmatpush1.msra.mxu0 0.0
    %131 = vmatprep.subr.mxu0 0.0
    %132 = vmatpush1.msra.mxu0 0.0
    %133 = vmatprep.subr.mxu0 0.0
    %134 = vmatpush1.msra.mxu0 0.0
    %135 = vmatprep.subr.mxu0 0.0
    %136 = vmatpush1.msra.mxu0 0.0
    %137 = vmatprep.subr.mxu0 0.0
    %138 = vmatpush1.msra.mxu0 0.0
    %139 = vmatprep.subr.mxu0 0.0
    %140 = vmatpush1.msra.mxu0 0.0
    %141 = vmatprep.subr.mxu0 0.0
    %142 = vmatpush1.msra.mxu0 0.0
    %143 = vmatprep.subr.mxu0 0.0
    %144 = vmatpush1.msra.mxu0 0.0
    %145 = vmatprep.subr.mxu0 0.0
    %146 = vmatpush1.msra.mxu0 0.0
    %147 = vmatprep.subr.mxu0 0.0
    %148 = vmatpush1.msra.mxu0 0.0
    %149 = vmatprep.subr.mxu0 0.0
    %150 = vmatpush1.msra.mxu0 0.0
    %151 = vmatprep.subr.mxu0 0.0
    %152 = vmatpush1.msra.mxu0 0.0
    %153 = vmatprep.subr.mxu0 0.0
    %154 = vmatpush1.msra.mxu0 0.0
    %155 = vmatprep.subr.mxu0 0.0
    %156 = vmatpush1.msra.mxu0 0.0
    %157 = vmatprep.subr.mxu0 0.0
    %158 = vmatpush1.msra.mxu0 0.0
    %159 = vmatprep.subr.mxu0 0.0
    %160 = vmatpush1.msra.mxu0 0.0
    %161 = vmatprep.subr.mxu0 0.0
    %162 = vmatpush1.msra.mxu0 0.0
    %163 = vmatprep.subr.mxu0 0.0
    %164 = vmatpush1.msra.mxu0 0.0
    %165 = vmatprep.subr.mxu0 0.0
    %166 = vmatpush1.msra.mxu0 0.0
    %167 = vmatprep.subr.mxu0 0.0
    %168 = vmatpush1.msra.mxu0 0.0
    %169 = vmatprep.subr.mxu0 0.0
    %170 = vmatpush1.msra.mxu0 0.0
    %171 = vmatprep.subr.mxu0 0.0
    %172 = vmatpush1.msra.mxu0 0.0
    %173 = vmatprep.subr.mxu0 0.0
    %174 = vmatpush1.msra.mxu0 0.0
    %175 = vmatprep.subr.mxu0 0.0
    %176 = vmatpush1.msra.mxu0 0.0
    %177 = vmatprep.subr.mxu0 0.0
    %178 = vmatpush1.msra.mxu0 0.0
    %179 = vmatprep.subr.mxu0 0.0
    %180 = vmatpush1.msra.mxu0 0.0
    %181 = vmatprep.mubr.f32.mxu0 0.0
    %182 = vmatmul.mubr.f32.gmra.mrb[0].mxu0 %v115
    %v183 = vpop.f32.mrb[0].mxu0
    %v184 = vadd.f32 %v111, %v183
    %v185 = vpop.f32.mrb[0].mxu0
    %186 = vdwg.mxu0
    %vm187 = vcmask 17408
    %v188 = vsel %vm187, %v184, -inf
    %189 = vmax.xlane.f32.xlu0 %v188
    %v190 = vpop.xlane.xlu0 %189
    %v191 = vsub.f32 %v184, %v190
    %v192 = vmul.f32 %v191, 1.442695
    %v193 = vpow.pop %v192
    %v194 = vsel %vm187, %v193, 0.0
    %195 = vadd.xlane.f32.xlu0 %v194
    %v196 = vpop.xlane.xlu0 %195
    %v197 = vlog2.pop %v196
    %v198 = vmul.f32 %v197, 0.6931472
    %v199 = vsub.f32 %v191, %v198
    %200 = vst.msk [vmem:[#allocation2] sm:$0x3] %vm187, %v199
    // Predicated region
    $region18: #{gat_forward.9} parent=1 // pred_check
      _
    $region19: #{gat_forward.9} parent=1 // pred_check_branch
      %202 = sbr.rel (0) target = $region21
    $region20: #{gat_forward.9} parent=1 // pred_region
      %s204 = ssub.s32 32, 32
      %205 = vsyncadd [#allocation3], %s204
      %s207 = sshll.u32 [#allocation2], 4
      %s208 = int_to_ptr.vmem [resolvable:$true] %s207
      %210 = dma.vmem_to_hbm [thread:$0]  %s208, 32, %s4, [#allocation3]
    $region21: #{gat_forward.9} parent=1 // pred_fallthru
      _
    // Predicated region
    $region22: #{gat_forward.9} parent=1 // pred_check
      _
    $region23: #{gat_forward.9} parent=1 // pred_check_branch
      %212 = sbr.rel (0) target = $region25
    $region24: #{gat_forward.9} parent=1 // pred_region
      %213 = dma.done [#allocation3], 32
    $region25: #{gat_forward.9} parent=1 // pred_fallthru
      _
    %214 = vsyncpa [#allocation3], 1

</llo_original>
